<compile_context>
chip_gen: v5e
topology: v5e:2x2
jax: 0.10.0
libtpu: 0.0.40
codegen_flags: <defaults>
</compile_context>

<pallas_src>
import jax
import jax.numpy as jnp
import numpy as np
from jax import lax
from jax.experimental import pallas as pl
from jax.experimental.pallas import tpu as pltpu

TB = 8        # batch tile (sublane multiple)
MPAD = 128    # padded image width (28 -> 128 lanes)
CP1 = 32      # padded conv1 output channels (10 real)
CP2 = 32      # padded conv2 output channels (20 real)
FCP = 128     # padded fc widths (50 / 10 real)


# ---------------------------------------------------------------------------
# The fused kernel.  Shapes (per batch tile of TB images):
#   x_ref : (4, 7, TB, MPAD) f32, x_ref[r, w, n, m] = image[n, 4*w + r, m]
#   t1    : (5*MPAD, 768)  conv1 Toeplitz rhs, cols = (dj, b, v, c1)
#   t2    : (1920, 256)    conv2 Toeplitz rhs, cols = (Dj, t, c2)
#   wf1   : (512, 128)     fc1 weights permuted to our (s, t, c2) flatten order
#   wf2   : (128, 128)
#   o_ref : (TB, 128) log-probs (first 10 columns are real classes)
# ---------------------------------------------------------------------------
def net_fused_kernel(x_ref, t1_ref, b1_ref, t2_ref, b2_ref,
                     wf1_ref, bf1_ref, wf2_ref, bf2_ref, o_ref):
    tb = x_ref.shape[2]
    x = x_ref[...]                                           # (4, 7, tb, 128)

    # ---- conv1 (1->10, k=5) + 2x2 maxpool + relu: one MXU matmul -----------
    # lhs rows ordered (di, a, u, n): conv1 row index i = 4u + 2a + di
    blocks = []
    for di in range(2):
        for a in range(2):
            parts = []
            for ki in range(5):
                o = 2 * a + di + ki                          # 0..7
                parts.append(x[o % 4, o // 4: o // 4 + 6])   # (6, tb, 128)
            blocks.append(jnp.concatenate(parts, axis=-1))   # (6, tb, 640)
    lhs1 = jnp.concatenate(blocks, axis=0).reshape(24 * tb, 5 * MPAD)
    y1 = jnp.dot(lhs1.astype(jnp.bfloat16), t1_ref[...],
                 preferred_element_type=jnp.float32)         # (24*tb, 768)
    y1 = jnp.maximum(y1[:12 * tb], y1[12 * tb:])             # pool H (phase di)
    y1 = jnp.maximum(y1[:, :2 * 6 * CP1], y1[:, 2 * 6 * CP1:])  # pool W (phase dj)
    # rows (a, u, n), cols (b, v, c1); padded c1 columns stay exactly 0
    h1 = jnp.maximum(y1 + b1_ref[...], 0.0)                  # (12*tb, 384)

    # ---- conv2 (10->20, k=5) + 2x2 maxpool + relu --------------------------
    blocks2 = []
    for Di in range(2):
        parts = []
        for ki in range(5):
            oh = Di + ki                                     # 0..5
            start = (oh % 2) * (6 * tb) + (oh // 2) * tb
            parts.append(h1[start:start + 4 * tb, :])        # (4*tb, 384) rows (s, n)
        blocks2.append(jnp.concatenate(parts, axis=-1))      # (4*tb, 1920)
    lhs2 = jnp.concatenate(blocks2, axis=0)                  # (8*tb, 1920)
    y2 = jnp.dot(lhs2.astype(jnp.bfloat16), t2_ref[...],
                 preferred_element_type=jnp.float32)         # (8*tb, 256)
    y2 = jnp.maximum(y2[:4 * tb], y2[4 * tb:])               # pool H (phase Di)
    y2 = jnp.maximum(y2[:, :4 * CP2], y2[:, 4 * CP2:])       # pool W (phase Dj)
    # TODO(synk): conv2_drop (Dropout2d) / F.dropout are identity in eval-mode
    # forward; a training-mode mask would use pltpu.prng_seed/prng_random_bits.
    h2 = jnp.maximum(y2 + b2_ref[...], 0.0)                  # (4*tb, 128) rows (s,n), cols (t,c2)

    # ---- flatten (== torch x.view(-1, 320) via permuted fc1 weights) -------
    flat = jnp.concatenate([h2[s * tb:(s + 1) * tb, :] for s in range(4)],
                           axis=-1)                          # (tb, 512)

    # ---- fc1 + relu + fc2 + log_softmax ------------------------------------
    h = jnp.dot(flat.astype(jnp.bfloat16), wf1_ref[...],
                preferred_element_type=jnp.float32) + bf1_ref[...]
    h = jnp.maximum(h, 0.0)                                  # (tb, 128), cols >=50 are 0
    logits = jnp.dot(h.astype(jnp.bfloat16), wf2_ref[...],
                     preferred_element_type=jnp.float32) + bf2_ref[...]
    lane = lax.broadcasted_iota(jnp.int32, (1, FCP), 1)
    logits = jnp.where(lane < 10, logits, -1e30)             # mask padded classes
    mx = jnp.max(logits, axis=-1, keepdims=True)
    sh = logits - mx
    lse = jnp.log(jnp.sum(jnp.exp(sh), axis=-1, keepdims=True))
    o_ref[...] = sh - lse


# ---------------------------------------------------------------------------
# Offline weight preprocessing (free at runtime): Toeplitz/im2col weight
# matrices with zero padding, bias tiles, and the NCHW-flatten permutation of
# fc1.  Big matrices are cast to bf16 for the MXU.
# ---------------------------------------------------------------------------
def prepare_params(p):
    w1 = np.asarray(p["conv1_w"], np.float32)    # (10, 1, 5, 5)
    b1 = np.asarray(p["conv1_b"], np.float32)
    w2 = np.asarray(p["conv2_w"], np.float32)    # (20, 10, 5, 5)
    b2 = np.asarray(p["conv2_b"], np.float32)
    fw1 = np.asarray(p["fc1_w"], np.float32)     # (50, 320)
    fb1 = np.asarray(p["fc1_b"], np.float32)
    fw2 = np.asarray(p["fc2_w"], np.float32)     # (10, 50)
    fb2 = np.asarray(p["fc2_b"], np.float32)

    # conv1 rhs: rows (ki, m), cols (dj, b, v, c1); conv1 W-position j = 4v+2b+dj
    t1 = np.zeros((5 * MPAD, 2 * 2 * 6 * CP1), np.float32)
    for ki in range(5):
        for kj in range(5):
            for dj in range(2):
                for b in range(2):
                    for v in range(6):
                        j = 4 * v + 2 * b + dj
                        col = dj * (2 * 6 * CP1) + b * (6 * CP1) + v * CP1
                        t1[ki * MPAD + j + kj, col:col + 10] = w1[:, 0, ki, kj]
    b1_t = np.zeros((1, 2 * 6 * CP1), np.float32)            # cols (b, v, c1)
    for b in range(2):
        for v in range(6):
            col = b * (6 * CP1) + v * CP1
            b1_t[0, col:col + 10] = b1

    # conv2 rhs: rows (ki, b, v, c1), cols (Dj, t, c2); kj = (2v+b) - (2t+Dj)
    t2 = np.zeros((5 * 2 * 6 * CP1, 2 * 4 * CP2), np.float32)
    for ki in range(5):
        for kj in range(5):
            for Dj in range(2):
                for t in range(4):
                    q = 2 * t + Dj + kj                      # h1 W index, 0..11
                    row = ki * (2 * 6 * CP1) + (q % 2) * (6 * CP1) + (q // 2) * CP1
                    col = Dj * (4 * CP2) + t * CP2
                    t2[row:row + 10, col:col + 20] = w2[:, :, ki, kj].T
    b2_t = np.zeros((1, 4 * CP2), np.float32)                # cols (t, c2)
    for t in range(4):
        b2_t[0, t * CP2:t * CP2 + 20] = b2

    # fc1: our flatten index (s, t, c2) -> torch flat index c2*16 + s*4 + t
    wf1 = np.zeros((4 * 4 * CP2, FCP), np.float32)
    for s in range(4):
        for t in range(4):
            for c2 in range(20):
                wf1[s * (4 * CP2) + t * CP2 + c2, :50] = fw1[:, c2 * 16 + s * 4 + t]
    bf1 = np.zeros((1, FCP), np.float32)
    bf1[0, :50] = fb1
    wf2 = np.zeros((FCP, FCP), np.float32)
    wf2[:50, :10] = fw2.T
    bf2 = np.zeros((1, FCP), np.float32)
    bf2[0, :10] = fb2

    return {
        "t1": jnp.asarray(t1, jnp.bfloat16), "b1": jnp.asarray(b1_t),
        "t2": jnp.asarray(t2, jnp.bfloat16), "b2": jnp.asarray(b2_t),
        "wf1": jnp.asarray(wf1, jnp.bfloat16), "bf1": jnp.asarray(bf1),
        "wf2": jnp.asarray(wf2, jnp.bfloat16), "bf2": jnp.asarray(bf2),
    }


# ---------------------------------------------------------------------------
# Wrapper: layout plumbing only (batch pad to TB, lane-pad width, H mod-4
# decomposition), then a single pallas_call.
# ---------------------------------------------------------------------------
def net_forward(x_nchw, prepped):
    n = x_nchw.shape[0]
    x = x_nchw.reshape(n, 28, 28).astype(jnp.float32)
    pad_n = (-n) % TB
    if pad_n:
        x = jnp.pad(x, ((0, pad_n), (0, 0), (0, 0)))
    nb = x.shape[0]
    x = jnp.pad(x, ((0, 0), (0, 0), (0, MPAD - 28)))          # lane-pad W to 128
    x4 = x.reshape(nb, 7, 4, MPAD).transpose(2, 1, 0, 3)      # (4, 7, nb, 128)

    t1, b1, t2, b2 = prepped["t1"], prepped["b1"], prepped["t2"], prepped["b2"]
    wf1, bf1, wf2, bf2 = (prepped["wf1"], prepped["bf1"],
                          prepped["wf2"], prepped["bf2"])

    def full(arr):
        nd = arr.ndim
        return pl.BlockSpec(arr.shape, lambda i, _nd=nd: (0,) * _nd)

    out = pl.pallas_call(
        net_fused_kernel,
        out_shape=jax.ShapeDtypeStruct((nb, FCP), jnp.float32),
        grid=(nb // TB,),
        in_specs=[
            pl.BlockSpec((4, 7, TB, MPAD), lambda i: (0, 0, i, 0)),
            full(t1), full(b1), full(t2), full(b2),
            full(wf1), full(bf1), full(wf2), full(bf2),
        ],
        out_specs=pl.BlockSpec((TB, FCP), lambda i: (i, 0)),
        compiler_params=pltpu.CompilerParams(
            dimension_semantics=("parallel",),
            vmem_limit_bytes=32 * 1024 * 1024,
        ),
    )(x4, t1, b1, t2, b2, wf1, bf1, wf2, bf2)
    return out[:n, :10]


def init_params(key):
    ks = jax.random.split(key, 8)

    def u(k, shape, fan_in):
        bound = 1.0 / (fan_in ** 0.5)
        return jax.random.uniform(k, shape, jnp.float32, -bound, bound)

    return {
        "conv1_w": u(ks[0], (10, 1, 5, 5), 1 * 25),
        "conv1_b": u(ks[1], (10,), 1 * 25),
        "conv2_w": u(ks[2], (20, 10, 5, 5), 10 * 25),
        "conv2_b": u(ks[3], (20,), 10 * 25),
        "fc1_w": u(ks[4], (50, 320), 320),
        "fc1_b": u(ks[5], (50,), 320),
        "fc2_w": u(ks[6], (10, 50), 50),
        "fc2_b": u(ks[7], (10,), 50),
    }


if __name__ == "__main__":
    key = jax.random.PRNGKey(0)
    pkey, xkey = jax.random.split(key)
    params = init_params(pkey)
    prepped = prepare_params(params)
    # MNIST-style input: spatial 28x28 is forced by fc1 (20*4*4 = 320); batch=2.
    x = jax.random.normal(xkey, (2, 1, 28, 28), jnp.float32)

    fwd = jax.jit(net_forward)
    out = fwd(x, prepped)
    jax.block_until_ready(out)
    assert out.shape == (2, 10)
    print("KERNEL_OK")
</pallas_src>

<mosaic_0001>
module attributes {stable_mosaic.version = 11 : i64} {
  func.func @net_fused_kernel(%arg0: i32, %arg1: memref<4x7x8x128xf32, #tpu.memory_space<vmem>>, %arg2: memref<640x768xbf16, #tpu.memory_space<vmem>>, %arg3: memref<1x384xf32, #tpu.memory_space<vmem>>, %arg4: memref<1920x256xbf16, #tpu.memory_space<vmem>>, %arg5: memref<1x128xf32, #tpu.memory_space<vmem>>, %arg6: memref<512x128xbf16, #tpu.memory_space<vmem>>, %arg7: memref<1x128xf32, #tpu.memory_space<vmem>>, %arg8: memref<128x128xbf16, #tpu.memory_space<vmem>>, %arg9: memref<1x128xf32, #tpu.memory_space<vmem>>, %arg10: memref<8x128xf32, #tpu.memory_space<vmem>>) attributes {dimension_semantics = [#tpu.dimension_semantics<parallel>], iteration_bounds = array<i64: 1>, scalar_prefetch = 0 : i64, scratch_operands = 0 : i64, tpu.core_type = #tpu.core_type<tc>, window_params = [{transform_indices = @transform_0, window_bounds = array<i64: 4, 7, 8, 128>}, {pipeline_mode = #tpu.pipeline_mode<synchronous>, transform_indices = @transform_1, window_bounds = array<i64: 640, 768>}, {pipeline_mode = #tpu.pipeline_mode<synchronous>, transform_indices = @transform_2, window_bounds = array<i64: 1, 384>}, {pipeline_mode = #tpu.pipeline_mode<synchronous>, transform_indices = @transform_3, window_bounds = array<i64: 1920, 256>}, {pipeline_mode = #tpu.pipeline_mode<synchronous>, transform_indices = @transform_4, window_bounds = array<i64: 1, 128>}, {pipeline_mode = #tpu.pipeline_mode<synchronous>, transform_indices = @transform_5, window_bounds = array<i64: 512, 128>}, {pipeline_mode = #tpu.pipeline_mode<synchronous>, transform_indices = @transform_6, window_bounds = array<i64: 1, 128>}, {pipeline_mode = #tpu.pipeline_mode<synchronous>, transform_indices = @transform_7, window_bounds = array<i64: 128, 128>}, {pipeline_mode = #tpu.pipeline_mode<synchronous>, transform_indices = @transform_8, window_bounds = array<i64: 1, 128>}, {transform_indices = @transform_9, window_bounds = array<i64: 8, 128>}]} {
    %c0 = arith.constant 0 : index
    %c0_0 = arith.constant 0 : index
    %c0_1 = arith.constant 0 : index
    %c0_2 = arith.constant 0 : index
    %0 = vector.load %arg1[%c0, %c0_0, %c0_1, %c0_2] : memref<4x7x8x128xf32, #tpu.memory_space<vmem>>, vector<4x7x8x128xf32>
    %1 = vector.extract_strided_slice %0 {offsets = [0, 0, 0, 0], sizes = [1, 6, 8, 128], strides = [1, 1, 1, 1]} : vector<4x7x8x128xf32> to vector<1x6x8x128xf32>
    %2 = vector.shape_cast %1 : vector<1x6x8x128xf32> to vector<6x8x128xf32>
    %3 = vector.extract_strided_slice %0 {offsets = [1, 0, 0, 0], sizes = [1, 6, 8, 128], strides = [1, 1, 1, 1]} : vector<4x7x8x128xf32> to vector<1x6x8x128xf32>
    %4 = vector.shape_cast %3 : vector<1x6x8x128xf32> to vector<6x8x128xf32>
    %5 = vector.extract_strided_slice %0 {offsets = [2, 0, 0, 0], sizes = [1, 6, 8, 128], strides = [1, 1, 1, 1]} : vector<4x7x8x128xf32> to vector<1x6x8x128xf32>
    %6 = vector.shape_cast %5 : vector<1x6x8x128xf32> to vector<6x8x128xf32>
    %7 = vector.extract_strided_slice %0 {offsets = [3, 0, 0, 0], sizes = [1, 6, 8, 128], strides = [1, 1, 1, 1]} : vector<4x7x8x128xf32> to vector<1x6x8x128xf32>
    %8 = vector.shape_cast %7 : vector<1x6x8x128xf32> to vector<6x8x128xf32>
    %9 = vector.extract_strided_slice %0 {offsets = [0, 1, 0, 0], sizes = [1, 6, 8, 128], strides = [1, 1, 1, 1]} : vector<4x7x8x128xf32> to vector<1x6x8x128xf32>
    %10 = vector.shape_cast %9 : vector<1x6x8x128xf32> to vector<6x8x128xf32>
    %11 = tpu.concatenate %2, %4, %6, %8, %10 in 2 : vector<6x8x128xf32>, vector<6x8x128xf32>, vector<6x8x128xf32>, vector<6x8x128xf32>, vector<6x8x128xf32> -> vector<6x8x640xf32>
    %12 = vector.extract_strided_slice %0 {offsets = [2, 0, 0, 0], sizes = [1, 6, 8, 128], strides = [1, 1, 1, 1]} : vector<4x7x8x128xf32> to vector<1x6x8x128xf32>
    %13 = vector.shape_cast %12 : vector<1x6x8x128xf32> to vector<6x8x128xf32>
    %14 = vector.extract_strided_slice %0 {offsets = [3, 0, 0, 0], sizes = [1, 6, 8, 128], strides = [1, 1, 1, 1]} : vector<4x7x8x128xf32> to vector<1x6x8x128xf32>
    %15 = vector.shape_cast %14 : vector<1x6x8x128xf32> to vector<6x8x128xf32>
    %16 = vector.extract_strided_slice %0 {offsets = [0, 1, 0, 0], sizes = [1, 6, 8, 128], strides = [1, 1, 1, 1]} : vector<4x7x8x128xf32> to vector<1x6x8x128xf32>
    %17 = vector.shape_cast %16 : vector<1x6x8x128xf32> to vector<6x8x128xf32>
    %18 = vector.extract_strided_slice %0 {offsets = [1, 1, 0, 0], sizes = [1, 6, 8, 128], strides = [1, 1, 1, 1]} : vector<4x7x8x128xf32> to vector<1x6x8x128xf32>
    %19 = vector.shape_cast %18 : vector<1x6x8x128xf32> to vector<6x8x128xf32>
    %20 = vector.extract_strided_slice %0 {offsets = [2, 1, 0, 0], sizes = [1, 6, 8, 128], strides = [1, 1, 1, 1]} : vector<4x7x8x128xf32> to vector<1x6x8x128xf32>
    %21 = vector.shape_cast %20 : vector<1x6x8x128xf32> to vector<6x8x128xf32>
    %22 = tpu.concatenate %13, %15, %17, %19, %21 in 2 : vector<6x8x128xf32>, vector<6x8x128xf32>, vector<6x8x128xf32>, vector<6x8x128xf32>, vector<6x8x128xf32> -> vector<6x8x640xf32>
    %23 = vector.extract_strided_slice %0 {offsets = [1, 0, 0, 0], sizes = [1, 6, 8, 128], strides = [1, 1, 1, 1]} : vector<4x7x8x128xf32> to vector<1x6x8x128xf32>
    %24 = vector.shape_cast %23 : vector<1x6x8x128xf32> to vector<6x8x128xf32>
    %25 = vector.extract_strided_slice %0 {offsets = [2, 0, 0, 0], sizes = [1, 6, 8, 128], strides = [1, 1, 1, 1]} : vector<4x7x8x128xf32> to vector<1x6x8x128xf32>
    %26 = vector.shape_cast %25 : vector<1x6x8x128xf32> to vector<6x8x128xf32>
    %27 = vector.extract_strided_slice %0 {offsets = [3, 0, 0, 0], sizes = [1, 6, 8, 128], strides = [1, 1, 1, 1]} : vector<4x7x8x128xf32> to vector<1x6x8x128xf32>
    %28 = vector.shape_cast %27 : vector<1x6x8x128xf32> to vector<6x8x128xf32>
    %29 = vector.extract_strided_slice %0 {offsets = [0, 1, 0, 0], sizes = [1, 6, 8, 128], strides = [1, 1, 1, 1]} : vector<4x7x8x128xf32> to vector<1x6x8x128xf32>
    %30 = vector.shape_cast %29 : vector<1x6x8x128xf32> to vector<6x8x128xf32>
    %31 = vector.extract_strided_slice %0 {offsets = [1, 1, 0, 0], sizes = [1, 6, 8, 128], strides = [1, 1, 1, 1]} : vector<4x7x8x128xf32> to vector<1x6x8x128xf32>
    %32 = vector.shape_cast %31 : vector<1x6x8x128xf32> to vector<6x8x128xf32>
    %33 = tpu.concatenate %24, %26, %28, %30, %32 in 2 : vector<6x8x128xf32>, vector<6x8x128xf32>, vector<6x8x128xf32>, vector<6x8x128xf32>, vector<6x8x128xf32> -> vector<6x8x640xf32>
    %34 = vector.extract_strided_slice %0 {offsets = [3, 0, 0, 0], sizes = [1, 6, 8, 128], strides = [1, 1, 1, 1]} : vector<4x7x8x128xf32> to vector<1x6x8x128xf32>
    %35 = vector.shape_cast %34 : vector<1x6x8x128xf32> to vector<6x8x128xf32>
    %36 = vector.extract_strided_slice %0 {offsets = [0, 1, 0, 0], sizes = [1, 6, 8, 128], strides = [1, 1, 1, 1]} : vector<4x7x8x128xf32> to vector<1x6x8x128xf32>
    %37 = vector.shape_cast %36 : vector<1x6x8x128xf32> to vector<6x8x128xf32>
    %38 = vector.extract_strided_slice %0 {offsets = [1, 1, 0, 0], sizes = [1, 6, 8, 128], strides = [1, 1, 1, 1]} : vector<4x7x8x128xf32> to vector<1x6x8x128xf32>
    %39 = vector.shape_cast %38 : vector<1x6x8x128xf32> to vector<6x8x128xf32>
    %40 = vector.extract_strided_slice %0 {offsets = [2, 1, 0, 0], sizes = [1, 6, 8, 128], strides = [1, 1, 1, 1]} : vector<4x7x8x128xf32> to vector<1x6x8x128xf32>
    %41 = vector.shape_cast %40 : vector<1x6x8x128xf32> to vector<6x8x128xf32>
    %42 = vector.extract_strided_slice %0 {offsets = [3, 1, 0, 0], sizes = [1, 6, 8, 128], strides = [1, 1, 1, 1]} : vector<4x7x8x128xf32> to vector<1x6x8x128xf32>
    %43 = vector.shape_cast %42 : vector<1x6x8x128xf32> to vector<6x8x128xf32>
    %44 = tpu.concatenate %35, %37, %39, %41, %43 in 2 : vector<6x8x128xf32>, vector<6x8x128xf32>, vector<6x8x128xf32>, vector<6x8x128xf32>, vector<6x8x128xf32> -> vector<6x8x640xf32>
    %45 = tpu.concatenate %11, %22, %33, %44 in 0 : vector<6x8x640xf32>, vector<6x8x640xf32>, vector<6x8x640xf32>, vector<6x8x640xf32> -> vector<24x8x640xf32>
    %46 = vector.shape_cast %45 : vector<24x8x640xf32> to vector<192x640xf32>
    %47 = arith.truncf %46 : vector<192x640xf32> to vector<192x640xbf16>
    %c0_3 = arith.constant 0 : index
    %c0_4 = arith.constant 0 : index
    %48 = vector.load %arg2[%c0_3, %c0_4] : memref<640x768xbf16, #tpu.memory_space<vmem>>, vector<640x768xbf16>
    %cst = arith.constant dense<0.000000e+00> : vector<192x768xf32>
    %49 = tpu.matmul %47, %48, %cst {dimension_numbers = #tpu.dot_dimension_numbers<[1], [0], [0], [1], [0, 0, 1, 1], [], []>} : vector<192x640xbf16>, vector<640x768xbf16>, vector<192x768xf32> -> vector<192x768xf32>
    %50 = vector.extract_strided_slice %49 {offsets = [0, 0], sizes = [96, 768], strides = [1, 1]} : vector<192x768xf32> to vector<96x768xf32>
    %51 = vector.extract_strided_slice %49 {offsets = [96, 0], sizes = [96, 768], strides = [1, 1]} : vector<192x768xf32> to vector<96x768xf32>
    %52 = arith.maximumf %50, %51 : vector<96x768xf32>
    %53 = vector.extract_strided_slice %52 {offsets = [0, 0], sizes = [96, 384], strides = [1, 1]} : vector<96x768xf32> to vector<96x384xf32>
    %54 = vector.extract_strided_slice %52 {offsets = [0, 384], sizes = [96, 384], strides = [1, 1]} : vector<96x768xf32> to vector<96x384xf32>
    %55 = arith.maximumf %53, %54 : vector<96x384xf32>
    %c0_5 = arith.constant 0 : index
    %c0_6 = arith.constant 0 : index
    %56 = vector.load %arg3[%c0_5, %c0_6] : memref<1x384xf32, #tpu.memory_space<vmem>>, vector<1x384xf32>
    %57 = vector.broadcast %56 : vector<1x384xf32> to vector<96x384xf32>
    %58 = arith.addf %55, %57 : vector<96x384xf32>
    %cst_7 = arith.constant 0.000000e+00 : f32
    %59 = vector.broadcast %cst_7 : f32 to vector<96x384xf32>
    %60 = arith.maximumf %58, %59 : vector<96x384xf32>
    %61 = vector.extract_strided_slice %60 {offsets = [0, 0], sizes = [32, 384], strides = [1, 1]} : vector<96x384xf32> to vector<32x384xf32>
    %62 = vector.extract_strided_slice %60 {offsets = [48, 0], sizes = [32, 384], strides = [1, 1]} : vector<96x384xf32> to vector<32x384xf32>
    %63 = vector.extract_strided_slice %60 {offsets = [8, 0], sizes = [32, 384], strides = [1, 1]} : vector<96x384xf32> to vector<32x384xf32>
    %64 = vector.extract_strided_slice %60 {offsets = [56, 0], sizes = [32, 384], strides = [1, 1]} : vector<96x384xf32> to vector<32x384xf32>
    %65 = vector.extract_strided_slice %60 {offsets = [16, 0], sizes = [32, 384], strides = [1, 1]} : vector<96x384xf32> to vector<32x384xf32>
    %66 = tpu.concatenate %61, %62, %63, %64, %65 in 1 : vector<32x384xf32>, vector<32x384xf32>, vector<32x384xf32>, vector<32x384xf32>, vector<32x384xf32> -> vector<32x1920xf32>
    %67 = vector.extract_strided_slice %60 {offsets = [48, 0], sizes = [32, 384], strides = [1, 1]} : vector<96x384xf32> to vector<32x384xf32>
    %68 = vector.extract_strided_slice %60 {offsets = [8, 0], sizes = [32, 384], strides = [1, 1]} : vector<96x384xf32> to vector<32x384xf32>
    %69 = vector.extract_strided_slice %60 {offsets = [56, 0], sizes = [32, 384], strides = [1, 1]} : vector<96x384xf32> to vector<32x384xf32>
    %70 = vector.extract_strided_slice %60 {offsets = [16, 0], sizes = [32, 384], strides = [1, 1]} : vector<96x384xf32> to vector<32x384xf32>
    %71 = vector.extract_strided_slice %60 {offsets = [64, 0], sizes = [32, 384], strides = [1, 1]} : vector<96x384xf32> to vector<32x384xf32>
    %72 = tpu.concatenate %67, %68, %69, %70, %71 in 1 : vector<32x384xf32>, vector<32x384xf32>, vector<32x384xf32>, vector<32x384xf32>, vector<32x384xf32> -> vector<32x1920xf32>
    %73 = tpu.concatenate %66, %72 in 0 : vector<32x1920xf32>, vector<32x1920xf32> -> vector<64x1920xf32>
    %74 = arith.truncf %73 : vector<64x1920xf32> to vector<64x1920xbf16>
    %c0_8 = arith.constant 0 : index
    %c0_9 = arith.constant 0 : index
    %75 = vector.load %arg4[%c0_8, %c0_9] : memref<1920x256xbf16, #tpu.memory_space<vmem>>, vector<1920x256xbf16>
    %cst_10 = arith.constant dense<0.000000e+00> : vector<64x256xf32>
    %76 = tpu.matmul %74, %75, %cst_10 {dimension_numbers = #tpu.dot_dimension_numbers<[1], [0], [0], [1], [0, 0, 1, 1], [], []>} : vector<64x1920xbf16>, vector<1920x256xbf16>, vector<64x256xf32> -> vector<64x256xf32>
    %77 = vector.extract_strided_slice %76 {offsets = [0, 0], sizes = [32, 256], strides = [1, 1]} : vector<64x256xf32> to vector<32x256xf32>
    %78 = vector.extract_strided_slice %76 {offsets = [32, 0], sizes = [32, 256], strides = [1, 1]} : vector<64x256xf32> to vector<32x256xf32>
    %79 = arith.maximumf %77, %78 : vector<32x256xf32>
    %80 = vector.extract_strided_slice %79 {offsets = [0, 0], sizes = [32, 128], strides = [1, 1]} : vector<32x256xf32> to vector<32x128xf32>
    %81 = vector.extract_strided_slice %79 {offsets = [0, 128], sizes = [32, 128], strides = [1, 1]} : vector<32x256xf32> to vector<32x128xf32>
    %82 = arith.maximumf %80, %81 : vector<32x128xf32>
    %c0_11 = arith.constant 0 : index
    %c0_12 = arith.constant 0 : index
    %83 = vector.load %arg5[%c0_11, %c0_12] : memref<1x128xf32, #tpu.memory_space<vmem>>, vector<1x128xf32>
    %84 = vector.broadcast %83 : vector<1x128xf32> to vector<32x128xf32>
    %85 = arith.addf %82, %84 : vector<32x128xf32>
    %cst_13 = arith.constant 0.000000e+00 : f32
    %86 = vector.broadcast %cst_13 : f32 to vector<32x128xf32>
    %87 = arith.maximumf %85, %86 : vector<32x128xf32>
    %88 = vector.extract_strided_slice %87 {offsets = [0, 0], sizes = [8, 128], strides = [1, 1]} : vector<32x128xf32> to vector<8x128xf32>
    %89 = vector.extract_strided_slice %87 {offsets = [8, 0], sizes = [8, 128], strides = [1, 1]} : vector<32x128xf32> to vector<8x128xf32>
    %90 = vector.extract_strided_slice %87 {offsets = [16, 0], sizes = [8, 128], strides = [1, 1]} : vector<32x128xf32> to vector<8x128xf32>
    %91 = vector.extract_strided_slice %87 {offsets = [24, 0], sizes = [8, 128], strides = [1, 1]} : vector<32x128xf32> to vector<8x128xf32>
    %92 = tpu.concatenate %88, %89, %90, %91 in 1 : vector<8x128xf32>, vector<8x128xf32>, vector<8x128xf32>, vector<8x128xf32> -> vector<8x512xf32>
    %93 = arith.truncf %92 : vector<8x512xf32> to vector<8x512xbf16>
    %c0_14 = arith.constant 0 : index
    %c0_15 = arith.constant 0 : index
    %94 = vector.load %arg6[%c0_14, %c0_15] : memref<512x128xbf16, #tpu.memory_space<vmem>>, vector<512x128xbf16>
    %cst_16 = arith.constant dense<0.000000e+00> : vector<8x128xf32>
    %95 = tpu.matmul %93, %94, %cst_16 {dimension_numbers = #tpu.dot_dimension_numbers<[1], [0], [0], [1], [0, 0, 1, 1], [], []>} : vector<8x512xbf16>, vector<512x128xbf16>, vector<8x128xf32> -> vector<8x128xf32>
    %c0_17 = arith.constant 0 : index
    %c0_18 = arith.constant 0 : index
    %96 = vector.load %arg7[%c0_17, %c0_18] : memref<1x128xf32, #tpu.memory_space<vmem>>, vector<1x128xf32>
    %97 = vector.broadcast %96 : vector<1x128xf32> to vector<8x128xf32>
    %98 = arith.addf %95, %97 : vector<8x128xf32>
    %cst_19 = arith.constant 0.000000e+00 : f32
    %99 = vector.broadcast %cst_19 : f32 to vector<8x128xf32>
    %100 = arith.maximumf %98, %99 : vector<8x128xf32>
    %101 = arith.truncf %100 : vector<8x128xf32> to vector<8x128xbf16>
    %c0_20 = arith.constant 0 : index
    %c0_21 = arith.constant 0 : index
    %102 = vector.load %arg8[%c0_20, %c0_21] : memref<128x128xbf16, #tpu.memory_space<vmem>>, vector<128x128xbf16>
    %cst_22 = arith.constant dense<0.000000e+00> : vector<8x128xf32>
    %103 = tpu.matmul %101, %102, %cst_22 {dimension_numbers = #tpu.dot_dimension_numbers<[1], [0], [0], [1], [0, 0, 1, 1], [], []>} : vector<8x128xbf16>, vector<128x128xbf16>, vector<8x128xf32> -> vector<8x128xf32>
    %c0_23 = arith.constant 0 : index
    %c0_24 = arith.constant 0 : index
    %104 = vector.load %arg9[%c0_23, %c0_24] : memref<1x128xf32, #tpu.memory_space<vmem>>, vector<1x128xf32>
    %105 = vector.broadcast %104 : vector<1x128xf32> to vector<8x128xf32>
    %106 = arith.addf %103, %105 : vector<8x128xf32>
    %107 = tpu.iota {dimensions = array<i32: 1>} : vector<1x128xi32>
    %c10_i32 = arith.constant 10 : i32
    %108 = vector.broadcast %c10_i32 : i32 to vector<1x128xi32>
    %109 = arith.cmpi slt, %107, %108 : vector<1x128xi32>
    %cst_25 = arith.constant -1.000000e+30 : f32
    %110 = vector.shape_cast %109 : vector<1x128xi1> to vector<1x128xi1>
    %111 = vector.broadcast %110 : vector<1x128xi1> to vector<8x128xi1>
    %112 = vector.broadcast %cst_25 : f32 to vector<8x128xf32>
    %113 = arith.select %111, %106, %112 : vector<8x128xi1>, vector<8x128xf32>
    %cst_26 = arith.constant dense<0xFF800000> : vector<8xf32>
    %114 = vector.multi_reduction <maximumf>, %113, %cst_26 [1] : vector<8x128xf32> to vector<8xf32>
    %115 = vector.shape_cast %114 : vector<8xf32> to vector<8x1xf32>
    %116 = vector.broadcast %115 : vector<8x1xf32> to vector<8x128xf32>
    %117 = arith.subf %113, %116 : vector<8x128xf32>
    %118 = math.exp %117 : vector<8x128xf32>
    %cst_27 = arith.constant dense<0.000000e+00> : vector<8xf32>
    %119 = vector.multi_reduction <add>, %118, %cst_27 [1] : vector<8x128xf32> to vector<8xf32>
    %120 = vector.shape_cast %119 : vector<8xf32> to vector<8x1xf32>
    %121 = math.log %120 : vector<8x1xf32>
    %122 = vector.broadcast %121 : vector<8x1xf32> to vector<8x128xf32>
    %123 = arith.subf %117, %122 : vector<8x128xf32>
    %c0_28 = arith.constant 0 : index
    %c0_29 = arith.constant 0 : index
    %124 = vector.load %arg10[%c0_28, %c0_29] : memref<8x128xf32, #tpu.memory_space<vmem>>, vector<8x128xf32>
    tpu.vector_store %arg10[%c0_28, %c0_29], %123 {strides = array<i32>} : memref<8x128xf32, #tpu.memory_space<vmem>>, vector<8x128xf32>,
    return
  }
  func.func @transform_0(%arg0: i32) -> (i32, i32, i32, i32) {
    %c0_i32 = arith.constant 0 : i32
    %c0_i32_0 = arith.constant 0 : i32
    %c0_i32_1 = arith.constant 0 : i32
    %c0_i32_2 = arith.constant 0 : i32
    return %c0_i32, %c0_i32_0, %arg0, %c0_i32_1 : i32, i32, i32, i32
  }
  func.func @transform_1(%arg0: i32) -> (i32, i32) {
    %c0_i32 = arith.constant 0 : i32
    %c0_i32_0 = arith.constant 0 : i32
    %c0_i32_1 = arith.constant 0 : i32
    return %c0_i32, %c0_i32_0 : i32, i32
  }
  func.func @transform_2(%arg0: i32) -> (i32, i32) {
    %c0_i32 = arith.constant 0 : i32
    %c0_i32_0 = arith.constant 0 : i32
    %c0_i32_1 = arith.constant 0 : i32
    return %c0_i32, %c0_i32_0 : i32, i32
  }
  func.func @transform_3(%arg0: i32) -> (i32, i32) {
    %c0_i32 = arith.constant 0 : i32
    %c0_i32_0 = arith.constant 0 : i32
    %c0_i32_1 = arith.constant 0 : i32
    return %c0_i32, %c0_i32_0 : i32, i32
  }
  func.func @transform_4(%arg0: i32) -> (i32, i32) {
    %c0_i32 = arith.constant 0 : i32
    %c0_i32_0 = arith.constant 0 : i32
    %c0_i32_1 = arith.constant 0 : i32
    return %c0_i32, %c0_i32_0 : i32, i32
  }
  func.func @transform_5(%arg0: i32) -> (i32, i32) {
    %c0_i32 = arith.constant 0 : i32
    %c0_i32_0 = arith.constant 0 : i32
    %c0_i32_1 = arith.constant 0 : i32
    return %c0_i32, %c0_i32_0 : i32, i32
  }
  func.func @transform_6(%arg0: i32) -> (i32, i32) {
    %c0_i32 = arith.constant 0 : i32
    %c0_i32_0 = arith.constant 0 : i32
    %c0_i32_1 = arith.constant 0 : i32
    return %c0_i32, %c0_i32_0 : i32, i32
  }
  func.func @transform_7(%arg0: i32) -> (i32, i32) {
    %c0_i32 = arith.constant 0 : i32
    %c0_i32_0 = arith.constant 0 : i32
    %c0_i32_1 = arith.constant 0 : i32
    return %c0_i32, %c0_i32_0 : i32, i32
  }
  func.func @transform_8(%arg0: i32) -> (i32, i32) {
    %c0_i32 = arith.constant 0 : i32
    %c0_i32_0 = arith.constant 0 : i32
    %c0_i32_1 = arith.constant 0 : i32
    return %c0_i32, %c0_i32_0 : i32, i32
  }
  func.func @transform_9(%arg0: i32) -> (i32, i32) {
    %c0_i32 = arith.constant 0 : i32
    %c0_i32_0 = arith.constant 0 : i32
    return %arg0, %c0_i32 : i32, i32
  }
}

</mosaic_0001>

<llo_original>
// kernel: net_forward.1
$region0: #{net_forward.1}
  #allocation0 [shape = 'u32[]', space=smem, size = 0x4, offset = 0x4, fixed_abs, tag = 'smem constant byte address 0x4 - core index']
  #allocation1 [shape = 'u32[72,128]{1,0:T(1,128)}', space=vmem, size = 0x9000, scoped, tag = 'internal scratch']
  %s0 = inlined_call_operand.vmem [shape: f32[4,7,8,128], index: 0, kind: input, shape index: {}]
  %s1 = inlined_call_operand.hbm [shape: bf16[640,768], index: 1, kind: input, shape index: {}]
  %s2 = inlined_call_operand.vmem [shape: f32[1,384], index: 2, kind: input, shape index: {}]
  %s3 = inlined_call_operand.hbm [shape: bf16[1920,256], index: 3, kind: input, shape index: {}]
  %s4 = inlined_call_operand.vmem [shape: f32[1,128], index: 4, kind: input, shape index: {}]
  %s5 = inlined_call_operand.vmem [shape: bf16[512,128], index: 5, kind: input, shape index: {}]
  %s6 = inlined_call_operand.vmem [shape: f32[1,128], index: 6, kind: input, shape index: {}]
  %s7 = inlined_call_operand.vmem [shape: bf16[128,128], index: 7, kind: input, shape index: {}]
  %s8 = inlined_call_operand.vmem [shape: f32[1,128], index: 8, kind: input, shape index: {}]
  %s9 = inlined_call_operand.vmem [shape: f32[8,128], index: 9, kind: output, shape index: {}]
  %s10 = sld [smem:[#allocation0]]
  $region54: #{net_forward.1} parent=0
    _
  %s12 = ssub.s32 1, %s10
  %s13 = scalar_select 0, %s12, %s10
  $region1: #{net_forward.1} parent=0
    #allocation2 [shape = 'u8[983040]{0}', space=vmem, size = 0xf0000, scoped, tag = 'input window, operand 1, single buffered']
    #allocation3 [shape = 's32[1]{0}', space=sflag, size = 0x4, scoped, tag = 'scoped memory for net_forward.1']
    #allocation4 [shape = 'u8[983040]{0}', space=vmem, size = 0xf0000, scoped, tag = 'input window, operand 3, single buffered']
    #allocation5 [shape = 's32[1]{0}', space=sflag, size = 0x4, scoped, tag = 'scoped memory for net_forward.1']
    %14 = vsyncpa [#allocation3], 0
    %15 = vsyncpa [#allocation5], 0
    // Predicated region
    $region2: #{net_forward.1} parent=1 // pred_check
      _
    $region3: #{net_forward.1} parent=1 // pred_check_branch
      %17 = sbr.rel (0) target = $region5
    $region4: #{net_forward.1} parent=1 // pred_region
      _
    $region5: #{net_forward.1} parent=1 // pred_fallthru
      _
    // Predicated region
    $region6: #{net_forward.1} parent=1 // pred_check
      _
    $region7: #{net_forward.1} parent=1 // pred_check_branch
      %19 = sbr.rel (0) target = $region9
    $region8: #{net_forward.1} parent=1 // pred_region
      %21 = vsyncadd [#allocation3], 0
      %s22 = sshll.u32 %s1, 4
      %s23 = int_to_ptr.hbm [resolvable:$true] %s22
      %s24 = sshll.u32 [#allocation2], 4
      %s25 = int_to_ptr.vmem [resolvable:$true] %s24
      %30 = dma.hbm_to_vmem [thread:$0]  %s23, 30720, %s25, [#allocation3], 384, 384, 24
    $region9: #{net_forward.1} parent=1 // pred_fallthru
      _
    // Predicated region
    $region10: #{net_forward.1} parent=1 // pred_check
      _
    $region11: #{net_forward.1} parent=1 // pred_check_branch
      %32 = sbr.rel (0) target = $region13
    $region12: #{net_forward.1} parent=1 // pred_region
      _
    $region13: #{net_forward.1} parent=1 // pred_fallthru
      _
    // Predicated region
    $region14: #{net_forward.1} parent=1 // pred_check
      _
    $region15: #{net_forward.1} parent=1 // pred_check_branch
      %34 = sbr.rel (0) target = $region17
    $region16: #{net_forward.1} parent=1 // pred_region
      %36 = vsyncadd [#allocation5], 0
      %s37 = sshll.u32 %s3, 4
      %s38 = int_to_ptr.hbm [resolvable:$true] %s37
      %s39 = sshll.u32 [#allocation4], 4
      %s40 = int_to_ptr.vmem [resolvable:$true] %s39
      %45 = dma.hbm_to_vmem [thread:$0]  %s38, 30720, %s40, [#allocation5], 128, 128, 8
    $region17: #{net_forward.1} parent=1 // pred_fallthru
      _
    // Predicated region
    $region18: #{net_forward.1} parent=1 // pred_check
      _
    $region19: #{net_forward.1} parent=1 // pred_check_branch
      %47 = sbr.rel (0) target = $region21
    $region20: #{net_forward.1} parent=1 // pred_region
      _
    $region21: #{net_forward.1} parent=1 // pred_fallthru
      _
    // Predicated region
    $region22: #{net_forward.1} parent=1 // pred_check
      _
    $region23: #{net_forward.1} parent=1 // pred_check_branch
      %49 = sbr.rel (0) target = $region25
    $region24: #{net_forward.1} parent=1 // pred_region
      _
    $region25: #{net_forward.1} parent=1 // pred_fallthru
      _
    // Predicated region
    $region26: #{net_forward.1} parent=1 // pred_check
      _
    $region27: #{net_forward.1} parent=1 // pred_check_branch
      %51 = sbr.rel (0) target = $region29
    $region28: #{net_forward.1} parent=1 // pred_region
      _
    $region29: #{net_forward.1} parent=1 // pred_fallthru
      _
    // Predicated region
    $region30: #{net_forward.1} parent=1 // pred_check
      _
    $region31: #{net_forward.1} parent=1 // pred_check_branch
      %53 = sbr.rel (0) target = $region33
    $region32: #{net_forward.1} parent=1 // pred_region
      _
    $region33: #{net_forward.1} parent=1 // pred_fallthru
      _
    // Predicated region
    $region34: #{net_forward.1} parent=1 // pred_check
      _
    $region35: #{net_forward.1} parent=1 // pred_check_branch
      %55 = sbr.rel (0) target = $region37
    $region36: #{net_forward.1} parent=1 // pred_region
      _
    $region37: #{net_forward.1} parent=1 // pred_fallthru
      _
    // Predicated region
    $region38: #{net_forward.1} parent=1 // pred_check
      _
    $region39: #{net_forward.1} parent=1 // pred_check_branch
      %57 = sbr.rel (0) target = $region41
    $region40: #{net_forward.1} parent=1 // pred_region
      %59 = dma.done [#allocation3], 30720
    $region41: #{net_forward.1} parent=1 // pred_fallthru
      _
    // Predicated region
    $region42: #{net_forward.1} parent=1 // pred_check
      _
    $region43: #{net_forward.1} parent=1 // pred_check_branch
      %61 = sbr.rel (0) target = $region45
    $region44: #{net_forward.1} parent=1 // pred_region
      %63 = dma.done [#allocation5], 30720
    $region45: #{net_forward.1} parent=1 // pred_fallthru
      _
    %v64 = vld [vmem:[%s0] sm:$0xff]
    %v65 = vld [vmem:[%s0 + $0x8] sm:$0xff]
    %v66 = vld [vmem:[%s0 + $0x10] sm:$0xff]
    %v67 = vld [vmem:[%s0 + $0x18] sm:$0xff]
    %v68 = vld [vmem:[%s0 + $0x20] sm:$0xff]
    %v69 = vld [vmem:[%s0 + $0x28] sm:$0xff]
    %v70 = vld [vmem:[%s0 + $0x30] sm:$0xff]
    %v71 = vld [vmem:[%s0 + $0x38] sm:$0xff]
    %v72 = vld [vmem:[%s0 + $0x40] sm:$0xff]
    %v73 = vld [vmem:[%s0 + $0x48] sm:$0xff]
    %v74 = vld [vmem:[%s0 + $0x50] sm:$0xff]
    %v75 = vld [vmem:[%s0 + $0x58] sm:$0xff]
    %v76 = vld [vmem:[%s0 + $0x60] sm:$0xff]
    %v77 = vld [vmem:[%s0 + $0x68] sm:$0xff]
    %v78 = vld [vmem:[%s0 + $0x70] sm:$0xff]
    %v79 = vld [vmem:[%s0 + $0x78] sm:$0xff]
    %v80 = vld [vmem:[%s0 + $0x80] sm:$0xff]
    %v81 = vld [vmem:[%s0 + $0x88] sm:$0xff]
    %v82 = vld [vmem:[%s0 + $0x90] sm:$0xff]
    %v83 = vld [vmem:[%s0 + $0x98] sm:$0xff]
    %v84 = vld [vmem:[%s0 + $0xa0] sm:$0xff]
    %v85 = vld [vmem:[%s0 + $0xa8] sm:$0xff]
    %v86 = vld [vmem:[%s0 + $0xb0] sm:$0xff]
    %v87 = vld [vmem:[%s0 + $0xb8] sm:$0xff]
    %v88 = vld [vmem:[%s0 + $0xc0] sm:$0xff]
    %v89 = vld [vmem:[%s0 + $0xc8] sm:$0xff]
    %v90 = vld [vmem:[%s0 + $0xd0] sm:$0xff]
    %v91 = vld [vmem:[%s0 + $0xd8] sm:$0xff]
    %v92 = vpack.c.bf16 %v65, %v64
    %v93 = vpack.c.bf16 %v72, %v71
    %v94 = vpack.c.bf16 %v79, %v78
    %v95 = vpack.c.bf16 %v86, %v85
    %v96 = vpack.c.bf16 %v66, %v65
    %v97 = vpack.c.bf16 %v67, %v66
    %v98 = vpack.c.bf16 %v74, %v73
    %v99 = vpack.c.bf16 %v81, %v80
    %v100 = vpack.c.bf16 %v88, %v87
    %v101 = vpack.c.bf16 %v68, %v67
    %v102 = vpack.c.bf16 %v69, %v68
    %v103 = vpack.c.bf16 %v76, %v75
    %v104 = vpack.c.bf16 %v83, %v82
    %v105 = vpack.c.bf16 %v90, %v89
    %v106 = vpack.c.bf16 %v70, %v69
    %v107 = vpack.c.bf16 %v73, %v72
    %v108 = vpack.c.bf16 %v80, %v79
    %v109 = vpack.c.bf16 %v75, %v74
    %v110 = vpack.c.bf16 %v82, %v81
    %v111 = vpack.c.bf16 %v77, %v76
    %v112 = vpack.c.bf16 %v84, %v83
    %v113 = vpack.c.bf16 %v87, %v86
    %v114 = vpack.c.bf16 %v89, %v88
    %v115 = vpack.c.bf16 %v91, %v90
    %v116 = vld [vmem:[#allocation2] sm:$0xff]
    %v117 = vld [vmem:[#allocation2 + $0x8] sm:$0xff]
    %v118 = vld [vmem:[#allocation2 + $0x10] sm:$0xff]
    %v119 = vld [vmem:[#allocation2 + $0x18] sm:$0xff]
    %v120 = vld [vmem:[#allocation2 + $0x20] sm:$0xff]
    %v121 = vld [vmem:[#allocation2 + $0x28] sm:$0xff]
    %v122 = vld [vmem:[#allocation2 + $0x30] sm:$0xff]
    %v123 = vld [vmem:[#allocation2 + $0x38] sm:$0xff]
    %v124 = vld [vmem:[#allocation2 + $0x40] sm:$0xff]
    %v125 = vld [vmem:[#allocation2 + $0x48] sm:$0xff]
    %v126 = vld [vmem:[#allocation2 + $0x50] sm:$0xff]
    %v127 = vld [vmem:[#allocation2 + $0x58] sm:$0xff]
    %v128 = vld [vmem:[#allocation2 + $0x60] sm:$0xff]
    %v129 = vld [vmem:[#allocation2 + $0x68] sm:$0xff]
    %v130 = vld [vmem:[#allocation2 + $0x70] sm:$0xff]
    %v131 = vld [vmem:[#allocation2 + $0x78] sm:$0xff]
    %v132 = vld [vmem:[#allocation2 + $0x80] sm:$0xff]
    %v133 = vld [vmem:[#allocation2 + $0x88] sm:$0xff]
    %v134 = vld [vmem:[#allocation2 + $0x90] sm:$0xff]
    %v135 = vld [vmem:[#allocation2 + $0x98] sm:$0xff]
    %v136 = vld [vmem:[#allocation2 + $0xa0] sm:$0xff]
    %v137 = vld [vmem:[#allocation2 + $0xa8] sm:$0xff]
    %v138 = vld [vmem:[#allocation2 + $0xb0] sm:$0xff]
    %v139 = vld [vmem:[#allocation2 + $0xb8] sm:$0xff]
    %v140 = vld [vmem:[#allocation2 + $0xc0] sm:$0xff]
    %v141 = vld [vmem:[#allocation2 + $0xc8] sm:$0xff]
    %v142 = vld [vmem:[#allocation2 + $0xd0] sm:$0xff]
    %v143 = vld [vmem:[#allocation2 + $0xd8] sm:$0xff]
    %v144 = vld [vmem:[#allocation2 + $0xe0] sm:$0xff]
    %v145 = vld [vmem:[#allocation2 + $0xe8] sm:$0xff]
    %v146 = vld [vmem:[#allocation2 + $0xf0] sm:$0xff]
    %v147 = vld [vmem:[#allocation2 + $0xf8] sm:$0xff]
    %v148 = vld [vmem:[#allocation2 + $0x100] sm:$0xff]
    %v149 = vld [vmem:[#allocation2 + $0x108] sm:$0xff]
    %v150 = vld [vmem:[#allocation2 + $0x110] sm:$0xff]
    %v151 = vld [vmem:[#allocation2 + $0x118] sm:$0xff]
    %v152 = vld [vmem:[#allocation2 + $0x120] sm:$0xff]
    %v153 = vld [vmem:[#allocation2 + $0x128] sm:$0xff]
    %v154 = vld [vmem:[#allocation2 + $0x130] sm:$0xff]
    %v155 = vld [vmem:[#allocation2 + $0x138] sm:$0xff]
    %v156 = vld [vmem:[#allocation2 + $0x140] sm:$0xff]
    %v157 = vld [vmem:[#allocation2 + $0x148] sm:$0xff]
    %v158 = vld [vmem:[#allocation2 + $0x150] sm:$0xff]
    %v159 = vld [vmem:[#allocation2 + $0x158] sm:$0xff]
    %v160 = vld [vmem:[#allocation2 + $0x160] sm:$0xff]
    %v161 = vld [vmem:[#allocation2 + $0x168] sm:$0xff]
    %v162 = vld [vmem:[#allocation2 + $0x170] sm:$0xff]
    %v163 = vld [vmem:[#allocation2 + $0x178] sm:$0xff]
    %v164 = vld [vmem:[#allocation2 + $0x180] sm:$0xff]
    %v165 = vld [vmem:[#allocation2 + $0x188] sm:$0xff]
    %v166 = vld [vmem:[#allocation2 + $0x190] sm:$0xff]
    %v167 = vld [vmem:[#allocation2 + $0x198] sm:$0xff]
    %v168 = vld [vmem:[#allocation2 + $0x1a0] sm:$0xff]
    %v169 = vld [vmem:[#allocation2 + $0x1a8] sm:$0xff]
    %v170 = vld [vmem:[#allocation2 + $0x1b0] sm:$0xff]
    %v171 = vld [vmem:[#allocation2 + $0x1b8] sm:$0xff]
    %v172 = vld [vmem:[#allocation2 + $0x1c0] sm:$0xff]
    %v173 = vld [vmem:[#allocation2 + $0x1c8] sm:$0xff]
    %v174 = vld [vmem:[#allocation2 + $0x1d0] sm:$0xff]
    %v175 = vld [vmem:[#allocation2 + $0x1d8] sm:$0xff]
    %v176 = vld [vmem:[#allocation2 + $0x1e0] sm:$0xff]
    %v177 = vld [vmem:[#allocation2 + $0x1e8] sm:$0xff]
    %v178 = vld [vmem:[#allocation2 + $0x1f0] sm:$0xff]
    %v179 = vld [vmem:[#allocation2 + $0x1f8] sm:$0xff]
    %v180 = vld [vmem:[#allocation2 + $0x200] sm:$0xff]
    %v181 = vld [vmem:[#allocation2 + $0x208] sm:$0xff]
    %v182 = vld [vmem:[#allocation2 + $0x210] sm:$0xff]
    %v183 = vld [vmem:[#allocation2 + $0x218] sm:$0xff]
    %v184 = vld [vmem:[#allocation2 + $0x220] sm:$0xff]
    %v185 = vld [vmem:[#allocation2 + $0x228] sm:$0xff]
    %v186 = vld [vmem:[#allocation2 + $0x230] sm:$0xff]
    %v187 = vld [vmem:[#allocation2 + $0x238] sm:$0xff]
    %v188 = vld [vmem:[#allocation2 + $0x240] sm:$0xff]
    %v189 = vld [vmem:[#allocation2 + $0x248] sm:$0xff]
    %v190 = vld [vmem:[#allocation2 + $0x250] sm:$0xff]
    %v191 = vld [vmem:[#allocation2 + $0x258] sm:$0xff]
    %v192 = vld [vmem:[#allocation2 + $0x260] sm:$0xff]
    %v193 = vld [vmem:[#allocation2 + $0x268] sm:$0xff]
    %v194 = vld [vmem:[#allocation2 + $0x270] sm:$0xff]
    %v195 = vld [vmem:[#allocation2 + $0x278] sm:$0xff]
    %v196 = vld [vmem:[#allocation2 + $0x280] sm:$0xff]
    %v197 = vld [vmem:[#allocation2 + $0x288] sm:$0xff]
    %v198 = vld [vmem:[#allocation2 + $0x290] sm:$0xff]
    %v199 = vld [vmem:[#allocation2 + $0x298] sm:$0xff]
    %v200 = vld [vmem:[#allocation2 + $0x2a0] sm:$0xff]
    %v201 = vld [vmem:[#allocation2 + $0x2a8] sm:$0xff]
    %v202 = vld [vmem:[#allocation2 + $0x2b0] sm:$0xff]
    %v203 = vld [vmem:[#allocation2 + $0x2b8] sm:$0xff]
    %v204 = vld [vmem:[#allocation2 + $0x2c0] sm:$0xff]
    %v205 = vld [vmem:[#allocation2 + $0x2c8] sm:$0xff]
    %v206 = vld [vmem:[#allocation2 + $0x2d0] sm:$0xff]
    %v207 = vld [vmem:[#allocation2 + $0x2d8] sm:$0xff]
    %v208 = vld [vmem:[#allocation2 + $0x2e0] sm:$0xff]
    %v209 = vld [vmem:[#allocation2 + $0x2e8] sm:$0xff]
    %v210 = vld [vmem:[#allocation2 + $0x2f0] sm:$0xff]
    %v211 = vld [vmem:[#allocation2 + $0x2f8] sm:$0xff]
    %v212 = vld [vmem:[#allocation2 + $0x300] sm:$0xff]
    %v213 = vld [vmem:[#allocation2 + $0x308] sm:$0xff]
    %v214 = vld [vmem:[#allocation2 + $0x310] sm:$0xff]
    %v215 = vld [vmem:[#allocation2 + $0x318] sm:$0xff]
    %v216 = vld [vmem:[#allocation2 + $0x320] sm:$0xff]
    %v217 = vld [vmem:[#allocation2 + $0x328] sm:$0xff]
    %v218 = vld [vmem:[#allocation2 + $0x330] sm:$0xff]
    %v219 = vld [vmem:[#allocation2 + $0x338] sm:$0xff]
    %v220 = vld [vmem:[#allocation2 + $0x340] sm:$0xff]
    %v221 = vld [vmem:[#allocation2 + $0x348] sm:$0xff]
    %v222 = vld [vmem:[#allocation2 + $0x350] sm:$0xff]
    %v223 = vld [vmem:[#allocation2 + $0x358] sm:$0xff]
    %v224 = vld [vmem:[#allocation2 + $0x360] sm:$0xff]
    %v225 = vld [vmem:[#allocation2 + $0x368] sm:$0xff]
    %v226 = vld [vmem:[#allocation2 + $0x370] sm:$0xff]
    %v227 = vld [vmem:[#allocation2 + $0x378] sm:$0xff]
    %v228 = vld [vmem:[#allocation2 + $0x380] sm:$0xff]
    %v229 = vld [vmem:[#allocation2 + $0x388] sm:$0xff]
    %v230 = vld [vmem:[#allocation2 + $0x390] sm:$0xff]
    %v231 = vld [vmem:[#allocation2 + $0x398] sm:$0xff]
    %v232 = vld [vmem:[#allocation2 + $0x3a0] sm:$0xff]
    %v233 = vld [vmem:[#allocation2 + $0x3a8] sm:$0xff]
    %v234 = vld [vmem:[#allocation2 + $0x3b0] sm:$0xff]
    %v235 = vld [vmem:[#allocation2 + $0x3b8] sm:$0xff]
    %v236 = vld [vmem:[#allocation2 + $0x3c0] sm:$0xff]
    %v237 = vld [vmem:[#allocation2 + $0x3c8] sm:$0xff]
    %v238 = vld [vmem:[#allocation2 + $0x3d0] sm:$0xff]
    %v239 = vld [vmem:[#allocation2 + $0x3d8] sm:$0xff]
    %v240 = vld [vmem:[#allocation2 + $0x3e0] sm:$0xff]
    %v241 = vld [vmem:[#allocation2 + $0x3e8] sm:$0xff]
    %v242 = vld [vmem:[#allocation2 + $0x3f0] sm:$0xff]
    %v243 = vld [vmem:[#allocation2 + $0x3f8] sm:$0xff]
    %v244 = vld [vmem:[#allocation2 + $0x400] sm:$0xff]
    %v245 = vld [vmem:[#allocation2 + $0x408] sm:$0xff]
    %v246 = vld [vmem:[#allocation2 + $0x410] sm:$0xff]
    %v247 = vld [vmem:[#allocation2 + $0x418] sm:$0xff]
    %v248 = vld [vmem:[#allocation2 + $0x420] sm:$0xff]
    %v249 = vld [vmem:[#allocation2 + $0x428] sm:$0xff]
    %v250 = vld [vmem:[#allocation2 + $0x430] sm:$0xff]
    %v251 = vld [vmem:[#allocation2 + $0x438] sm:$0xff]
    %v252 = vld [vmem:[#allocation2 + $0x440] sm:$0xff]
    %v253 = vld [vmem:[#allocation2 + $0x448] sm:$0xff]
    %v254 = vld [vmem:[#allocation2 + $0x450] sm:$0xff]
    %v255 = vld [vmem:[#allocation2 + $0x458] sm:$0xff]
    %v256 = vld [vmem:[#allocation2 + $0x460] sm:$0xff]
    %v257 = vld [vmem:[#allocation2 + $0x468] sm:$0xff]
    %v258 = vld [vmem:[#allocation2 + $0x470] sm:$0xff]
    %v259 = vld [vmem:[#allocation2 + $0x478] sm:$0xff]
    %v260 = vld [vmem:[#allocation2 + $0x480] sm:$0xff]
    %v261 = vld [vmem:[#allocation2 + $0x488] sm:$0xff]
    %v262 = vld [vmem:[#allocation2 + $0x490] sm:$0xff]
    %v263 = vld [vmem:[#allocation2 + $0x498] sm:$0xff]
    %v264 = vld [vmem:[#allocation2 + $0x4a0] sm:$0xff]
    %v265 = vld [vmem:[#allocation2 + $0x4a8] sm:$0xff]
    %v266 = vld [vmem:[#allocation2 + $0x4b0] sm:$0xff]
    %v267 = vld [vmem:[#allocation2 + $0x4b8] sm:$0xff]
    %v268 = vld [vmem:[#allocation2 + $0x4c0] sm:$0xff]
    %v269 = vld [vmem:[#allocation2 + $0x4c8] sm:$0xff]
    %v270 = vld [vmem:[#allocation2 + $0x4d0] sm:$0xff]
    %v271 = vld [vmem:[#allocation2 + $0x4d8] sm:$0xff]
    %v272 = vld [vmem:[#allocation2 + $0x4e0] sm:$0xff]
    %v273 = vld [vmem:[#allocation2 + $0x4e8] sm:$0xff]
    %v274 = vld [vmem:[#allocation2 + $0x4f0] sm:$0xff]
    %v275 = vld [vmem:[#allocation2 + $0x4f8] sm:$0xff]
    %v276 = vld [vmem:[#allocation2 + $0x500] sm:$0xff]
    %v277 = vld [vmem:[#allocation2 + $0x508] sm:$0xff]
    %v278 = vld [vmem:[#allocation2 + $0x510] sm:$0xff]
    %v279 = vld [vmem:[#allocation2 + $0x518] sm:$0xff]
    %v280 = vld [vmem:[#allocation2 + $0x520] sm:$0xff]
    %v281 = vld [vmem:[#allocation2 + $0x528] sm:$0xff]
    %v282 = vld [vmem:[#allocation2 + $0x530] sm:$0xff]
    %v283 = vld [vmem:[#allocation2 + $0x538] sm:$0xff]
    %v284 = vld [vmem:[#allocation2 + $0x540] sm:$0xff]
    %v285 = vld [vmem:[#allocation2 + $0x548] sm:$0xff]
    %v286 = vld [vmem:[#allocation2 + $0x550] sm:$0xff]
    %v287 = vld [vmem:[#allocation2 + $0x558] sm:$0xff]
    %v288 = vld [vmem:[#allocation2 + $0x560] sm:$0xff]
    %v289 = vld [vmem:[#allocation2 + $0x568] sm:$0xff]
    %v290 = vld [vmem:[#allocation2 + $0x570] sm:$0xff]
    %v291 = vld [vmem:[#allocation2 + $0x578] sm:$0xff]
    %v292 = vld [vmem:[#allocation2 + $0x580] sm:$0xff]
    %v293 = vld [vmem:[#allocation2 + $0x588] sm:$0xff]
    %v294 = vld [vmem:[#allocation2 + $0x590] sm:$0xff]
    %v295 = vld [vmem:[#allocation2 + $0x598] sm:$0xff]
    %v296 = vld [vmem:[#allocation2 + $0x5a0] sm:$0xff]
    %v297 = vld [vmem:[#allocation2 + $0x5a8] sm:$0xff]
    %v298 = vld [vmem:[#allocation2 + $0x5b0] sm:$0xff]
    %v299 = vld [vmem:[#allocation2 + $0x5b8] sm:$0xff]
    %v300 = vld [vmem:[#allocation2 + $0x5c0] sm:$0xff]
    %v301 = vld [vmem:[#allocation2 + $0x5c8] sm:$0xff]
    %v302 = vld [vmem:[#allocation2 + $0x5d0] sm:$0xff]
    %v303 = vld [vmem:[#allocation2 + $0x5d8] sm:$0xff]
    %v304 = vld [vmem:[#allocation2 + $0x5e0] sm:$0xff]
    %v305 = vld [vmem:[#allocation2 + $0x5e8] sm:$0xff]
    %v306 = vld [vmem:[#allocation2 + $0x5f0] sm:$0xff]
    %v307 = vld [vmem:[#allocation2 + $0x5f8] sm:$0xff]
    %v308 = vld [vmem:[#allocation2 + $0x600] sm:$0xff]
    %v309 = vld [vmem:[#allocation2 + $0x608] sm:$0xff]
    %v310 = vld [vmem:[#allocation2 + $0x610] sm:$0xff]
    %v311 = vld [vmem:[#allocation2 + $0x618] sm:$0xff]
    %v312 = vld [vmem:[#allocation2 + $0x620] sm:$0xff]
    %v313 = vld [vmem:[#allocation2 + $0x628] sm:$0xff]
    %v314 = vld [vmem:[#allocation2 + $0x630] sm:$0xff]
    %v315 = vld [vmem:[#allocation2 + $0x638] sm:$0xff]
    %v316 = vld [vmem:[#allocation2 + $0x640] sm:$0xff]
    %v317 = vld [vmem:[#allocation2 + $0x648] sm:$0xff]
    %v318 = vld [vmem:[#allocation2 + $0x650] sm:$0xff]
    %v319 = vld [vmem:[#allocation2 + $0x658] sm:$0xff]
    %v320 = vld [vmem:[#allocation2 + $0x660] sm:$0xff]
    %v321 = vld [vmem:[#allocation2 + $0x668] sm:$0xff]
    %v322 = vld [vmem:[#allocation2 + $0x670] sm:$0xff]
    %v323 = vld [vmem:[#allocation2 + $0x678] sm:$0xff]
    %v324 = vld [vmem:[#allocation2 + $0x680] sm:$0xff]
    %v325 = vld [vmem:[#allocation2 + $0x688] sm:$0xff]
    %v326 = vld [vmem:[#allocation2 + $0x690] sm:$0xff]
    %v327 = vld [vmem:[#allocation2 + $0x698] sm:$0xff]
    %v328 = vld [vmem:[#allocation2 + $0x6a0] sm:$0xff]
    %v329 = vld [vmem:[#allocation2 + $0x6a8] sm:$0xff]
    %v330 = vld [vmem:[#allocation2 + $0x6b0] sm:$0xff]
    %v331 = vld [vmem:[#allocation2 + $0x6b8] sm:$0xff]
    %v332 = vld [vmem:[#allocation2 + $0x6c0] sm:$0xff]
    %v333 = vld [vmem:[#allocation2 + $0x6c8] sm:$0xff]
    %v334 = vld [vmem:[#allocation2 + $0x6d0] sm:$0xff]
    %v335 = vld [vmem:[#allocation2 + $0x6d8] sm:$0xff]
    %v336 = vld [vmem:[#allocation2 + $0x6e0] sm:$0xff]
    %v337 = vld [vmem:[#allocation2 + $0x6e8] sm:$0xff]
    %v338 = vld [vmem:[#allocation2 + $0x6f0] sm:$0xff]
    %v339 = vld [vmem:[#allocation2 + $0x6f8] sm:$0xff]
    %v340 = vld [vmem:[#allocation2 + $0x700] sm:$0xff]
    %v341 = vld [vmem:[#allocation2 + $0x708] sm:$0xff]
    %v342 = vld [vmem:[#allocation2 + $0x710] sm:$0xff]
    %v343 = vld [vmem:[#allocation2 + $0x718] sm:$0xff]
    %v344 = vld [vmem:[#allocation2 + $0x720] sm:$0xff]
    %v345 = vld [vmem:[#allocation2 + $0x728] sm:$0xff]
    %v346 = vld [vmem:[#allocation2 + $0x730] sm:$0xff]
    %v347 = vld [vmem:[#allocation2 + $0x738] sm:$0xff]
    %v348 = vld [vmem:[#allocation2 + $0x740] sm:$0xff]
    %v349 = vld [vmem:[#allocation2 + $0x748] sm:$0xff]
    %v350 = vld [vmem:[#allocation2 + $0x750] sm:$0xff]
    %v351 = vld [vmem:[#allocation2 + $0x758] sm:$0xff]
    %v352 = vld [vmem:[#allocation2 + $0x760] sm:$0xff]
    %v353 = vld [vmem:[#allocation2 + $0x768] sm:$0xff]
    %v354 = vld [vmem:[#allocation2 + $0x770] sm:$0xff]
    %v355 = vld [vmem:[#allocation2 + $0x778] sm:$0xff]
    %v596 = vunpack.c.l.b16 %v116
    %v597 = vunpack.c.h.b16 %v116
    %v598 = vunpack.c.l.b16 %v117
    %v599 = vunpack.c.h.b16 %v117
    %v600 = vunpack.c.l.b16 %v118
    %v601 = vunpack.c.h.b16 %v118
    %v602 = vunpack.c.l.b16 %v119
    %v603 = vunpack.c.h.b16 %v119
    %v604 = vunpack.c.l.b16 %v120
    %v605 = vunpack.c.h.b16 %v120
    %v606 = vunpack.c.l.b16 %v121
    %v607 = vunpack.c.h.b16 %v121
    %v608 = vunpack.c.l.b16 %v122
    %v609 = vunpack.c.h.b16 %v122
    %v610 = vunpack.c.l.b16 %v123
    %v611 = vunpack.c.h.b16 %v123
    %v612 = vunpack.c.l.b16 %v124
    %v613 = vunpack.c.h.b16 %v124
    %v614 = vunpack.c.l.b16 %v125
    %v615 = vunpack.c.h.b16 %v125
    %v616 = vunpack.c.l.b16 %v126
    %v617 = vunpack.c.h.b16 %v126
    %v618 = vunpack.c.l.b16 %v127
    %v619 = vunpack.c.h.b16 %v127
    %v620 = vunpack.c.l.b16 %v128
    %v621 = vunpack.c.h.b16 %v128
    %v622 = vunpack.c.l.b16 %v129
    %v623 = vunpack.c.h.b16 %v129
    %v624 = vunpack.c.l.b16 %v130
    %v625 = vunpack.c.h.b16 %v130
    %v626 = vunpack.c.l.b16 %v131
    %v627 = vunpack.c.h.b16 %v131
    %v628 = vunpack.c.l.b16 %v132
    %v629 = vunpack.c.h.b16 %v132
    %v630 = vunpack.c.l.b16 %v133
    %v631 = vunpack.c.h.b16 %v133
    %v632 = vunpack.c.l.b16 %v134
    %v633 = vunpack.c.h.b16 %v134
    %v634 = vunpack.c.l.b16 %v135
    %v635 = vunpack.c.h.b16 %v135
    %v636 = vunpack.c.l.b16 %v136
    %v637 = vunpack.c.h.b16 %v136
    %v638 = vunpack.c.l.b16 %v137
    %v639 = vunpack.c.h.b16 %v137
    %v640 = vunpack.c.l.b16 %v138
    %v641 = vunpack.c.h.b16 %v138
    %v642 = vunpack.c.l.b16 %v139
    %v643 = vunpack.c.h.b16 %v139
    %v644 = vunpack.c.l.b16 %v140
    %v645 = vunpack.c.h.b16 %v140
    %v646 = vunpack.c.l.b16 %v141
    %v647 = vunpack.c.h.b16 %v141
    %v648 = vunpack.c.l.b16 %v142
    %v649 = vunpack.c.h.b16 %v142
    %v650 = vunpack.c.l.b16 %v143
    %v651 = vunpack.c.h.b16 %v143
    %v652 = vunpack.c.l.b16 %v144
    %v653 = vunpack.c.h.b16 %v144
    %v654 = vunpack.c.l.b16 %v145
    %v655 = vunpack.c.h.b16 %v145
    %v656 = vunpack.c.l.b16 %v146
    %v657 = vunpack.c.h.b16 %v146
    %v658 = vunpack.c.l.b16 %v147
    %v659 = vunpack.c.h.b16 %v147
    %v660 = vunpack.c.l.b16 %v148
    %v661 = vunpack.c.h.b16 %v148
    %v662 = vunpack.c.l.b16 %v149
    %v663 = vunpack.c.h.b16 %v149
    %v664 = vunpack.c.l.b16 %v150
    %v665 = vunpack.c.h.b16 %v150
    %v666 = vunpack.c.l.b16 %v151
    %v667 = vunpack.c.h.b16 %v151
    %v668 = vunpack.c.l.b16 %v152
    %v669 = vunpack.c.h.b16 %v152
    %v670 = vunpack.c.l.b16 %v153
    %v671 = vunpack.c.h.b16 %v153
    %v672 = vunpack.c.l.b16 %v154
    %v673 = vunpack.c.h.b16 %v154
    %v674 = vunpack.c.l.b16 %v155
    %v675 = vunpack.c.h.b16 %v155
    %v676 = vunpack.c.l.b16 %v156
    %v677 = vunpack.c.h.b16 %v156
    %v678 = vunpack.c.l.b16 %v157
    %v679 = vunpack.c.h.b16 %v157
    %v680 = vunpack.c.l.b16 %v158
    %v681 = vunpack.c.h.b16 %v158
    %v682 = vunpack.c.l.b16 %v159
    %v683 = vunpack.c.h.b16 %v159
    %v684 = vunpack.c.l.b16 %v160
    %v685 = vunpack.c.h.b16 %v160
    %v686 = vunpack.c.l.b16 %v161
    %v687 = vunpack.c.h.b16 %v161
    %v688 = vunpack.c.l.b16 %v162
    %v689 = vunpack.c.h.b16 %v162
    %v690 = vunpack.c.l.b16 %v163
    %v691 = vunpack.c.h.b16 %v163
    %v692 = vunpack.c.l.b16 %v164
    %v693 = vunpack.c.h.b16 %v164
    %v694 = vunpack.c.l.b16 %v165
    %v695 = vunpack.c.h.b16 %v165
    %v696 = vunpack.c.l.b16 %v166
    %v697 = vunpack.c.h.b16 %v166
    %v698 = vunpack.c.l.b16 %v167
    %v699 = vunpack.c.h.b16 %v167
    %v700 = vunpack.c.l.b16 %v168
    %v701 = vunpack.c.h.b16 %v168
    %v702 = vunpack.c.l.b16 %v169
    %v703 = vunpack.c.h.b16 %v169
    %v704 = vunpack.c.l.b16 %v170
    %v705 = vunpack.c.h.b16 %v170
    %v706 = vunpack.c.l.b16 %v171
    %v707 = vunpack.c.h.b16 %v171
    %v708 = vunpack.c.l.b16 %v172
    %v709 = vunpack.c.h.b16 %v172
    %v710 = vunpack.c.l.b16 %v173
    %v711 = vunpack.c.h.b16 %v173
    %v712 = vunpack.c.l.b16 %v174
    %v713 = vunpack.c.h.b16 %v174
    %v714 = vunpack.c.l.b16 %v175
    %v715 = vunpack.c.h.b16 %v175
    %v716 = vunpack.c.l.b16 %v176
    %v717 = vunpack.c.h.b16 %v176
    %v718 = vunpack.c.l.b16 %v177
    %v719 = vunpack.c.h.b16 %v177
    %v720 = vunpack.c.l.b16 %v178
    %v721 = vunpack.c.h.b16 %v178
    %v722 = vunpack.c.l.b16 %v179
    %v723 = vunpack.c.h.b16 %v179
    %v724 = vunpack.c.l.b16 %v180
    %v725 = vunpack.c.h.b16 %v180
    %v726 = vunpack.c.l.b16 %v181
    %v727 = vunpack.c.h.b16 %v181
    %v728 = vunpack.c.l.b16 %v182
    %v729 = vunpack.c.h.b16 %v182
    %v730 = vunpack.c.l.b16 %v183
    %v731 = vunpack.c.h.b16 %v183
    %v732 = vunpack.c.l.b16 %v184
    %v733 = vunpack.c.h.b16 %v184
    %v734 = vunpack.c.l.b16 %v185
    %v735 = vunpack.c.h.b16 %v185
    %v736 = vunpack.c.l.b16 %v186
    %v737 = vunpack.c.h.b16 %v186
    %v738 = vunpack.c.l.b16 %v187
    %v739 = vunpack.c.h.b16 %v187
    %v740 = vunpack.c.l.b16 %v188
    %v741 = vunpack.c.h.b16 %v188
    %v742 = vunpack.c.l.b16 %v189
    %v743 = vunpack.c.h.b16 %v189
    %v744 = vunpack.c.l.b16 %v190
    %v745 = vunpack.c.h.b16 %v190
    %v746 = vunpack.c.l.b16 %v191
    %v747 = vunpack.c.h.b16 %v191
    %v748 = vunpack.c.l.b16 %v192
    %v749 = vunpack.c.h.b16 %v192
    %v750 = vunpack.c.l.b16 %v193
    %v751 = vunpack.c.h.b16 %v193
    %v752 = vunpack.c.l.b16 %v194
    %v753 = vunpack.c.h.b16 %v194
    %v754 = vunpack.c.l.b16 %v195
    %v755 = vunpack.c.h.b16 %v195
    %v756 = vunpack.c.l.b16 %v196
    %v757 = vunpack.c.h.b16 %v196
    %v758 = vunpack.c.l.b16 %v197
    %v759 = vunpack.c.h.b16 %v197
    %v760 = vunpack.c.l.b16 %v198
    %v761 = vunpack.c.h.b16 %v198
    %v762 = vunpack.c.l.b16 %v199
    %v763 = vunpack.c.h.b16 %v199
    %v764 = vunpack.c.l.b16 %v200
    %v765 = vunpack.c.h.b16 %v200
    %v766 = vunpack.c.l.b16 %v201
    %v767 = vunpack.c.h.b16 %v201
    %v768 = vunpack.c.l.b16 %v202
    %v769 = vunpack.c.h.b16 %v202
    %v770 = vunpack.c.l.b16 %v203
    %v771 = vunpack.c.h.b16 %v203
    %v772 = vunpack.c.l.b16 %v204
    %v773 = vunpack.c.h.b16 %v204
    %v774 = vunpack.c.l.b16 %v205
    %v775 = vunpack.c.h.b16 %v205
    %v776 = vunpack.c.l.b16 %v206
    %v777 = vunpack.c.h.b16 %v206
    %v778 = vunpack.c.l.b16 %v207
    %v779 = vunpack.c.h.b16 %v207
    %v780 = vunpack.c.l.b16 %v208
    %v781 = vunpack.c.h.b16 %v208
    %v782 = vunpack.c.l.b16 %v209
    %v783 = vunpack.c.h.b16 %v209
    %v784 = vunpack.c.l.b16 %v210
    %v785 = vunpack.c.h.b16 %v210
    %v786 = vunpack.c.l.b16 %v211
    %v787 = vunpack.c.h.b16 %v211
    %v788 = vunpack.c.l.b16 %v212
    %v789 = vunpack.c.h.b16 %v212
    %v790 = vunpack.c.l.b16 %v213
    %v791 = vunpack.c.h.b16 %v213
    %v792 = vunpack.c.l.b16 %v214
    %v793 = vunpack.c.h.b16 %v214
    %v794 = vunpack.c.l.b16 %v215
    %v795 = vunpack.c.h.b16 %v215
    %v796 = vunpack.c.l.b16 %v216
    %v797 = vunpack.c.h.b16 %v216
    %v798 = vunpack.c.l.b16 %v217
    %v799 = vunpack.c.h.b16 %v217
    %v800 = vunpack.c.l.b16 %v218
    %v801 = vunpack.c.h.b16 %v218
    %v802 = vunpack.c.l.b16 %v219
    %v803 = vunpack.c.h.b16 %v219
    %v804 = vunpack.c.l.b16 %v220
    %v805 = vunpack.c.h.b16 %v220
    %v806 = vunpack.c.l.b16 %v221
    %v807 = vunpack.c.h.b16 %v221
    %v808 = vunpack.c.l.b16 %v222
    %v809 = vunpack.c.h.b16 %v222
    %v810 = vunpack.c.l.b16 %v223
    %v811 = vunpack.c.h.b16 %v223
    %v812 = vunpack.c.l.b16 %v224
    %v813 = vunpack.c.h.b16 %v224
    %v814 = vunpack.c.l.b16 %v225
    %v815 = vunpack.c.h.b16 %v225
    %v816 = vunpack.c.l.b16 %v226
    %v817 = vunpack.c.h.b16 %v226
    %v818 = vunpack.c.l.b16 %v227
    %v819 = vunpack.c.h.b16 %v227
    %v820 = vunpack.c.l.b16 %v228
    %v821 = vunpack.c.h.b16 %v228
    %v822 = vunpack.c.l.b16 %v229
    %v823 = vunpack.c.h.b16 %v229
    %v824 = vunpack.c.l.b16 %v230
    %v825 = vunpack.c.h.b16 %v230
    %v826 = vunpack.c.l.b16 %v231
    %v827 = vunpack.c.h.b16 %v231
    %v828 = vunpack.c.l.b16 %v232
    %v829 = vunpack.c.h.b16 %v232
    %v830 = vunpack.c.l.b16 %v233
    %v831 = vunpack.c.h.b16 %v233
    %v832 = vunpack.c.l.b16 %v234
    %v833 = vunpack.c.h.b16 %v234
    %v834 = vunpack.c.l.b16 %v235
    %v835 = vunpack.c.h.b16 %v235
    %v836 = vunpack.c.l.b16 %v236
    %v837 = vunpack.c.h.b16 %v236
    %v838 = vunpack.c.l.b16 %v237
    %v839 = vunpack.c.h.b16 %v237
    %v840 = vunpack.c.l.b16 %v238
    %v841 = vunpack.c.h.b16 %v238
    %v842 = vunpack.c.l.b16 %v239
    %v843 = vunpack.c.h.b16 %v239
    %v844 = vunpack.c.l.b16 %v240
    %v845 = vunpack.c.h.b16 %v240
    %v846 = vunpack.c.l.b16 %v241
    %v847 = vunpack.c.h.b16 %v241
    %v848 = vunpack.c.l.b16 %v242
    %v849 = vunpack.c.h.b16 %v242
    %v850 = vunpack.c.l.b16 %v243
    %v851 = vunpack.c.h.b16 %v243
    %v852 = vunpack.c.l.b16 %v244
    %v853 = vunpack.c.h.b16 %v244
    %v854 = vunpack.c.l.b16 %v245
    %v855 = vunpack.c.h.b16 %v245
    %v856 = vunpack.c.l.b16 %v246
    %v857 = vunpack.c.h.b16 %v246
    %v858 = vunpack.c.l.b16 %v247
    %v859 = vunpack.c.h.b16 %v247
    %v860 = vunpack.c.l.b16 %v248
    %v861 = vunpack.c.h.b16 %v248
    %v862 = vunpack.c.l.b16 %v249
    %v863 = vunpack.c.h.b16 %v249
    %v864 = vunpack.c.l.b16 %v250
    %v865 = vunpack.c.h.b16 %v250
    %v866 = vunpack.c.l.b16 %v251
    %v867 = vunpack.c.h.b16 %v251
    %v868 = vunpack.c.l.b16 %v252
    %v869 = vunpack.c.h.b16 %v252
    %v870 = vunpack.c.l.b16 %v253
    %v871 = vunpack.c.h.b16 %v253
    %v872 = vunpack.c.l.b16 %v254
    %v873 = vunpack.c.h.b16 %v254
    %v874 = vunpack.c.l.b16 %v255
    %v875 = vunpack.c.h.b16 %v255
    %v876 = vunpack.c.l.b16 %v256
    %v877 = vunpack.c.h.b16 %v256
    %v878 = vunpack.c.l.b16 %v257
    %v879 = vunpack.c.h.b16 %v257
    %v880 = vunpack.c.l.b16 %v258
    %v881 = vunpack.c.h.b16 %v258
    %v882 = vunpack.c.l.b16 %v259
    %v883 = vunpack.c.h.b16 %v259
    %v884 = vunpack.c.l.b16 %v260
    %v885 = vunpack.c.h.b16 %v260
    %v886 = vunpack.c.l.b16 %v261
    %v887 = vunpack.c.h.b16 %v261
    %v888 = vunpack.c.l.b16 %v262
    %v889 = vunpack.c.h.b16 %v262
    %v890 = vunpack.c.l.b16 %v263
    %v891 = vunpack.c.h.b16 %v263
    %v892 = vunpack.c.l.b16 %v264
    %v893 = vunpack.c.h.b16 %v264
    %v894 = vunpack.c.l.b16 %v265
    %v895 = vunpack.c.h.b16 %v265
    %v896 = vunpack.c.l.b16 %v266
    %v897 = vunpack.c.h.b16 %v266
    %v898 = vunpack.c.l.b16 %v267
    %v899 = vunpack.c.h.b16 %v267
    %v900 = vunpack.c.l.b16 %v268
    %v901 = vunpack.c.h.b16 %v268
    %v902 = vunpack.c.l.b16 %v269
    %v903 = vunpack.c.h.b16 %v269
    %v904 = vunpack.c.l.b16 %v270
    %v905 = vunpack.c.h.b16 %v270
    %v906 = vunpack.c.l.b16 %v271
    %v907 = vunpack.c.h.b16 %v271
    %v908 = vunpack.c.l.b16 %v272
    %v909 = vunpack.c.h.b16 %v272
    %v910 = vunpack.c.l.b16 %v273
    %v911 = vunpack.c.h.b16 %v273
    %v912 = vunpack.c.l.b16 %v274
    %v913 = vunpack.c.h.b16 %v274
    %v914 = vunpack.c.l.b16 %v275
    %v915 = vunpack.c.h.b16 %v275
    %v916 = vunpack.c.l.b16 %v276
    %v917 = vunpack.c.h.b16 %v276
    %v918 = vunpack.c.l.b16 %v277
    %v919 = vunpack.c.h.b16 %v277
    %v920 = vunpack.c.l.b16 %v278
    %v921 = vunpack.c.h.b16 %v278
    %v922 = vunpack.c.l.b16 %v279
    %v923 = vunpack.c.h.b16 %v279
    %v924 = vunpack.c.l.b16 %v280
    %v925 = vunpack.c.h.b16 %v280
    %v926 = vunpack.c.l.b16 %v281
    %v927 = vunpack.c.h.b16 %v281
    %v928 = vunpack.c.l.b16 %v282
    %v929 = vunpack.c.h.b16 %v282
    %v930 = vunpack.c.l.b16 %v283
    %v931 = vunpack.c.h.b16 %v283
    %v932 = vunpack.c.l.b16 %v284
    %v933 = vunpack.c.h.b16 %v284
    %v934 = vunpack.c.l.b16 %v285
    %v935 = vunpack.c.h.b16 %v285
    %v936 = vunpack.c.l.b16 %v286
    %v937 = vunpack.c.h.b16 %v286
    %v938 = vunpack.c.l.b16 %v287
    %v939 = vunpack.c.h.b16 %v287
    %v940 = vunpack.c.l.b16 %v288
    %v941 = vunpack.c.h.b16 %v288
    %v942 = vunpack.c.l.b16 %v289
    %v943 = vunpack.c.h.b16 %v289
    %v944 = vunpack.c.l.b16 %v290
    %v945 = vunpack.c.h.b16 %v290
    %v946 = vunpack.c.l.b16 %v291
    %v947 = vunpack.c.h.b16 %v291
    %v948 = vunpack.c.l.b16 %v292
    %v949 = vunpack.c.h.b16 %v292
    %v950 = vunpack.c.l.b16 %v293
    %v951 = vunpack.c.h.b16 %v293
    %v952 = vunpack.c.l.b16 %v294
    %v953 = vunpack.c.h.b16 %v294
    %v954 = vunpack.c.l.b16 %v295
    %v955 = vunpack.c.h.b16 %v295
    %v956 = vunpack.c.l.b16 %v296
    %v957 = vunpack.c.h.b16 %v296
    %v958 = vunpack.c.l.b16 %v297
    %v959 = vunpack.c.h.b16 %v297
    %v960 = vunpack.c.l.b16 %v298
    %v961 = vunpack.c.h.b16 %v298
    %v962 = vunpack.c.l.b16 %v299
    %v963 = vunpack.c.h.b16 %v299
    %v964 = vunpack.c.l.b16 %v300
    %v965 = vunpack.c.h.b16 %v300
    %v966 = vunpack.c.l.b16 %v301
    %v967 = vunpack.c.h.b16 %v301
    %v968 = vunpack.c.l.b16 %v302
    %v969 = vunpack.c.h.b16 %v302
    %v970 = vunpack.c.l.b16 %v303
    %v971 = vunpack.c.h.b16 %v303
    %v972 = vunpack.c.l.b16 %v304
    %v973 = vunpack.c.h.b16 %v304
    %v974 = vunpack.c.l.b16 %v305
    %v975 = vunpack.c.h.b16 %v305
    %v976 = vunpack.c.l.b16 %v306
    %v977 = vunpack.c.h.b16 %v306
    %v978 = vunpack.c.l.b16 %v307
    %v979 = vunpack.c.h.b16 %v307
    %v980 = vunpack.c.l.b16 %v308
    %v981 = vunpack.c.h.b16 %v308
    %v982 = vunpack.c.l.b16 %v309
    %v983 = vunpack.c.h.b16 %v309
    %v984 = vunpack.c.l.b16 %v310
    %v985 = vunpack.c.h.b16 %v310
    %v986 = vunpack.c.l.b16 %v311
    %v987 = vunpack.c.h.b16 %v311
    %v988 = vunpack.c.l.b16 %v312
    %v989 = vunpack.c.h.b16 %v312
    %v990 = vunpack.c.l.b16 %v313
    %v991 = vunpack.c.h.b16 %v313
    %v992 = vunpack.c.l.b16 %v314
    %v993 = vunpack.c.h.b16 %v314
    %v994 = vunpack.c.l.b16 %v315
    %v995 = vunpack.c.h.b16 %v315
    %v996 = vunpack.c.l.b16 %v316
    %v997 = vunpack.c.h.b16 %v316
    %v998 = vunpack.c.l.b16 %v317
    %v999 = vunpack.c.h.b16 %v317
    %v1000 = vunpack.c.l.b16 %v318
    %v1001 = vunpack.c.h.b16 %v318
    %v1002 = vunpack.c.l.b16 %v319
    %v1003 = vunpack.c.h.b16 %v319
    %v1004 = vunpack.c.l.b16 %v320
    %v1005 = vunpack.c.h.b16 %v320
    %v1006 = vunpack.c.l.b16 %v321
    %v1007 = vunpack.c.h.b16 %v321
    %v1008 = vunpack.c.l.b16 %v322
    %v1009 = vunpack.c.h.b16 %v322
    %v1010 = vunpack.c.l.b16 %v323
    %v1011 = vunpack.c.h.b16 %v323
    %v1012 = vunpack.c.l.b16 %v324
    %v1013 = vunpack.c.h.b16 %v324
    %v1014 = vunpack.c.l.b16 %v325
    %v1015 = vunpack.c.h.b16 %v325
    %v1016 = vunpack.c.l.b16 %v326
    %v1017 = vunpack.c.h.b16 %v326
    %v1018 = vunpack.c.l.b16 %v327
    %v1019 = vunpack.c.h.b16 %v327
    %v1020 = vunpack.c.l.b16 %v328
    %v1021 = vunpack.c.h.b16 %v328
    %v1022 = vunpack.c.l.b16 %v329
    %v1023 = vunpack.c.h.b16 %v329
    %v1024 = vunpack.c.l.b16 %v330
    %v1025 = vunpack.c.h.b16 %v330
    %v1026 = vunpack.c.l.b16 %v331
    %v1027 = vunpack.c.h.b16 %v331
    %v1028 = vunpack.c.l.b16 %v332
    %v1029 = vunpack.c.h.b16 %v332
    %v1030 = vunpack.c.l.b16 %v333
    %v1031 = vunpack.c.h.b16 %v333
    %v1032 = vunpack.c.l.b16 %v334
    %v1033 = vunpack.c.h.b16 %v334
    %v1034 = vunpack.c.l.b16 %v335
    %v1035 = vunpack.c.h.b16 %v335
    %v1036 = vunpack.c.l.b16 %v336
    %v1037 = vunpack.c.h.b16 %v336
    %v1038 = vunpack.c.l.b16 %v337
    %v1039 = vunpack.c.h.b16 %v337
    %v1040 = vunpack.c.l.b16 %v338
    %v1041 = vunpack.c.h.b16 %v338
    %v1042 = vunpack.c.l.b16 %v339
    %v1043 = vunpack.c.h.b16 %v339
    %v1044 = vunpack.c.l.b16 %v340
    %v1045 = vunpack.c.h.b16 %v340
    %v1046 = vunpack.c.l.b16 %v341
    %v1047 = vunpack.c.h.b16 %v341
    %v1048 = vunpack.c.l.b16 %v342
    %v1049 = vunpack.c.h.b16 %v342
    %v1050 = vunpack.c.l.b16 %v343
    %v1051 = vunpack.c.h.b16 %v343
    %v1052 = vunpack.c.l.b16 %v344
    %v1053 = vunpack.c.h.b16 %v344
    %v1054 = vunpack.c.l.b16 %v345
    %v1055 = vunpack.c.h.b16 %v345
    %v1056 = vunpack.c.l.b16 %v346
    %v1057 = vunpack.c.h.b16 %v346
    %v1058 = vunpack.c.l.b16 %v347
    %v1059 = vunpack.c.h.b16 %v347
    %v1060 = vunpack.c.l.b16 %v348
    %v1061 = vunpack.c.h.b16 %v348
    %v1062 = vunpack.c.l.b16 %v349
    %v1063 = vunpack.c.h.b16 %v349
    %v1064 = vunpack.c.l.b16 %v350
    %v1065 = vunpack.c.h.b16 %v350
    %v1066 = vunpack.c.l.b16 %v351
    %v1067 = vunpack.c.h.b16 %v351
    %v1068 = vunpack.c.l.b16 %v352
    %v1069 = vunpack.c.h.b16 %v352
    %v1070 = vunpack.c.l.b16 %v353
    %v1071 = vunpack.c.h.b16 %v353
    %v1072 = vunpack.c.l.b16 %v354
    %v1073 = vunpack.c.h.b16 %v354
    %v1074 = vunpack.c.l.b16 %v355
    %v1075 = vunpack.c.h.b16 %v355
    %v1076 = vpack.c.b16 %v602, %v596
    %v1077 = vpack.c.b16 %v603, %v597
    %v1078 = vpack.c.b16 %v604, %v598
    %v1079 = vpack.c.b16 %v605, %v599
    %v1080 = vpack.c.b16 %v606, %v600
    %v1081 = vpack.c.b16 %v607, %v601
    %v1082 = vpack.c.b16 %v614, %v608
    %v1083 = vpack.c.b16 %v615, %v609
    %v1084 = vpack.c.b16 %v616, %v610
    %v1085 = vpack.c.b16 %v617, %v611
    %v1086 = vpack.c.b16 %v618, %v612
    %v1087 = vpack.c.b16 %v619, %v613
    %v1088 = vpack.c.b16 %v626, %v620
    %v1089 = vpack.c.b16 %v627, %v621
    %v1090 = vpack.c.b16 %v628, %v622
    %v1091 = vpack.c.b16 %v629, %v623
    %v1092 = vpack.c.b16 %v630, %v624
    %v1093 = vpack.c.b16 %v631, %v625
    %v1094 = vpack.c.b16 %v638, %v632
    %v1095 = vpack.c.b16 %v639, %v633
    %v1096 = vpack.c.b16 %v640, %v634
    %v1097 = vpack.c.b16 %v641, %v635
    %v1098 = vpack.c.b16 %v642, %v636
    %v1099 = vpack.c.b16 %v643, %v637
    %v1100 = vpack.c.b16 %v650, %v644
    %v1101 = vpack.c.b16 %v651, %v645
    %v1102 = vpack.c.b16 %v652, %v646
    %v1103 = vpack.c.b16 %v653, %v647
    %v1104 = vpack.c.b16 %v654, %v648
    %v1105 = vpack.c.b16 %v655, %v649
    %v1106 = vpack.c.b16 %v662, %v656
    %v1107 = vpack.c.b16 %v663, %v657
    %v1108 = vpack.c.b16 %v664, %v658
    %v1109 = vpack.c.b16 %v665, %v659
    %v1110 = vpack.c.b16 %v666, %v660
    %v1111 = vpack.c.b16 %v667, %v661
    %v1112 = vpack.c.b16 %v674, %v668
    %v1113 = vpack.c.b16 %v675, %v669
    %v1114 = vpack.c.b16 %v676, %v670
    %v1115 = vpack.c.b16 %v677, %v671
    %v1116 = vpack.c.b16 %v678, %v672
    %v1117 = vpack.c.b16 %v679, %v673
    %v1118 = vpack.c.b16 %v686, %v680
    %v1119 = vpack.c.b16 %v687, %v681
    %v1120 = vpack.c.b16 %v688, %v682
    %v1121 = vpack.c.b16 %v689, %v683
    %v1122 = vpack.c.b16 %v690, %v684
    %v1123 = vpack.c.b16 %v691, %v685
    %v1124 = vpack.c.b16 %v698, %v692
    %v1125 = vpack.c.b16 %v699, %v693
    %v1126 = vpack.c.b16 %v700, %v694
    %v1127 = vpack.c.b16 %v701, %v695
    %v1128 = vpack.c.b16 %v702, %v696
    %v1129 = vpack.c.b16 %v703, %v697
    %v1130 = vpack.c.b16 %v710, %v704
    %v1131 = vpack.c.b16 %v711, %v705
    %v1132 = vpack.c.b16 %v712, %v706
    %v1133 = vpack.c.b16 %v713, %v707
    %v1134 = vpack.c.b16 %v714, %v708
    %v1135 = vpack.c.b16 %v715, %v709
    %v1136 = vpack.c.b16 %v722, %v716
    %v1137 = vpack.c.b16 %v723, %v717
    %v1138 = vpack.c.b16 %v724, %v718
    %v1139 = vpack.c.b16 %v725, %v719
    %v1140 = vpack.c.b16 %v726, %v720
    %v1141 = vpack.c.b16 %v727, %v721
    %v1142 = vpack.c.b16 %v734, %v728
    %v1143 = vpack.c.b16 %v735, %v729
    %v1144 = vpack.c.b16 %v736, %v730
    %v1145 = vpack.c.b16 %v737, %v731
    %v1146 = vpack.c.b16 %v738, %v732
    %v1147 = vpack.c.b16 %v739, %v733
    %v1148 = vpack.c.b16 %v746, %v740
    %v1149 = vpack.c.b16 %v747, %v741
    %v1150 = vpack.c.b16 %v748, %v742
    %v1151 = vpack.c.b16 %v749, %v743
    %v1152 = vpack.c.b16 %v750, %v744
    %v1153 = vpack.c.b16 %v751, %v745
    %v1154 = vpack.c.b16 %v758, %v752
    %v1155 = vpack.c.b16 %v759, %v753
    %v1156 = vpack.c.b16 %v760, %v754
    %v1157 = vpack.c.b16 %v761, %v755
    %v1158 = vpack.c.b16 %v762, %v756
    %v1159 = vpack.c.b16 %v763, %v757
    %v1160 = vpack.c.b16 %v770, %v764
    %v1161 = vpack.c.b16 %v771, %v765
    %v1162 = vpack.c.b16 %v772, %v766
    %v1163 = vpack.c.b16 %v773, %v767
    %v1164 = vpack.c.b16 %v774, %v768
    %v1165 = vpack.c.b16 %v775, %v769
    %v1166 = vpack.c.b16 %v782, %v776
    %v1167 = vpack.c.b16 %v783, %v777
    %v1168 = vpack.c.b16 %v784, %v778
    %v1169 = vpack.c.b16 %v785, %v779
    %v1170 = vpack.c.b16 %v786, %v780
    %v1171 = vpack.c.b16 %v787, %v781
    %v1172 = vpack.c.b16 %v794, %v788
    %v1173 = vpack.c.b16 %v795, %v789
    %v1174 = vpack.c.b16 %v796, %v790
    %v1175 = vpack.c.b16 %v797, %v791
    %v1176 = vpack.c.b16 %v798, %v792
    %v1177 = vpack.c.b16 %v799, %v793
    %v1178 = vpack.c.b16 %v806, %v800
    %v1179 = vpack.c.b16 %v807, %v801
    %v1180 = vpack.c.b16 %v808, %v802
    %v1181 = vpack.c.b16 %v809, %v803
    %v1182 = vpack.c.b16 %v810, %v804
    %v1183 = vpack.c.b16 %v811, %v805
    %v1184 = vpack.c.b16 %v818, %v812
    %v1185 = vpack.c.b16 %v819, %v813
    %v1186 = vpack.c.b16 %v820, %v814
    %v1187 = vpack.c.b16 %v821, %v815
    %v1188 = vpack.c.b16 %v822, %v816
    %v1189 = vpack.c.b16 %v823, %v817
    %v1190 = vpack.c.b16 %v830, %v824
    %v1191 = vpack.c.b16 %v831, %v825
    %v1192 = vpack.c.b16 %v832, %v826
    %v1193 = vpack.c.b16 %v833, %v827
    %v1194 = vpack.c.b16 %v834, %v828
    %v1195 = vpack.c.b16 %v835, %v829
    %v1196 = vpack.c.b16 %v842, %v836
    %v1197 = vpack.c.b16 %v843, %v837
    %v1198 = vpack.c.b16 %v844, %v838
    %v1199 = vpack.c.b16 %v845, %v839
    %v1200 = vpack.c.b16 %v846, %v840
    %v1201 = vpack.c.b16 %v847, %v841
    %v1202 = vpack.c.b16 %v854, %v848
    %v1203 = vpack.c.b16 %v855, %v849
    %v1204 = vpack.c.b16 %v856, %v850
    %v1205 = vpack.c.b16 %v857, %v851
    %v1206 = vpack.c.b16 %v858, %v852
    %v1207 = vpack.c.b16 %v859, %v853
    %v1208 = vpack.c.b16 %v866, %v860
    %v1209 = vpack.c.b16 %v867, %v861
    %v1210 = vpack.c.b16 %v868, %v862
    %v1211 = vpack.c.b16 %v869, %v863
    %v1212 = vpack.c.b16 %v870, %v864
    %v1213 = vpack.c.b16 %v871, %v865
    %v1214 = vpack.c.b16 %v878, %v872
    %v1215 = vpack.c.b16 %v879, %v873
    %v1216 = vpack.c.b16 %v880, %v874
    %v1217 = vpack.c.b16 %v881, %v875
    %v1218 = vpack.c.b16 %v882, %v876
    %v1219 = vpack.c.b16 %v883, %v877
    %v1220 = vpack.c.b16 %v890, %v884
    %v1221 = vpack.c.b16 %v891, %v885
    %v1222 = vpack.c.b16 %v892, %v886
    %v1223 = vpack.c.b16 %v893, %v887
    %v1224 = vpack.c.b16 %v894, %v888
    %v1225 = vpack.c.b16 %v895, %v889
    %v1226 = vpack.c.b16 %v902, %v896
    %v1227 = vpack.c.b16 %v903, %v897
    %v1228 = vpack.c.b16 %v904, %v898
    %v1229 = vpack.c.b16 %v905, %v899
    %v1230 = vpack.c.b16 %v906, %v900
    %v1231 = vpack.c.b16 %v907, %v901
    %v1232 = vpack.c.b16 %v914, %v908
    %v1233 = vpack.c.b16 %v915, %v909
    %v1234 = vpack.c.b16 %v916, %v910
    %v1235 = vpack.c.b16 %v917, %v911
    %v1236 = vpack.c.b16 %v918, %v912
    %v1237 = vpack.c.b16 %v919, %v913
    %v1238 = vpack.c.b16 %v926, %v920
    %v1239 = vpack.c.b16 %v927, %v921
    %v1240 = vpack.c.b16 %v928, %v922
    %v1241 = vpack.c.b16 %v929, %v923
    %v1242 = vpack.c.b16 %v930, %v924
    %v1243 = vpack.c.b16 %v931, %v925
    %v1244 = vpack.c.b16 %v938, %v932
    %v1245 = vpack.c.b16 %v939, %v933
    %v1246 = vpack.c.b16 %v940, %v934
    %v1247 = vpack.c.b16 %v941, %v935
    %v1248 = vpack.c.b16 %v942, %v936
    %v1249 = vpack.c.b16 %v943, %v937
    %v1250 = vpack.c.b16 %v950, %v944
    %v1251 = vpack.c.b16 %v951, %v945
    %v1252 = vpack.c.b16 %v952, %v946
    %v1253 = vpack.c.b16 %v953, %v947
    %v1254 = vpack.c.b16 %v954, %v948
    %v1255 = vpack.c.b16 %v955, %v949
    %v1256 = vpack.c.b16 %v962, %v956
    %v1257 = vpack.c.b16 %v963, %v957
    %v1258 = vpack.c.b16 %v964, %v958
    %v1259 = vpack.c.b16 %v965, %v959
    %v1260 = vpack.c.b16 %v966, %v960
    %v1261 = vpack.c.b16 %v967, %v961
    %v1262 = vpack.c.b16 %v974, %v968
    %v1263 = vpack.c.b16 %v975, %v969
    %v1264 = vpack.c.b16 %v976, %v970
    %v1265 = vpack.c.b16 %v977, %v971
    %v1266 = vpack.c.b16 %v978, %v972
    %v1267 = vpack.c.b16 %v979, %v973
    %v1268 = vpack.c.b16 %v986, %v980
    %v1269 = vpack.c.b16 %v987, %v981
    %v1270 = vpack.c.b16 %v988, %v982
    %v1271 = vpack.c.b16 %v989, %v983
    %v1272 = vpack.c.b16 %v990, %v984
    %v1273 = vpack.c.b16 %v991, %v985
    %v1274 = vpack.c.b16 %v998, %v992
    %v1275 = vpack.c.b16 %v999, %v993
    %v1276 = vpack.c.b16 %v1000, %v994
    %v1277 = vpack.c.b16 %v1001, %v995
    %v1278 = vpack.c.b16 %v1002, %v996
    %v1279 = vpack.c.b16 %v1003, %v997
    %v1280 = vpack.c.b16 %v1010, %v1004
    %v1281 = vpack.c.b16 %v1011, %v1005
    %v1282 = vpack.c.b16 %v1012, %v1006
    %v1283 = vpack.c.b16 %v1013, %v1007
    %v1284 = vpack.c.b16 %v1014, %v1008
    %v1285 = vpack.c.b16 %v1015, %v1009
    %v1286 = vpack.c.b16 %v1022, %v1016
    %v1287 = vpack.c.b16 %v1023, %v1017
    %v1288 = vpack.c.b16 %v1024, %v1018
    %v1289 = vpack.c.b16 %v1025, %v1019
    %v1290 = vpack.c.b16 %v1026, %v1020
    %v1291 = vpack.c.b16 %v1027, %v1021
    %v1292 = vpack.c.b16 %v1034, %v1028
    %v1293 = vpack.c.b16 %v1035, %v1029
    %v1294 = vpack.c.b16 %v1036, %v1030
    %v1295 = vpack.c.b16 %v1037, %v1031
    %v1296 = vpack.c.b16 %v1038, %v1032
    %v1297 = vpack.c.b16 %v1039, %v1033
    %v1298 = vpack.c.b16 %v1046, %v1040
    %v1299 = vpack.c.b16 %v1047, %v1041
    %v1300 = vpack.c.b16 %v1048, %v1042
    %v1301 = vpack.c.b16 %v1049, %v1043
    %v1302 = vpack.c.b16 %v1050, %v1044
    %v1303 = vpack.c.b16 %v1051, %v1045
    %v1304 = vpack.c.b16 %v1058, %v1052
    %v1305 = vpack.c.b16 %v1059, %v1053
    %v1306 = vpack.c.b16 %v1060, %v1054
    %v1307 = vpack.c.b16 %v1061, %v1055
    %v1308 = vpack.c.b16 %v1062, %v1056
    %v1309 = vpack.c.b16 %v1063, %v1057
    %v1310 = vpack.c.b16 %v1070, %v1064
    %v1311 = vpack.c.b16 %v1071, %v1065
    %v1312 = vpack.c.b16 %v1072, %v1066
    %v1313 = vpack.c.b16 %v1073, %v1067
    %v1314 = vpack.c.b16 %v1074, %v1068
    %v1315 = vpack.c.b16 %v1075, %v1069
    %1556 = vmatpush.bf16.msra.mxu0 %v1118
    %1557 = vmatpush.bf16.msra.mxu0 %v1112
    %1558 = vmatpush.bf16.msra.mxu0 %v1106
    %1559 = vmatpush.bf16.msra.mxu0 %v1100
    %1560 = vmatpush.bf16.msra.mxu0 %v1094
    %1561 = vmatpush.bf16.msra.mxu0 %v1088
    %1562 = vmatpush.bf16.msra.mxu0 %v1082
    %1563 = vmatpush.bf16.msra.mxu0 %v1076
    %1564 = vmatmul.bf16.gmra.mxu0 %v92
    %v1565 = vpop.f32.mrf.mxu0
    %v1566 = vadd.f32 0.0, %v1565
    %v1567 = vpop.f32.mrf.mxu0
    %v1568 = vadd.f32 0.0, %v1567
    %1569 = vmatmul.bf16.gmra.mxu0 %v97
    %v1570 = vpop.f32.mrf.mxu0
    %v1571 = vadd.f32 0.0, %v1570
    %v1572 = vpop.f32.mrf.mxu0
    %v1573 = vadd.f32 0.0, %v1572
    %1574 = vmatmul.bf16.gmra.mxu0 %v102
    %v1575 = vpop.f32.mrf.mxu0
    %v1576 = vadd.f32 0.0, %v1575
    %v1577 = vpop.f32.mrf.mxu0
    %v1578 = vadd.f32 0.0, %v1577
    %1579 = vmatmul.bf16.gmra.mxu0 %v94
    %v1580 = vpop.f32.mrf.mxu0
    %v1581 = vadd.f32 0.0, %v1580
    %v1582 = vpop.f32.mrf.mxu0
    %v1583 = vadd.f32 0.0, %v1582
    %1584 = vmatmul.bf16.gmra.mxu0 %v99
    %v1585 = vpop.f32.mrf.mxu0
    %v1586 = vadd.f32 0.0, %v1585
    %v1587 = vpop.f32.mrf.mxu0
    %v1588 = vadd.f32 0.0, %v1587
    %1589 = vmatmul.bf16.gmra.mxu0 %v104
    %v1590 = vpop.f32.mrf.mxu0
    %v1591 = vadd.f32 0.0, %v1590
    %v1592 = vpop.f32.mrf.mxu0
    %v1593 = vadd.f32 0.0, %v1592
    %1594 = vmatmul.bf16.gmra.mxu0 %v93
    %v1595 = vpop.f32.mrf.mxu0
    %v1596 = vadd.f32 0.0, %v1595
    %v1597 = vpop.f32.mrf.mxu0
    %v1598 = vadd.f32 0.0, %v1597
    %1599 = vmatmul.bf16.gmra.mxu0 %v98
    %v1600 = vpop.f32.mrf.mxu0
    %v1601 = vadd.f32 0.0, %v1600
    %v1602 = vpop.f32.mrf.mxu0
    %v1603 = vadd.f32 0.0, %v1602
    %1604 = vmatmul.bf16.gmra.mxu0 %v103
    %v1605 = vpop.f32.mrf.mxu0
    %v1606 = vadd.f32 0.0, %v1605
    %v1607 = vpop.f32.mrf.mxu0
    %v1608 = vadd.f32 0.0, %v1607
    %1609 = vmatmul.bf16.gmra.mxu0 %v95
    %v1610 = vpop.f32.mrf.mxu0
    %v1611 = vadd.f32 0.0, %v1610
    %v1612 = vpop.f32.mrf.mxu0
    %v1613 = vadd.f32 0.0, %v1612
    %1614 = vmatmul.bf16.gmra.mxu0 %v100
    %v1615 = vpop.f32.mrf.mxu0
    %v1616 = vadd.f32 0.0, %v1615
    %v1617 = vpop.f32.mrf.mxu0
    %v1618 = vadd.f32 0.0, %v1617
    %1619 = vmatmul.bf16.gmra.mxu0 %v105
    %v1620 = vpop.f32.mrf.mxu0
    %v1621 = vadd.f32 0.0, %v1620
    %v1622 = vpop.f32.mrf.mxu0
    %v1623 = vadd.f32 0.0, %v1622
    %1624 = vdwg.mxu0
    %1625 = vmatpush.bf16.msra.mxu0 %v1166
    %1626 = vmatpush.bf16.msra.mxu0 %v1160
    %1627 = vmatpush.bf16.msra.mxu0 %v1154
    %1628 = vmatpush.bf16.msra.mxu0 %v1148
    %1629 = vmatpush.bf16.msra.mxu0 %v1142
    %1630 = vmatpush.bf16.msra.mxu0 %v1136
    %1631 = vmatpush.bf16.msra.mxu0 %v1130
    %1632 = vmatpush.bf16.msra.mxu0 %v1124
    %1633 = vmatmul.bf16.gmra.mxu0 %v93
    %v1634 = vpop.f32.mrf.mxu0
    %v1635 = vadd.f32 %v1566, %v1634
    %v1636 = vpop.f32.mrf.mxu0
    %v1637 = vadd.f32 %v1568, %v1636
    %1638 = vmatmul.bf16.gmra.mxu0 %v98
    %v1639 = vpop.f32.mrf.mxu0
    %v1640 = vadd.f32 %v1571, %v1639
    %v1641 = vpop.f32.mrf.mxu0
    %v1642 = vadd.f32 %v1573, %v1641
    %1643 = vmatmul.bf16.gmra.mxu0 %v103
    %v1644 = vpop.f32.mrf.mxu0
    %v1645 = vadd.f32 %v1576, %v1644
    %v1646 = vpop.f32.mrf.mxu0
    %v1647 = vadd.f32 %v1578, %v1646
    %1648 = vmatmul.bf16.gmra.mxu0 %v95
    %v1649 = vpop.f32.mrf.mxu0
    %v1650 = vadd.f32 %v1581, %v1649
    %v1651 = vpop.f32.mrf.mxu0
    %v1652 = vadd.f32 %v1583, %v1651
    %1653 = vmatmul.bf16.gmra.mxu0 %v100
    %v1654 = vpop.f32.mrf.mxu0
    %v1655 = vadd.f32 %v1586, %v1654
    %v1656 = vpop.f32.mrf.mxu0
    %v1657 = vadd.f32 %v1588, %v1656
    %1658 = vmatmul.bf16.gmra.mxu0 %v105
    %v1659 = vpop.f32.mrf.mxu0
    %v1660 = vadd.f32 %v1591, %v1659
    %v1661 = vpop.f32.mrf.mxu0
    %v1662 = vadd.f32 %v1593, %v1661
    %1663 = vmatmul.bf16.gmra.mxu0 %v94
    %v1664 = vpop.f32.mrf.mxu0
    %v1665 = vadd.f32 %v1596, %v1664
    %v1666 = vpop.f32.mrf.mxu0
    %v1667 = vadd.f32 %v1598, %v1666
    %1668 = vmatmul.bf16.gmra.mxu0 %v99
    %v1669 = vpop.f32.mrf.mxu0
    %v1670 = vadd.f32 %v1601, %v1669
    %v1671 = vpop.f32.mrf.mxu0
    %v1672 = vadd.f32 %v1603, %v1671
    %1673 = vmatmul.bf16.gmra.mxu0 %v104
    %v1674 = vpop.f32.mrf.mxu0
    %v1675 = vadd.f32 %v1606, %v1674
    %v1676 = vpop.f32.mrf.mxu0
    %v1677 = vadd.f32 %v1608, %v1676
    %1678 = vmatmul.bf16.gmra.mxu0 %v96
    %v1679 = vpop.f32.mrf.mxu0
    %v1680 = vadd.f32 %v1611, %v1679
    %v1681 = vpop.f32.mrf.mxu0
    %v1682 = vadd.f32 %v1613, %v1681
    %1683 = vmatmul.bf16.gmra.mxu0 %v101
    %v1684 = vpop.f32.mrf.mxu0
    %v1685 = vadd.f32 %v1616, %v1684
    %v1686 = vpop.f32.mrf.mxu0
    %v1687 = vadd.f32 %v1618, %v1686
    %1688 = vmatmul.bf16.gmra.mxu0 %v106
    %v1689 = vpop.f32.mrf.mxu0
    %v1690 = vadd.f32 %v1621, %v1689
    %v1691 = vpop.f32.mrf.mxu0
    %v1692 = vadd.f32 %v1623, %v1691
    %1693 = vdwg.mxu0
    %1694 = vmatpush.bf16.msra.mxu0 %v1214
    %1695 = vmatpush.bf16.msra.mxu0 %v1208
    %1696 = vmatpush.bf16.msra.mxu0 %v1202
    %1697 = vmatpush.bf16.msra.mxu0 %v1196
    %1698 = vmatpush.bf16.msra.mxu0 %v1190
    %1699 = vmatpush.bf16.msra.mxu0 %v1184
    %1700 = vmatpush.bf16.msra.mxu0 %v1178
    %1701 = vmatpush.bf16.msra.mxu0 %v1172
    %1702 = vmatmul.bf16.gmra.mxu0 %v94
    %v1703 = vpop.f32.mrf.mxu0
    %v1704 = vadd.f32 %v1635, %v1703
    %v1705 = vpop.f32.mrf.mxu0
    %v1706 = vadd.f32 %v1637, %v1705
    %1707 = vmatmul.bf16.gmra.mxu0 %v99
    %v1708 = vpop.f32.mrf.mxu0
    %v1709 = vadd.f32 %v1640, %v1708
    %v1710 = vpop.f32.mrf.mxu0
    %v1711 = vadd.f32 %v1642, %v1710
    %1712 = vmatmul.bf16.gmra.mxu0 %v104
    %v1713 = vpop.f32.mrf.mxu0
    %v1714 = vadd.f32 %v1645, %v1713
    %v1715 = vpop.f32.mrf.mxu0
    %v1716 = vadd.f32 %v1647, %v1715
    %1717 = vmatmul.bf16.gmra.mxu0 %v96
    %v1718 = vpop.f32.mrf.mxu0
    %v1719 = vadd.f32 %v1650, %v1718
    %v1720 = vpop.f32.mrf.mxu0
    %v1721 = vadd.f32 %v1652, %v1720
    %1722 = vmatmul.bf16.gmra.mxu0 %v101
    %v1723 = vpop.f32.mrf.mxu0
    %v1724 = vadd.f32 %v1655, %v1723
    %v1725 = vpop.f32.mrf.mxu0
    %v1726 = vadd.f32 %v1657, %v1725
    %1727 = vmatmul.bf16.gmra.mxu0 %v106
    %v1728 = vpop.f32.mrf.mxu0
    %v1729 = vadd.f32 %v1660, %v1728
    %v1730 = vpop.f32.mrf.mxu0
    %v1731 = vadd.f32 %v1662, %v1730
    %1732 = vmatmul.bf16.gmra.mxu0 %v95
    %v1733 = vpop.f32.mrf.mxu0
    %v1734 = vadd.f32 %v1665, %v1733
    %v1735 = vpop.f32.mrf.mxu0
    %v1736 = vadd.f32 %v1667, %v1735
    %1737 = vmatmul.bf16.gmra.mxu0 %v100
    %v1738 = vpop.f32.mrf.mxu0
    %v1739 = vadd.f32 %v1670, %v1738
    %v1740 = vpop.f32.mrf.mxu0
    %v1741 = vadd.f32 %v1672, %v1740
    %1742 = vmatmul.bf16.gmra.mxu0 %v105
    %v1743 = vpop.f32.mrf.mxu0
    %v1744 = vadd.f32 %v1675, %v1743
    %v1745 = vpop.f32.mrf.mxu0
    %v1746 = vadd.f32 %v1677, %v1745
    %1747 = vmatmul.bf16.gmra.mxu0 %v107
    %v1748 = vpop.f32.mrf.mxu0
    %v1749 = vadd.f32 %v1680, %v1748
    %v1750 = vpop.f32.mrf.mxu0
    %v1751 = vadd.f32 %v1682, %v1750
    %1752 = vmatmul.bf16.gmra.mxu0 %v109
    %v1753 = vpop.f32.mrf.mxu0
    %v1754 = vadd.f32 %v1685, %v1753
    %v1755 = vpop.f32.mrf.mxu0
    %v1756 = vadd.f32 %v1687, %v1755
    %1757 = vmatmul.bf16.gmra.mxu0 %v111
    %v1758 = vpop.f32.mrf.mxu0
    %v1759 = vadd.f32 %v1690, %v1758
    %v1760 = vpop.f32.mrf.mxu0
    %v1761 = vadd.f32 %v1692, %v1760
    %1762 = vdwg.mxu0
    %1763 = vmatpush.bf16.msra.mxu0 %v1262
    %1764 = vmatpush.bf16.msra.mxu0 %v1256
    %1765 = vmatpush.bf16.msra.mxu0 %v1250
    %1766 = vmatpush.bf16.msra.mxu0 %v1244
    %1767 = vmatpush.bf16.msra.mxu0 %v1238
    %1768 = vmatpush.bf16.msra.mxu0 %v1232
    %1769 = vmatpush.bf16.msra.mxu0 %v1226
    %1770 = vmatpush.bf16.msra.mxu0 %v1220
    %1771 = vmatmul.bf16.gmra.mxu0 %v95
    %v1772 = vpop.f32.mrf.mxu0
    %v1773 = vadd.f32 %v1704, %v1772
    %v1774 = vpop.f32.mrf.mxu0
    %v1775 = vadd.f32 %v1706, %v1774
    %1776 = vmatmul.bf16.gmra.mxu0 %v100
    %v1777 = vpop.f32.mrf.mxu0
    %v1778 = vadd.f32 %v1709, %v1777
    %v1779 = vpop.f32.mrf.mxu0
    %v1780 = vadd.f32 %v1711, %v1779
    %1781 = vmatmul.bf16.gmra.mxu0 %v105
    %v1782 = vpop.f32.mrf.mxu0
    %v1783 = vadd.f32 %v1714, %v1782
    %v1784 = vpop.f32.mrf.mxu0
    %v1785 = vadd.f32 %v1716, %v1784
    %1786 = vmatmul.bf16.gmra.mxu0 %v107
    %v1787 = vpop.f32.mrf.mxu0
    %v1788 = vadd.f32 %v1719, %v1787
    %v1789 = vpop.f32.mrf.mxu0
    %v1790 = vadd.f32 %v1721, %v1789
    %1791 = vmatmul.bf16.gmra.mxu0 %v109
    %v1792 = vpop.f32.mrf.mxu0
    %v1793 = vadd.f32 %v1724, %v1792
    %v1794 = vpop.f32.mrf.mxu0
    %v1795 = vadd.f32 %v1726, %v1794
    %1796 = vmatmul.bf16.gmra.mxu0 %v111
    %v1797 = vpop.f32.mrf.mxu0
    %v1798 = vadd.f32 %v1729, %v1797
    %v1799 = vpop.f32.mrf.mxu0
    %v1800 = vadd.f32 %v1731, %v1799
    %1801 = vmatmul.bf16.gmra.mxu0 %v96
    %v1802 = vpop.f32.mrf.mxu0
    %v1803 = vadd.f32 %v1734, %v1802
    %v1804 = vpop.f32.mrf.mxu0
    %v1805 = vadd.f32 %v1736, %v1804
    %1806 = vmatmul.bf16.gmra.mxu0 %v101
    %v1807 = vpop.f32.mrf.mxu0
    %v1808 = vadd.f32 %v1739, %v1807
    %v1809 = vpop.f32.mrf.mxu0
    %v1810 = vadd.f32 %v1741, %v1809
    %1811 = vmatmul.bf16.gmra.mxu0 %v106
    %v1812 = vpop.f32.mrf.mxu0
    %v1813 = vadd.f32 %v1744, %v1812
    %v1814 = vpop.f32.mrf.mxu0
    %v1815 = vadd.f32 %v1746, %v1814
    %1816 = vmatmul.bf16.gmra.mxu0 %v108
    %v1817 = vpop.f32.mrf.mxu0
    %v1818 = vadd.f32 %v1749, %v1817
    %v1819 = vpop.f32.mrf.mxu0
    %v1820 = vadd.f32 %v1751, %v1819
    %1821 = vmatmul.bf16.gmra.mxu0 %v110
    %v1822 = vpop.f32.mrf.mxu0
    %v1823 = vadd.f32 %v1754, %v1822
    %v1824 = vpop.f32.mrf.mxu0
    %v1825 = vadd.f32 %v1756, %v1824
    %1826 = vmatmul.bf16.gmra.mxu0 %v112
    %v1827 = vpop.f32.mrf.mxu0
    %v1828 = vadd.f32 %v1759, %v1827
    %v1829 = vpop.f32.mrf.mxu0
    %v1830 = vadd.f32 %v1761, %v1829
    %1831 = vdwg.mxu0
    %1832 = vmatpush.bf16.msra.mxu0 %v1310
    %1833 = vmatpush.bf16.msra.mxu0 %v1304
    %1834 = vmatpush.bf16.msra.mxu0 %v1298
    %1835 = vmatpush.bf16.msra.mxu0 %v1292
    %1836 = vmatpush.bf16.msra.mxu0 %v1286
    %1837 = vmatpush.bf16.msra.mxu0 %v1280
    %1838 = vmatpush.bf16.msra.mxu0 %v1274
    %1839 = vmatpush.bf16.msra.mxu0 %v1268
    %1840 = vmatmul.bf16.gmra.mxu0 %v96
    %v1841 = vpop.f32.mrf.mxu0
    %v1842 = vadd.f32 %v1773, %v1841
    %v1843 = vpop.f32.mrf.mxu0
    %v1844 = vadd.f32 %v1775, %v1843
    %1845 = vmatmul.bf16.gmra.mxu0 %v101
    %v1846 = vpop.f32.mrf.mxu0
    %v1847 = vadd.f32 %v1778, %v1846
    %v1848 = vpop.f32.mrf.mxu0
    %v1849 = vadd.f32 %v1780, %v1848
    %1850 = vmatmul.bf16.gmra.mxu0 %v106
    %v1851 = vpop.f32.mrf.mxu0
    %v1852 = vadd.f32 %v1783, %v1851
    %v1853 = vpop.f32.mrf.mxu0
    %v1854 = vadd.f32 %v1785, %v1853
    %1855 = vmatmul.bf16.gmra.mxu0 %v108
    %v1856 = vpop.f32.mrf.mxu0
    %v1857 = vadd.f32 %v1788, %v1856
    %v1858 = vpop.f32.mrf.mxu0
    %v1859 = vadd.f32 %v1790, %v1858
    %1860 = vmatmul.bf16.gmra.mxu0 %v110
    %v1861 = vpop.f32.mrf.mxu0
    %v1862 = vadd.f32 %v1793, %v1861
    %v1863 = vpop.f32.mrf.mxu0
    %v1864 = vadd.f32 %v1795, %v1863
    %1865 = vmatmul.bf16.gmra.mxu0 %v112
    %v1866 = vpop.f32.mrf.mxu0
    %v1867 = vadd.f32 %v1798, %v1866
    %v1868 = vpop.f32.mrf.mxu0
    %v1869 = vadd.f32 %v1800, %v1868
    %1870 = vmatmul.bf16.gmra.mxu0 %v107
    %v1871 = vpop.f32.mrf.mxu0
    %v1872 = vadd.f32 %v1803, %v1871
    %v1873 = vpop.f32.mrf.mxu0
    %v1874 = vadd.f32 %v1805, %v1873
    %1875 = vmatmul.bf16.gmra.mxu0 %v109
    %v1876 = vpop.f32.mrf.mxu0
    %v1877 = vadd.f32 %v1808, %v1876
    %v1878 = vpop.f32.mrf.mxu0
    %v1879 = vadd.f32 %v1810, %v1878
    %1880 = vmatmul.bf16.gmra.mxu0 %v111
    %v1881 = vpop.f32.mrf.mxu0
    %v1882 = vadd.f32 %v1813, %v1881
    %v1883 = vpop.f32.mrf.mxu0
    %v1884 = vadd.f32 %v1815, %v1883
    %1885 = vmatmul.bf16.gmra.mxu0 %v113
    %v1886 = vpop.f32.mrf.mxu0
    %v1887 = vadd.f32 %v1818, %v1886
    %v1888 = vpop.f32.mrf.mxu0
    %v1889 = vadd.f32 %v1820, %v1888
    %1890 = vmatmul.bf16.gmra.mxu0 %v114
    %v1891 = vpop.f32.mrf.mxu0
    %v1892 = vadd.f32 %v1823, %v1891
    %v1893 = vpop.f32.mrf.mxu0
    %v1894 = vadd.f32 %v1825, %v1893
    %1895 = vmatmul.bf16.gmra.mxu0 %v115
    %v1896 = vpop.f32.mrf.mxu0
    %v1897 = vadd.f32 %v1828, %v1896
    %v1898 = vpop.f32.mrf.mxu0
    %v1899 = vadd.f32 %v1830, %v1898
    %1900 = vdwg.mxu0
    %1901 = vmatpush.bf16.msra.mxu0 %v1119
    %1902 = vmatpush.bf16.msra.mxu0 %v1113
    %1903 = vmatpush.bf16.msra.mxu0 %v1107
    %1904 = vmatpush.bf16.msra.mxu0 %v1101
    %1905 = vmatpush.bf16.msra.mxu0 %v1095
    %1906 = vmatpush.bf16.msra.mxu0 %v1089
    %1907 = vmatpush.bf16.msra.mxu0 %v1083
    %1908 = vmatpush.bf16.msra.mxu0 %v1077
    %1909 = vmatmul.bf16.gmra.mxu0 %v92
    %v1910 = vpop.f32.mrf.mxu0
    %v1911 = vadd.f32 0.0, %v1910
    %v1912 = vpop.f32.mrf.mxu0
    %v1913 = vadd.f32 0.0, %v1912
    %1914 = vmatmul.bf16.gmra.mxu0 %v97
    %v1915 = vpop.f32.mrf.mxu0
    %v1916 = vadd.f32 0.0, %v1915
    %v1917 = vpop.f32.mrf.mxu0
    %v1918 = vadd.f32 0.0, %v1917
    %1919 = vmatmul.bf16.gmra.mxu0 %v102
    %v1920 = vpop.f32.mrf.mxu0
    %v1921 = vadd.f32 0.0, %v1920
    %v1922 = vpop.f32.mrf.mxu0
    %v1923 = vadd.f32 0.0, %v1922
    %1924 = vmatmul.bf16.gmra.mxu0 %v94
    %v1925 = vpop.f32.mrf.mxu0
    %v1926 = vadd.f32 0.0, %v1925
    %v1927 = vpop.f32.mrf.mxu0
    %v1928 = vadd.f32 0.0, %v1927
    %1929 = vmatmul.bf16.gmra.mxu0 %v99
    %v1930 = vpop.f32.mrf.mxu0
    %v1931 = vadd.f32 0.0, %v1930
    %v1932 = vpop.f32.mrf.mxu0
    %v1933 = vadd.f32 0.0, %v1932
    %1934 = vmatmul.bf16.gmra.mxu0 %v104
    %v1935 = vpop.f32.mrf.mxu0
    %v1936 = vadd.f32 0.0, %v1935
    %v1937 = vpop.f32.mrf.mxu0
    %v1938 = vadd.f32 0.0, %v1937
    %1939 = vmatmul.bf16.gmra.mxu0 %v93
    %v1940 = vpop.f32.mrf.mxu0
    %v1941 = vadd.f32 0.0, %v1940
    %v1942 = vpop.f32.mrf.mxu0
    %v1943 = vadd.f32 0.0, %v1942
    %1944 = vmatmul.bf16.gmra.mxu0 %v98
    %v1945 = vpop.f32.mrf.mxu0
    %v1946 = vadd.f32 0.0, %v1945
    %v1947 = vpop.f32.mrf.mxu0
    %v1948 = vadd.f32 0.0, %v1947
    %1949 = vmatmul.bf16.gmra.mxu0 %v103
    %v1950 = vpop.f32.mrf.mxu0
    %v1951 = vadd.f32 0.0, %v1950
    %v1952 = vpop.f32.mrf.mxu0
    %v1953 = vadd.f32 0.0, %v1952
    %1954 = vmatmul.bf16.gmra.mxu0 %v95
    %v1955 = vpop.f32.mrf.mxu0
    %v1956 = vadd.f32 0.0, %v1955
    %v1957 = vpop.f32.mrf.mxu0
    %v1958 = vadd.f32 0.0, %v1957
    %1959 = vmatmul.bf16.gmra.mxu0 %v100
    %v1960 = vpop.f32.mrf.mxu0
    %v1961 = vadd.f32 0.0, %v1960
    %v1962 = vpop.f32.mrf.mxu0
    %v1963 = vadd.f32 0.0, %v1962
    %1964 = vmatmul.bf16.gmra.mxu0 %v105
    %v1965 = vpop.f32.mrf.mxu0
    %v1966 = vadd.f32 0.0, %v1965
    %v1967 = vpop.f32.mrf.mxu0
    %v1968 = vadd.f32 0.0, %v1967
    %1969 = vdwg.mxu0
    %1970 = vmatpush.bf16.msra.mxu0 %v1167
    %1971 = vmatpush.bf16.msra.mxu0 %v1161
    %1972 = vmatpush.bf16.msra.mxu0 %v1155
    %1973 = vmatpush.bf16.msra.mxu0 %v1149
    %1974 = vmatpush.bf16.msra.mxu0 %v1143
    %1975 = vmatpush.bf16.msra.mxu0 %v1137
    %1976 = vmatpush.bf16.msra.mxu0 %v1131
    %1977 = vmatpush.bf16.msra.mxu0 %v1125
    %1978 = vmatmul.bf16.gmra.mxu0 %v93
    %v1979 = vpop.f32.mrf.mxu0
    %v1980 = vadd.f32 %v1911, %v1979
    %v1981 = vpop.f32.mrf.mxu0
    %v1982 = vadd.f32 %v1913, %v1981
    %1983 = vmatmul.bf16.gmra.mxu0 %v98
    %v1984 = vpop.f32.mrf.mxu0
    %v1985 = vadd.f32 %v1916, %v1984
    %v1986 = vpop.f32.mrf.mxu0
    %v1987 = vadd.f32 %v1918, %v1986
    %1988 = vmatmul.bf16.gmra.mxu0 %v103
    %v1989 = vpop.f32.mrf.mxu0
    %v1990 = vadd.f32 %v1921, %v1989
    %v1991 = vpop.f32.mrf.mxu0
    %v1992 = vadd.f32 %v1923, %v1991
    %1993 = vmatmul.bf16.gmra.mxu0 %v95
    %v1994 = vpop.f32.mrf.mxu0
    %v1995 = vadd.f32 %v1926, %v1994
    %v1996 = vpop.f32.mrf.mxu0
    %v1997 = vadd.f32 %v1928, %v1996
    %1998 = vmatmul.bf16.gmra.mxu0 %v100
    %v1999 = vpop.f32.mrf.mxu0
    %v2000 = vadd.f32 %v1931, %v1999
    %v2001 = vpop.f32.mrf.mxu0
    %v2002 = vadd.f32 %v1933, %v2001
    %2003 = vmatmul.bf16.gmra.mxu0 %v105
    %v2004 = vpop.f32.mrf.mxu0
    %v2005 = vadd.f32 %v1936, %v2004
    %v2006 = vpop.f32.mrf.mxu0
    %v2007 = vadd.f32 %v1938, %v2006
    %2008 = vmatmul.bf16.gmra.mxu0 %v94
    %v2009 = vpop.f32.mrf.mxu0
    %v2010 = vadd.f32 %v1941, %v2009
    %v2011 = vpop.f32.mrf.mxu0
    %v2012 = vadd.f32 %v1943, %v2011
    %2013 = vmatmul.bf16.gmra.mxu0 %v99
    %v2014 = vpop.f32.mrf.mxu0
    %v2015 = vadd.f32 %v1946, %v2014
    %v2016 = vpop.f32.mrf.mxu0
    %v2017 = vadd.f32 %v1948, %v2016
    %2018 = vmatmul.bf16.gmra.mxu0 %v104
    %v2019 = vpop.f32.mrf.mxu0
    %v2020 = vadd.f32 %v1951, %v2019
    %v2021 = vpop.f32.mrf.mxu0
    %v2022 = vadd.f32 %v1953, %v2021
    %2023 = vmatmul.bf16.gmra.mxu0 %v96
    %v2024 = vpop.f32.mrf.mxu0
    %v2025 = vadd.f32 %v1956, %v2024
    %v2026 = vpop.f32.mrf.mxu0
    %v2027 = vadd.f32 %v1958, %v2026
    %2028 = vmatmul.bf16.gmra.mxu0 %v101
    %v2029 = vpop.f32.mrf.mxu0
    %v2030 = vadd.f32 %v1961, %v2029
    %v2031 = vpop.f32.mrf.mxu0
    %v2032 = vadd.f32 %v1963, %v2031
    %2033 = vmatmul.bf16.gmra.mxu0 %v106
    %v2034 = vpop.f32.mrf.mxu0
    %v2035 = vadd.f32 %v1966, %v2034
    %v2036 = vpop.f32.mrf.mxu0
    %v2037 = vadd.f32 %v1968, %v2036
    %2038 = vdwg.mxu0
    %2039 = vmatpush.bf16.msra.mxu0 %v1215
    %2040 = vmatpush.bf16.msra.mxu0 %v1209
    %2041 = vmatpush.bf16.msra.mxu0 %v1203
    %2042 = vmatpush.bf16.msra.mxu0 %v1197
    %2043 = vmatpush.bf16.msra.mxu0 %v1191
    %2044 = vmatpush.bf16.msra.mxu0 %v1185
    %2045 = vmatpush.bf16.msra.mxu0 %v1179
    %2046 = vmatpush.bf16.msra.mxu0 %v1173
    %2047 = vmatmul.bf16.gmra.mxu0 %v94
    %v2048 = vpop.f32.mrf.mxu0
    %v2049 = vadd.f32 %v1980, %v2048
    %v2050 = vpop.f32.mrf.mxu0
    %v2051 = vadd.f32 %v1982, %v2050
    %2052 = vmatmul.bf16.gmra.mxu0 %v99
    %v2053 = vpop.f32.mrf.mxu0
    %v2054 = vadd.f32 %v1985, %v2053
    %v2055 = vpop.f32.mrf.mxu0
    %v2056 = vadd.f32 %v1987, %v2055
    %2057 = vmatmul.bf16.gmra.mxu0 %v104
    %v2058 = vpop.f32.mrf.mxu0
    %v2059 = vadd.f32 %v1990, %v2058
    %v2060 = vpop.f32.mrf.mxu0
    %v2061 = vadd.f32 %v1992, %v2060
    %2062 = vmatmul.bf16.gmra.mxu0 %v96
    %v2063 = vpop.f32.mrf.mxu0
    %v2064 = vadd.f32 %v1995, %v2063
    %v2065 = vpop.f32.mrf.mxu0
    %v2066 = vadd.f32 %v1997, %v2065
    %2067 = vmatmul.bf16.gmra.mxu0 %v101
    %v2068 = vpop.f32.mrf.mxu0
    %v2069 = vadd.f32 %v2000, %v2068
    %v2070 = vpop.f32.mrf.mxu0
    %v2071 = vadd.f32 %v2002, %v2070
    %2072 = vmatmul.bf16.gmra.mxu0 %v106
    %v2073 = vpop.f32.mrf.mxu0
    %v2074 = vadd.f32 %v2005, %v2073
    %v2075 = vpop.f32.mrf.mxu0
    %v2076 = vadd.f32 %v2007, %v2075
    %2077 = vmatmul.bf16.gmra.mxu0 %v95
    %v2078 = vpop.f32.mrf.mxu0
    %v2079 = vadd.f32 %v2010, %v2078
    %v2080 = vpop.f32.mrf.mxu0
    %v2081 = vadd.f32 %v2012, %v2080
    %2082 = vmatmul.bf16.gmra.mxu0 %v100
    %v2083 = vpop.f32.mrf.mxu0
    %v2084 = vadd.f32 %v2015, %v2083
    %v2085 = vpop.f32.mrf.mxu0
    %v2086 = vadd.f32 %v2017, %v2085
    %2087 = vmatmul.bf16.gmra.mxu0 %v105
    %v2088 = vpop.f32.mrf.mxu0
    %v2089 = vadd.f32 %v2020, %v2088
    %v2090 = vpop.f32.mrf.mxu0
    %v2091 = vadd.f32 %v2022, %v2090
    %2092 = vmatmul.bf16.gmra.mxu0 %v107
    %v2093 = vpop.f32.mrf.mxu0
    %v2094 = vadd.f32 %v2025, %v2093
    %v2095 = vpop.f32.mrf.mxu0
    %v2096 = vadd.f32 %v2027, %v2095
    %2097 = vmatmul.bf16.gmra.mxu0 %v109
    %v2098 = vpop.f32.mrf.mxu0
    %v2099 = vadd.f32 %v2030, %v2098
    %v2100 = vpop.f32.mrf.mxu0
    %v2101 = vadd.f32 %v2032, %v2100
    %2102 = vmatmul.bf16.gmra.mxu0 %v111
    %v2103 = vpop.f32.mrf.mxu0
    %v2104 = vadd.f32 %v2035, %v2103
    %v2105 = vpop.f32.mrf.mxu0
    %v2106 = vadd.f32 %v2037, %v2105
    %2107 = vdwg.mxu0
    %2108 = vmatpush.bf16.msra.mxu0 %v1263
    %2109 = vmatpush.bf16.msra.mxu0 %v1257
    %2110 = vmatpush.bf16.msra.mxu0 %v1251
    %2111 = vmatpush.bf16.msra.mxu0 %v1245
    %2112 = vmatpush.bf16.msra.mxu0 %v1239
    %2113 = vmatpush.bf16.msra.mxu0 %v1233
    %2114 = vmatpush.bf16.msra.mxu0 %v1227
    %2115 = vmatpush.bf16.msra.mxu0 %v1221
    %2116 = vmatmul.bf16.gmra.mxu0 %v95
    %v2117 = vpop.f32.mrf.mxu0
    %v2118 = vadd.f32 %v2049, %v2117
    %v2119 = vpop.f32.mrf.mxu0
    %v2120 = vadd.f32 %v2051, %v2119
    %2121 = vmatmul.bf16.gmra.mxu0 %v100
    %v2122 = vpop.f32.mrf.mxu0
    %v2123 = vadd.f32 %v2054, %v2122
    %v2124 = vpop.f32.mrf.mxu0
    %v2125 = vadd.f32 %v2056, %v2124
    %2126 = vmatmul.bf16.gmra.mxu0 %v105
    %v2127 = vpop.f32.mrf.mxu0
    %v2128 = vadd.f32 %v2059, %v2127
    %v2129 = vpop.f32.mrf.mxu0
    %v2130 = vadd.f32 %v2061, %v2129
    %2131 = vmatmul.bf16.gmra.mxu0 %v107
    %v2132 = vpop.f32.mrf.mxu0
    %v2133 = vadd.f32 %v2064, %v2132
    %v2134 = vpop.f32.mrf.mxu0
    %v2135 = vadd.f32 %v2066, %v2134
    %2136 = vmatmul.bf16.gmra.mxu0 %v109
    %v2137 = vpop.f32.mrf.mxu0
    %v2138 = vadd.f32 %v2069, %v2137
    %v2139 = vpop.f32.mrf.mxu0
    %v2140 = vadd.f32 %v2071, %v2139
    %2141 = vmatmul.bf16.gmra.mxu0 %v111
    %v2142 = vpop.f32.mrf.mxu0
    %v2143 = vadd.f32 %v2074, %v2142
    %v2144 = vpop.f32.mrf.mxu0
    %v2145 = vadd.f32 %v2076, %v2144
    %2146 = vmatmul.bf16.gmra.mxu0 %v96
    %v2147 = vpop.f32.mrf.mxu0
    %v2148 = vadd.f32 %v2079, %v2147
    %v2149 = vpop.f32.mrf.mxu0
    %v2150 = vadd.f32 %v2081, %v2149
    %2151 = vmatmul.bf16.gmra.mxu0 %v101
    %v2152 = vpop.f32.mrf.mxu0
    %v2153 = vadd.f32 %v2084, %v2152
    %v2154 = vpop.f32.mrf.mxu0
    %v2155 = vadd.f32 %v2086, %v2154
    %2156 = vmatmul.bf16.gmra.mxu0 %v106
    %v2157 = vpop.f32.mrf.mxu0
    %v2158 = vadd.f32 %v2089, %v2157
    %v2159 = vpop.f32.mrf.mxu0
    %v2160 = vadd.f32 %v2091, %v2159
    %2161 = vmatmul.bf16.gmra.mxu0 %v108
    %v2162 = vpop.f32.mrf.mxu0
    %v2163 = vadd.f32 %v2094, %v2162
    %v2164 = vpop.f32.mrf.mxu0
    %v2165 = vadd.f32 %v2096, %v2164
    %2166 = vmatmul.bf16.gmra.mxu0 %v110
    %v2167 = vpop.f32.mrf.mxu0
    %v2168 = vadd.f32 %v2099, %v2167
    %v2169 = vpop.f32.mrf.mxu0
    %v2170 = vadd.f32 %v2101, %v2169
    %2171 = vmatmul.bf16.gmra.mxu0 %v112
    %v2172 = vpop.f32.mrf.mxu0
    %v2173 = vadd.f32 %v2104, %v2172
    %v2174 = vpop.f32.mrf.mxu0
    %v2175 = vadd.f32 %v2106, %v2174
    %2176 = vdwg.mxu0
    %2177 = vmatpush.bf16.msra.mxu0 %v1311
    %2178 = vmatpush.bf16.msra.mxu0 %v1305
    %2179 = vmatpush.bf16.msra.mxu0 %v1299
    %2180 = vmatpush.bf16.msra.mxu0 %v1293
    %2181 = vmatpush.bf16.msra.mxu0 %v1287
    %2182 = vmatpush.bf16.msra.mxu0 %v1281
    %2183 = vmatpush.bf16.msra.mxu0 %v1275
    %2184 = vmatpush.bf16.msra.mxu0 %v1269
    %2185 = vmatmul.bf16.gmra.mxu0 %v96
    %v2186 = vpop.f32.mrf.mxu0
    %v2187 = vadd.f32 %v2118, %v2186
    %v2188 = vpop.f32.mrf.mxu0
    %v2189 = vadd.f32 %v2120, %v2188
    %2190 = vmatmul.bf16.gmra.mxu0 %v101
    %v2191 = vpop.f32.mrf.mxu0
    %v2192 = vadd.f32 %v2123, %v2191
    %v2193 = vpop.f32.mrf.mxu0
    %v2194 = vadd.f32 %v2125, %v2193
    %2195 = vmatmul.bf16.gmra.mxu0 %v106
    %v2196 = vpop.f32.mrf.mxu0
    %v2197 = vadd.f32 %v2128, %v2196
    %v2198 = vpop.f32.mrf.mxu0
    %v2199 = vadd.f32 %v2130, %v2198
    %2200 = vmatmul.bf16.gmra.mxu0 %v108
    %v2201 = vpop.f32.mrf.mxu0
    %v2202 = vadd.f32 %v2133, %v2201
    %v2203 = vpop.f32.mrf.mxu0
    %v2204 = vadd.f32 %v2135, %v2203
    %2205 = vmatmul.bf16.gmra.mxu0 %v110
    %v2206 = vpop.f32.mrf.mxu0
    %v2207 = vadd.f32 %v2138, %v2206
    %v2208 = vpop.f32.mrf.mxu0
    %v2209 = vadd.f32 %v2140, %v2208
    %2210 = vmatmul.bf16.gmra.mxu0 %v112
    %v2211 = vpop.f32.mrf.mxu0
    %v2212 = vadd.f32 %v2143, %v2211
    %v2213 = vpop.f32.mrf.mxu0
    %v2214 = vadd.f32 %v2145, %v2213
    %2215 = vmatmul.bf16.gmra.mxu0 %v107
    %v2216 = vpop.f32.mrf.mxu0
    %v2217 = vadd.f32 %v2148, %v2216
    %v2218 = vpop.f32.mrf.mxu0
    %v2219 = vadd.f32 %v2150, %v2218
    %2220 = vmatmul.bf16.gmra.mxu0 %v109
    %v2221 = vpop.f32.mrf.mxu0
    %v2222 = vadd.f32 %v2153, %v2221
    %v2223 = vpop.f32.mrf.mxu0
    %v2224 = vadd.f32 %v2155, %v2223
    %2225 = vmatmul.bf16.gmra.mxu0 %v111
    %v2226 = vpop.f32.mrf.mxu0
    %v2227 = vadd.f32 %v2158, %v2226
    %v2228 = vpop.f32.mrf.mxu0
    %v2229 = vadd.f32 %v2160, %v2228
    %2230 = vmatmul.bf16.gmra.mxu0 %v113
    %v2231 = vpop.f32.mrf.mxu0
    %v2232 = vadd.f32 %v2163, %v2231
    %v2233 = vpop.f32.mrf.mxu0
    %v2234 = vadd.f32 %v2165, %v2233
    %2235 = vmatmul.bf16.gmra.mxu0 %v114
    %v2236 = vpop.f32.mrf.mxu0
    %v2237 = vadd.f32 %v2168, %v2236
    %v2238 = vpop.f32.mrf.mxu0
    %v2239 = vadd.f32 %v2170, %v2238
    %2240 = vmatmul.bf16.gmra.mxu0 %v115
    %v2241 = vpop.f32.mrf.mxu0
    %v2242 = vadd.f32 %v2173, %v2241
    %v2243 = vpop.f32.mrf.mxu0
    %v2244 = vadd.f32 %v2175, %v2243
    %2245 = vdwg.mxu0
    %2246 = vmatpush.bf16.msra.mxu0 %v1120
    %2247 = vmatpush.bf16.msra.mxu0 %v1114
    %2248 = vmatpush.bf16.msra.mxu0 %v1108
    %2249 = vmatpush.bf16.msra.mxu0 %v1102
    %2250 = vmatpush.bf16.msra.mxu0 %v1096
    %2251 = vmatpush.bf16.msra.mxu0 %v1090
    %2252 = vmatpush.bf16.msra.mxu0 %v1084
    %2253 = vmatpush.bf16.msra.mxu0 %v1078
    %2254 = vmatmul.bf16.gmra.mxu0 %v92
    %v2255 = vpop.f32.mrf.mxu0
    %v2256 = vadd.f32 0.0, %v2255
    %v2257 = vpop.f32.mrf.mxu0
    %v2258 = vadd.f32 0.0, %v2257
    %2259 = vmatmul.bf16.gmra.mxu0 %v97
    %v2260 = vpop.f32.mrf.mxu0
    %v2261 = vadd.f32 0.0, %v2260
    %v2262 = vpop.f32.mrf.mxu0
    %v2263 = vadd.f32 0.0, %v2262
    %2264 = vmatmul.bf16.gmra.mxu0 %v102
    %v2265 = vpop.f32.mrf.mxu0
    %v2266 = vadd.f32 0.0, %v2265
    %v2267 = vpop.f32.mrf.mxu0
    %v2268 = vadd.f32 0.0, %v2267
    %2269 = vmatmul.bf16.gmra.mxu0 %v94
    %v2270 = vpop.f32.mrf.mxu0
    %v2271 = vadd.f32 0.0, %v2270
    %v2272 = vpop.f32.mrf.mxu0
    %v2273 = vadd.f32 0.0, %v2272
    %2274 = vmatmul.bf16.gmra.mxu0 %v99
    %v2275 = vpop.f32.mrf.mxu0
    %v2276 = vadd.f32 0.0, %v2275
    %v2277 = vpop.f32.mrf.mxu0
    %v2278 = vadd.f32 0.0, %v2277
    %2279 = vmatmul.bf16.gmra.mxu0 %v104
    %v2280 = vpop.f32.mrf.mxu0
    %v2281 = vadd.f32 0.0, %v2280
    %v2282 = vpop.f32.mrf.mxu0
    %v2283 = vadd.f32 0.0, %v2282
    %2284 = vmatmul.bf16.gmra.mxu0 %v93
    %v2285 = vpop.f32.mrf.mxu0
    %v2286 = vadd.f32 0.0, %v2285
    %v2287 = vpop.f32.mrf.mxu0
    %v2288 = vadd.f32 0.0, %v2287
    %2289 = vmatmul.bf16.gmra.mxu0 %v98
    %v2290 = vpop.f32.mrf.mxu0
    %v2291 = vadd.f32 0.0, %v2290
    %v2292 = vpop.f32.mrf.mxu0
    %v2293 = vadd.f32 0.0, %v2292
    %2294 = vmatmul.bf16.gmra.mxu0 %v103
    %v2295 = vpop.f32.mrf.mxu0
    %v2296 = vadd.f32 0.0, %v2295
    %v2297 = vpop.f32.mrf.mxu0
    %v2298 = vadd.f32 0.0, %v2297
    %2299 = vmatmul.bf16.gmra.mxu0 %v95
    %v2300 = vpop.f32.mrf.mxu0
    %v2301 = vadd.f32 0.0, %v2300
    %v2302 = vpop.f32.mrf.mxu0
    %v2303 = vadd.f32 0.0, %v2302
    %2304 = vmatmul.bf16.gmra.mxu0 %v100
    %v2305 = vpop.f32.mrf.mxu0
    %v2306 = vadd.f32 0.0, %v2305
    %v2307 = vpop.f32.mrf.mxu0
    %v2308 = vadd.f32 0.0, %v2307
    %2309 = vmatmul.bf16.gmra.mxu0 %v105
    %v2310 = vpop.f32.mrf.mxu0
    %v2311 = vadd.f32 0.0, %v2310
    %v2312 = vpop.f32.mrf.mxu0
    %v2313 = vadd.f32 0.0, %v2312
    %2314 = vdwg.mxu0
    %2315 = vmatpush.bf16.msra.mxu0 %v1168
    %2316 = vmatpush.bf16.msra.mxu0 %v1162
    %2317 = vmatpush.bf16.msra.mxu0 %v1156
    %2318 = vmatpush.bf16.msra.mxu0 %v1150
    %2319 = vmatpush.bf16.msra.mxu0 %v1144
    %2320 = vmatpush.bf16.msra.mxu0 %v1138
    %2321 = vmatpush.bf16.msra.mxu0 %v1132
    %2322 = vmatpush.bf16.msra.mxu0 %v1126
    %2323 = vmatmul.bf16.gmra.mxu0 %v93
    %v2324 = vpop.f32.mrf.mxu0
    %v2325 = vadd.f32 %v2256, %v2324
    %v2326 = vpop.f32.mrf.mxu0
    %v2327 = vadd.f32 %v2258, %v2326
    %2328 = vmatmul.bf16.gmra.mxu0 %v98
    %v2329 = vpop.f32.mrf.mxu0
    %v2330 = vadd.f32 %v2261, %v2329
    %v2331 = vpop.f32.mrf.mxu0
    %v2332 = vadd.f32 %v2263, %v2331
    %2333 = vmatmul.bf16.gmra.mxu0 %v103
    %v2334 = vpop.f32.mrf.mxu0
    %v2335 = vadd.f32 %v2266, %v2334
    %v2336 = vpop.f32.mrf.mxu0
    %v2337 = vadd.f32 %v2268, %v2336
    %2338 = vmatmul.bf16.gmra.mxu0 %v95
    %v2339 = vpop.f32.mrf.mxu0
    %v2340 = vadd.f32 %v2271, %v2339
    %v2341 = vpop.f32.mrf.mxu0
    %v2342 = vadd.f32 %v2273, %v2341
    %2343 = vmatmul.bf16.gmra.mxu0 %v100
    %v2344 = vpop.f32.mrf.mxu0
    %v2345 = vadd.f32 %v2276, %v2344
    %v2346 = vpop.f32.mrf.mxu0
    %v2347 = vadd.f32 %v2278, %v2346
    %2348 = vmatmul.bf16.gmra.mxu0 %v105
    %v2349 = vpop.f32.mrf.mxu0
    %v2350 = vadd.f32 %v2281, %v2349
    %v2351 = vpop.f32.mrf.mxu0
    %v2352 = vadd.f32 %v2283, %v2351
    %2353 = vmatmul.bf16.gmra.mxu0 %v94
    %v2354 = vpop.f32.mrf.mxu0
    %v2355 = vadd.f32 %v2286, %v2354
    %v2356 = vpop.f32.mrf.mxu0
    %v2357 = vadd.f32 %v2288, %v2356
    %2358 = vmatmul.bf16.gmra.mxu0 %v99
    %v2359 = vpop.f32.mrf.mxu0
    %v2360 = vadd.f32 %v2291, %v2359
    %v2361 = vpop.f32.mrf.mxu0
    %v2362 = vadd.f32 %v2293, %v2361
    %2363 = vmatmul.bf16.gmra.mxu0 %v104
    %v2364 = vpop.f32.mrf.mxu0
    %v2365 = vadd.f32 %v2296, %v2364
    %v2366 = vpop.f32.mrf.mxu0
    %v2367 = vadd.f32 %v2298, %v2366
    %2368 = vmatmul.bf16.gmra.mxu0 %v96
    %v2369 = vpop.f32.mrf.mxu0
    %v2370 = vadd.f32 %v2301, %v2369
    %v2371 = vpop.f32.mrf.mxu0
    %v2372 = vadd.f32 %v2303, %v2371
    %2373 = vmatmul.bf16.gmra.mxu0 %v101
    %v2374 = vpop.f32.mrf.mxu0
    %v2375 = vadd.f32 %v2306, %v2374
    %v2376 = vpop.f32.mrf.mxu0
    %v2377 = vadd.f32 %v2308, %v2376
    %2378 = vmatmul.bf16.gmra.mxu0 %v106
    %v2379 = vpop.f32.mrf.mxu0
    %v2380 = vadd.f32 %v2311, %v2379
    %v2381 = vpop.f32.mrf.mxu0
    %v2382 = vadd.f32 %v2313, %v2381
    %2383 = vdwg.mxu0
    %2384 = vmatpush.bf16.msra.mxu0 %v1216
    %2385 = vmatpush.bf16.msra.mxu0 %v1210
    %2386 = vmatpush.bf16.msra.mxu0 %v1204
    %2387 = vmatpush.bf16.msra.mxu0 %v1198
    %2388 = vmatpush.bf16.msra.mxu0 %v1192
    %2389 = vmatpush.bf16.msra.mxu0 %v1186
    %2390 = vmatpush.bf16.msra.mxu0 %v1180
    %2391 = vmatpush.bf16.msra.mxu0 %v1174
    %2392 = vmatmul.bf16.gmra.mxu0 %v94
    %v2393 = vpop.f32.mrf.mxu0
    %v2394 = vadd.f32 %v2325, %v2393
    %v2395 = vpop.f32.mrf.mxu0
    %v2396 = vadd.f32 %v2327, %v2395
    %2397 = vmatmul.bf16.gmra.mxu0 %v99
    %v2398 = vpop.f32.mrf.mxu0
    %v2399 = vadd.f32 %v2330, %v2398
    %v2400 = vpop.f32.mrf.mxu0
    %v2401 = vadd.f32 %v2332, %v2400
    %2402 = vmatmul.bf16.gmra.mxu0 %v104
    %v2403 = vpop.f32.mrf.mxu0
    %v2404 = vadd.f32 %v2335, %v2403
    %v2405 = vpop.f32.mrf.mxu0
    %v2406 = vadd.f32 %v2337, %v2405
    %2407 = vmatmul.bf16.gmra.mxu0 %v96
    %v2408 = vpop.f32.mrf.mxu0
    %v2409 = vadd.f32 %v2340, %v2408
    %v2410 = vpop.f32.mrf.mxu0
    %v2411 = vadd.f32 %v2342, %v2410
    %2412 = vmatmul.bf16.gmra.mxu0 %v101
    %v2413 = vpop.f32.mrf.mxu0
    %v2414 = vadd.f32 %v2345, %v2413
    %v2415 = vpop.f32.mrf.mxu0
    %v2416 = vadd.f32 %v2347, %v2415
    %2417 = vmatmul.bf16.gmra.mxu0 %v106
    %v2418 = vpop.f32.mrf.mxu0
    %v2419 = vadd.f32 %v2350, %v2418
    %v2420 = vpop.f32.mrf.mxu0
    %v2421 = vadd.f32 %v2352, %v2420
    %2422 = vmatmul.bf16.gmra.mxu0 %v95
    %v2423 = vpop.f32.mrf.mxu0
    %v2424 = vadd.f32 %v2355, %v2423
    %v2425 = vpop.f32.mrf.mxu0
    %v2426 = vadd.f32 %v2357, %v2425
    %2427 = vmatmul.bf16.gmra.mxu0 %v100
    %v2428 = vpop.f32.mrf.mxu0
    %v2429 = vadd.f32 %v2360, %v2428
    %v2430 = vpop.f32.mrf.mxu0
    %v2431 = vadd.f32 %v2362, %v2430
    %2432 = vmatmul.bf16.gmra.mxu0 %v105
    %v2433 = vpop.f32.mrf.mxu0
    %v2434 = vadd.f32 %v2365, %v2433
    %v2435 = vpop.f32.mrf.mxu0
    %v2436 = vadd.f32 %v2367, %v2435
    %2437 = vmatmul.bf16.gmra.mxu0 %v107
    %v2438 = vpop.f32.mrf.mxu0
    %v2439 = vadd.f32 %v2370, %v2438
    %v2440 = vpop.f32.mrf.mxu0
    %v2441 = vadd.f32 %v2372, %v2440
    %2442 = vmatmul.bf16.gmra.mxu0 %v109
    %v2443 = vpop.f32.mrf.mxu0
    %v2444 = vadd.f32 %v2375, %v2443
    %v2445 = vpop.f32.mrf.mxu0
    %v2446 = vadd.f32 %v2377, %v2445
    %2447 = vmatmul.bf16.gmra.mxu0 %v111
    %v2448 = vpop.f32.mrf.mxu0
    %v2449 = vadd.f32 %v2380, %v2448
    %v2450 = vpop.f32.mrf.mxu0
    %v2451 = vadd.f32 %v2382, %v2450
    %2452 = vdwg.mxu0
    %2453 = vmatpush.bf16.msra.mxu0 %v1264
    %2454 = vmatpush.bf16.msra.mxu0 %v1258
    %2455 = vmatpush.bf16.msra.mxu0 %v1252
    %2456 = vmatpush.bf16.msra.mxu0 %v1246
    %2457 = vmatpush.bf16.msra.mxu0 %v1240
    %2458 = vmatpush.bf16.msra.mxu0 %v1234
    %2459 = vmatpush.bf16.msra.mxu0 %v1228
    %2460 = vmatpush.bf16.msra.mxu0 %v1222
    %2461 = vmatmul.bf16.gmra.mxu0 %v95
    %v2462 = vpop.f32.mrf.mxu0
    %v2463 = vadd.f32 %v2394, %v2462
    %v2464 = vpop.f32.mrf.mxu0
    %v2465 = vadd.f32 %v2396, %v2464
    %2466 = vmatmul.bf16.gmra.mxu0 %v100
    %v2467 = vpop.f32.mrf.mxu0
    %v2468 = vadd.f32 %v2399, %v2467
    %v2469 = vpop.f32.mrf.mxu0
    %v2470 = vadd.f32 %v2401, %v2469
    %2471 = vmatmul.bf16.gmra.mxu0 %v105
    %v2472 = vpop.f32.mrf.mxu0
    %v2473 = vadd.f32 %v2404, %v2472
    %v2474 = vpop.f32.mrf.mxu0
    %v2475 = vadd.f32 %v2406, %v2474
    %2476 = vmatmul.bf16.gmra.mxu0 %v107
    %v2477 = vpop.f32.mrf.mxu0
    %v2478 = vadd.f32 %v2409, %v2477
    %v2479 = vpop.f32.mrf.mxu0
    %v2480 = vadd.f32 %v2411, %v2479
    %2481 = vmatmul.bf16.gmra.mxu0 %v109
    %v2482 = vpop.f32.mrf.mxu0
    %v2483 = vadd.f32 %v2414, %v2482
    %v2484 = vpop.f32.mrf.mxu0
    %v2485 = vadd.f32 %v2416, %v2484
    %2486 = vmatmul.bf16.gmra.mxu0 %v111
    %v2487 = vpop.f32.mrf.mxu0
    %v2488 = vadd.f32 %v2419, %v2487
    %v2489 = vpop.f32.mrf.mxu0
    %v2490 = vadd.f32 %v2421, %v2489
    %2491 = vmatmul.bf16.gmra.mxu0 %v96
    %v2492 = vpop.f32.mrf.mxu0
    %v2493 = vadd.f32 %v2424, %v2492
    %v2494 = vpop.f32.mrf.mxu0
    %v2495 = vadd.f32 %v2426, %v2494
    %2496 = vmatmul.bf16.gmra.mxu0 %v101
    %v2497 = vpop.f32.mrf.mxu0
    %v2498 = vadd.f32 %v2429, %v2497
    %v2499 = vpop.f32.mrf.mxu0
    %v2500 = vadd.f32 %v2431, %v2499
    %2501 = vmatmul.bf16.gmra.mxu0 %v106
    %v2502 = vpop.f32.mrf.mxu0
    %v2503 = vadd.f32 %v2434, %v2502
    %v2504 = vpop.f32.mrf.mxu0
    %v2505 = vadd.f32 %v2436, %v2504
    %2506 = vmatmul.bf16.gmra.mxu0 %v108
    %v2507 = vpop.f32.mrf.mxu0
    %v2508 = vadd.f32 %v2439, %v2507
    %v2509 = vpop.f32.mrf.mxu0
    %v2510 = vadd.f32 %v2441, %v2509
    %2511 = vmatmul.bf16.gmra.mxu0 %v110
    %v2512 = vpop.f32.mrf.mxu0
    %v2513 = vadd.f32 %v2444, %v2512
    %v2514 = vpop.f32.mrf.mxu0
    %v2515 = vadd.f32 %v2446, %v2514
    %2516 = vmatmul.bf16.gmra.mxu0 %v112
    %v2517 = vpop.f32.mrf.mxu0
    %v2518 = vadd.f32 %v2449, %v2517
    %v2519 = vpop.f32.mrf.mxu0
    %v2520 = vadd.f32 %v2451, %v2519
    %2521 = vdwg.mxu0
    %2522 = vmatpush.bf16.msra.mxu0 %v1312
    %2523 = vmatpush.bf16.msra.mxu0 %v1306
    %2524 = vmatpush.bf16.msra.mxu0 %v1300
    %2525 = vmatpush.bf16.msra.mxu0 %v1294
    %2526 = vmatpush.bf16.msra.mxu0 %v1288
    %2527 = vmatpush.bf16.msra.mxu0 %v1282
    %2528 = vmatpush.bf16.msra.mxu0 %v1276
    %2529 = vmatpush.bf16.msra.mxu0 %v1270
    %2530 = vmatmul.bf16.gmra.mxu0 %v96
    %v2531 = vpop.f32.mrf.mxu0
    %v2532 = vadd.f32 %v2463, %v2531
    %v2533 = vpop.f32.mrf.mxu0
    %v2534 = vadd.f32 %v2465, %v2533
    %2535 = vmatmul.bf16.gmra.mxu0 %v101
    %v2536 = vpop.f32.mrf.mxu0
    %v2537 = vadd.f32 %v2468, %v2536
    %v2538 = vpop.f32.mrf.mxu0
    %v2539 = vadd.f32 %v2470, %v2538
    %2540 = vmatmul.bf16.gmra.mxu0 %v106
    %v2541 = vpop.f32.mrf.mxu0
    %v2542 = vadd.f32 %v2473, %v2541
    %v2543 = vpop.f32.mrf.mxu0
    %v2544 = vadd.f32 %v2475, %v2543
    %2545 = vmatmul.bf16.gmra.mxu0 %v108
    %v2546 = vpop.f32.mrf.mxu0
    %v2547 = vadd.f32 %v2478, %v2546
    %v2548 = vpop.f32.mrf.mxu0
    %v2549 = vadd.f32 %v2480, %v2548
    %2550 = vmatmul.bf16.gmra.mxu0 %v110
    %v2551 = vpop.f32.mrf.mxu0
    %v2552 = vadd.f32 %v2483, %v2551
    %v2553 = vpop.f32.mrf.mxu0
    %v2554 = vadd.f32 %v2485, %v2553
    %2555 = vmatmul.bf16.gmra.mxu0 %v112
    %v2556 = vpop.f32.mrf.mxu0
    %v2557 = vadd.f32 %v2488, %v2556
    %v2558 = vpop.f32.mrf.mxu0
    %v2559 = vadd.f32 %v2490, %v2558
    %2560 = vmatmul.bf16.gmra.mxu0 %v107
    %v2561 = vpop.f32.mrf.mxu0
    %v2562 = vadd.f32 %v2493, %v2561
    %v2563 = vpop.f32.mrf.mxu0
    %v2564 = vadd.f32 %v2495, %v2563
    %2565 = vmatmul.bf16.gmra.mxu0 %v109
    %v2566 = vpop.f32.mrf.mxu0
    %v2567 = vadd.f32 %v2498, %v2566
    %v2568 = vpop.f32.mrf.mxu0
    %v2569 = vadd.f32 %v2500, %v2568
    %2570 = vmatmul.bf16.gmra.mxu0 %v111
    %v2571 = vpop.f32.mrf.mxu0
    %v2572 = vadd.f32 %v2503, %v2571
    %v2573 = vpop.f32.mrf.mxu0
    %v2574 = vadd.f32 %v2505, %v2573
    %2575 = vmatmul.bf16.gmra.mxu0 %v113
    %v2576 = vpop.f32.mrf.mxu0
    %v2577 = vadd.f32 %v2508, %v2576
    %v2578 = vpop.f32.mrf.mxu0
    %v2579 = vadd.f32 %v2510, %v2578
    %2580 = vmatmul.bf16.gmra.mxu0 %v114
    %v2581 = vpop.f32.mrf.mxu0
    %v2582 = vadd.f32 %v2513, %v2581
    %v2583 = vpop.f32.mrf.mxu0
    %v2584 = vadd.f32 %v2515, %v2583
    %2585 = vmatmul.bf16.gmra.mxu0 %v115
    %v2586 = vpop.f32.mrf.mxu0
    %v2587 = vadd.f32 %v2518, %v2586
    %v2588 = vpop.f32.mrf.mxu0
    %v2589 = vadd.f32 %v2520, %v2588
    %2590 = vdwg.mxu0
    %2591 = vmatpush.bf16.msra.mxu0 %v1121
    %2592 = vmatpush.bf16.msra.mxu0 %v1115
    %2593 = vmatpush.bf16.msra.mxu0 %v1109
    %2594 = vmatpush.bf16.msra.mxu0 %v1103
    %2595 = vmatpush.bf16.msra.mxu0 %v1097
    %2596 = vmatpush.bf16.msra.mxu0 %v1091
    %2597 = vmatpush.bf16.msra.mxu0 %v1085
    %2598 = vmatpush.bf16.msra.mxu0 %v1079
    %2599 = vmatmul.bf16.gmra.mxu0 %v92
    %v2600 = vpop.f32.mrf.mxu0
    %v2601 = vadd.f32 0.0, %v2600
    %v2602 = vpop.f32.mrf.mxu0
    %v2603 = vadd.f32 0.0, %v2602
    %2604 = vmatmul.bf16.gmra.mxu0 %v97
    %v2605 = vpop.f32.mrf.mxu0
    %v2606 = vadd.f32 0.0, %v2605
    %v2607 = vpop.f32.mrf.mxu0
    %v2608 = vadd.f32 0.0, %v2607
    %2609 = vmatmul.bf16.gmra.mxu0 %v102
    %v2610 = vpop.f32.mrf.mxu0
    %v2611 = vadd.f32 0.0, %v2610
    %v2612 = vpop.f32.mrf.mxu0
    %v2613 = vadd.f32 0.0, %v2612
    %2614 = vmatmul.bf16.gmra.mxu0 %v94
    %v2615 = vpop.f32.mrf.mxu0
    %v2616 = vadd.f32 0.0, %v2615
    %v2617 = vpop.f32.mrf.mxu0
    %v2618 = vadd.f32 0.0, %v2617
    %2619 = vmatmul.bf16.gmra.mxu0 %v99
    %v2620 = vpop.f32.mrf.mxu0
    %v2621 = vadd.f32 0.0, %v2620
    %v2622 = vpop.f32.mrf.mxu0
    %v2623 = vadd.f32 0.0, %v2622
    %2624 = vmatmul.bf16.gmra.mxu0 %v104
    %v2625 = vpop.f32.mrf.mxu0
    %v2626 = vadd.f32 0.0, %v2625
    %v2627 = vpop.f32.mrf.mxu0
    %v2628 = vadd.f32 0.0, %v2627
    %2629 = vmatmul.bf16.gmra.mxu0 %v93
    %v2630 = vpop.f32.mrf.mxu0
    %v2631 = vadd.f32 0.0, %v2630
    %v2632 = vpop.f32.mrf.mxu0
    %v2633 = vadd.f32 0.0, %v2632
    %2634 = vmatmul.bf16.gmra.mxu0 %v98
    %v2635 = vpop.f32.mrf.mxu0
    %v2636 = vadd.f32 0.0, %v2635
    %v2637 = vpop.f32.mrf.mxu0
    %v2638 = vadd.f32 0.0, %v2637
    %2639 = vmatmul.bf16.gmra.mxu0 %v103
    %v2640 = vpop.f32.mrf.mxu0
    %v2641 = vadd.f32 0.0, %v2640
    %v2642 = vpop.f32.mrf.mxu0
    %v2643 = vadd.f32 0.0, %v2642
    %2644 = vmatmul.bf16.gmra.mxu0 %v95
    %v2645 = vpop.f32.mrf.mxu0
    %v2646 = vadd.f32 0.0, %v2645
    %v2647 = vpop.f32.mrf.mxu0
    %v2648 = vadd.f32 0.0, %v2647
    %2649 = vmatmul.bf16.gmra.mxu0 %v100
    %v2650 = vpop.f32.mrf.mxu0
    %v2651 = vadd.f32 0.0, %v2650
    %v2652 = vpop.f32.mrf.mxu0
    %v2653 = vadd.f32 0.0, %v2652
    %2654 = vmatmul.bf16.gmra.mxu0 %v105
    %v2655 = vpop.f32.mrf.mxu0
    %v2656 = vadd.f32 0.0, %v2655
    %v2657 = vpop.f32.mrf.mxu0
    %v2658 = vadd.f32 0.0, %v2657
    %2659 = vdwg.mxu0
    %2660 = vmatpush.bf16.msra.mxu0 %v1169
    %2661 = vmatpush.bf16.msra.mxu0 %v1163
    %2662 = vmatpush.bf16.msra.mxu0 %v1157
    %2663 = vmatpush.bf16.msra.mxu0 %v1151
    %2664 = vmatpush.bf16.msra.mxu0 %v1145
    %2665 = vmatpush.bf16.msra.mxu0 %v1139
    %2666 = vmatpush.bf16.msra.mxu0 %v1133
    %2667 = vmatpush.bf16.msra.mxu0 %v1127
    %2668 = vmatmul.bf16.gmra.mxu0 %v93
    %v2669 = vpop.f32.mrf.mxu0
    %v2670 = vadd.f32 %v2601, %v2669
    %v2671 = vpop.f32.mrf.mxu0
    %v2672 = vadd.f32 %v2603, %v2671
    %2673 = vmatmul.bf16.gmra.mxu0 %v98
    %v2674 = vpop.f32.mrf.mxu0
    %v2675 = vadd.f32 %v2606, %v2674
    %v2676 = vpop.f32.mrf.mxu0
    %v2677 = vadd.f32 %v2608, %v2676
    %2678 = vmatmul.bf16.gmra.mxu0 %v103
    %v2679 = vpop.f32.mrf.mxu0
    %v2680 = vadd.f32 %v2611, %v2679
    %v2681 = vpop.f32.mrf.mxu0
    %v2682 = vadd.f32 %v2613, %v2681
    %2683 = vmatmul.bf16.gmra.mxu0 %v95
    %v2684 = vpop.f32.mrf.mxu0
    %v2685 = vadd.f32 %v2616, %v2684
    %v2686 = vpop.f32.mrf.mxu0
    %v2687 = vadd.f32 %v2618, %v2686
    %2688 = vmatmul.bf16.gmra.mxu0 %v100
    %v2689 = vpop.f32.mrf.mxu0
    %v2690 = vadd.f32 %v2621, %v2689
    %v2691 = vpop.f32.mrf.mxu0
    %v2692 = vadd.f32 %v2623, %v2691
    %2693 = vmatmul.bf16.gmra.mxu0 %v105
    %v2694 = vpop.f32.mrf.mxu0
    %v2695 = vadd.f32 %v2626, %v2694
    %v2696 = vpop.f32.mrf.mxu0
    %v2697 = vadd.f32 %v2628, %v2696
    %2698 = vmatmul.bf16.gmra.mxu0 %v94
    %v2699 = vpop.f32.mrf.mxu0
    %v2700 = vadd.f32 %v2631, %v2699
    %v2701 = vpop.f32.mrf.mxu0
    %v2702 = vadd.f32 %v2633, %v2701
    %2703 = vmatmul.bf16.gmra.mxu0 %v99
    %v2704 = vpop.f32.mrf.mxu0
    %v2705 = vadd.f32 %v2636, %v2704
    %v2706 = vpop.f32.mrf.mxu0
    %v2707 = vadd.f32 %v2638, %v2706
    %2708 = vmatmul.bf16.gmra.mxu0 %v104
    %v2709 = vpop.f32.mrf.mxu0
    %v2710 = vadd.f32 %v2641, %v2709
    %v2711 = vpop.f32.mrf.mxu0
    %v2712 = vadd.f32 %v2643, %v2711
    %2713 = vmatmul.bf16.gmra.mxu0 %v96
    %v2714 = vpop.f32.mrf.mxu0
    %v2715 = vadd.f32 %v2646, %v2714
    %v2716 = vpop.f32.mrf.mxu0
    %v2717 = vadd.f32 %v2648, %v2716
    %2718 = vmatmul.bf16.gmra.mxu0 %v101
    %v2719 = vpop.f32.mrf.mxu0
    %v2720 = vadd.f32 %v2651, %v2719
    %v2721 = vpop.f32.mrf.mxu0
    %v2722 = vadd.f32 %v2653, %v2721
    %2723 = vmatmul.bf16.gmra.mxu0 %v106
    %v2724 = vpop.f32.mrf.mxu0
    %v2725 = vadd.f32 %v2656, %v2724
    %v2726 = vpop.f32.mrf.mxu0
    %v2727 = vadd.f32 %v2658, %v2726
    %2728 = vdwg.mxu0
    %2729 = vmatpush.bf16.msra.mxu0 %v1217
    %2730 = vmatpush.bf16.msra.mxu0 %v1211
    %2731 = vmatpush.bf16.msra.mxu0 %v1205
    %2732 = vmatpush.bf16.msra.mxu0 %v1199
    %2733 = vmatpush.bf16.msra.mxu0 %v1193
    %2734 = vmatpush.bf16.msra.mxu0 %v1187
    %2735 = vmatpush.bf16.msra.mxu0 %v1181
    %2736 = vmatpush.bf16.msra.mxu0 %v1175
    %2737 = vmatmul.bf16.gmra.mxu0 %v94
    %v2738 = vpop.f32.mrf.mxu0
    %v2739 = vadd.f32 %v2670, %v2738
    %v2740 = vpop.f32.mrf.mxu0
    %v2741 = vadd.f32 %v2672, %v2740
    %2742 = vmatmul.bf16.gmra.mxu0 %v99
    %v2743 = vpop.f32.mrf.mxu0
    %v2744 = vadd.f32 %v2675, %v2743
    %v2745 = vpop.f32.mrf.mxu0
    %v2746 = vadd.f32 %v2677, %v2745
    %2747 = vmatmul.bf16.gmra.mxu0 %v104
    %v2748 = vpop.f32.mrf.mxu0
    %v2749 = vadd.f32 %v2680, %v2748
    %v2750 = vpop.f32.mrf.mxu0
    %v2751 = vadd.f32 %v2682, %v2750
    %2752 = vmatmul.bf16.gmra.mxu0 %v96
    %v2753 = vpop.f32.mrf.mxu0
    %v2754 = vadd.f32 %v2685, %v2753
    %v2755 = vpop.f32.mrf.mxu0
    %v2756 = vadd.f32 %v2687, %v2755
    %2757 = vmatmul.bf16.gmra.mxu0 %v101
    %v2758 = vpop.f32.mrf.mxu0
    %v2759 = vadd.f32 %v2690, %v2758
    %v2760 = vpop.f32.mrf.mxu0
    %v2761 = vadd.f32 %v2692, %v2760
    %2762 = vmatmul.bf16.gmra.mxu0 %v106
    %v2763 = vpop.f32.mrf.mxu0
    %v2764 = vadd.f32 %v2695, %v2763
    %v2765 = vpop.f32.mrf.mxu0
    %v2766 = vadd.f32 %v2697, %v2765
    %2767 = vmatmul.bf16.gmra.mxu0 %v95
    %v2768 = vpop.f32.mrf.mxu0
    %v2769 = vadd.f32 %v2700, %v2768
    %v2770 = vpop.f32.mrf.mxu0
    %v2771 = vadd.f32 %v2702, %v2770
    %2772 = vmatmul.bf16.gmra.mxu0 %v100
    %v2773 = vpop.f32.mrf.mxu0
    %v2774 = vadd.f32 %v2705, %v2773
    %v2775 = vpop.f32.mrf.mxu0
    %v2776 = vadd.f32 %v2707, %v2775
    %2777 = vmatmul.bf16.gmra.mxu0 %v105
    %v2778 = vpop.f32.mrf.mxu0
    %v2779 = vadd.f32 %v2710, %v2778
    %v2780 = vpop.f32.mrf.mxu0
    %v2781 = vadd.f32 %v2712, %v2780
    %2782 = vmatmul.bf16.gmra.mxu0 %v107
    %v2783 = vpop.f32.mrf.mxu0
    %v2784 = vadd.f32 %v2715, %v2783
    %v2785 = vpop.f32.mrf.mxu0
    %v2786 = vadd.f32 %v2717, %v2785
    %2787 = vmatmul.bf16.gmra.mxu0 %v109
    %v2788 = vpop.f32.mrf.mxu0
    %v2789 = vadd.f32 %v2720, %v2788
    %v2790 = vpop.f32.mrf.mxu0
    %v2791 = vadd.f32 %v2722, %v2790
    %2792 = vmatmul.bf16.gmra.mxu0 %v111
    %v2793 = vpop.f32.mrf.mxu0
    %v2794 = vadd.f32 %v2725, %v2793
    %v2795 = vpop.f32.mrf.mxu0
    %v2796 = vadd.f32 %v2727, %v2795
    %2797 = vdwg.mxu0
    %2798 = vmatpush.bf16.msra.mxu0 %v1265
    %2799 = vmatpush.bf16.msra.mxu0 %v1259
    %2800 = vmatpush.bf16.msra.mxu0 %v1253
    %2801 = vmatpush.bf16.msra.mxu0 %v1247
    %2802 = vmatpush.bf16.msra.mxu0 %v1241
    %2803 = vmatpush.bf16.msra.mxu0 %v1235
    %2804 = vmatpush.bf16.msra.mxu0 %v1229
    %2805 = vmatpush.bf16.msra.mxu0 %v1223
    %2806 = vmatmul.bf16.gmra.mxu0 %v95
    %v2807 = vpop.f32.mrf.mxu0
    %v2808 = vadd.f32 %v2739, %v2807
    %v2809 = vpop.f32.mrf.mxu0
    %v2810 = vadd.f32 %v2741, %v2809
    %2811 = vmatmul.bf16.gmra.mxu0 %v100
    %v2812 = vpop.f32.mrf.mxu0
    %v2813 = vadd.f32 %v2744, %v2812
    %v2814 = vpop.f32.mrf.mxu0
    %v2815 = vadd.f32 %v2746, %v2814
    %2816 = vmatmul.bf16.gmra.mxu0 %v105
    %v2817 = vpop.f32.mrf.mxu0
    %v2818 = vadd.f32 %v2749, %v2817
    %v2819 = vpop.f32.mrf.mxu0
    %v2820 = vadd.f32 %v2751, %v2819
    %2821 = vmatmul.bf16.gmra.mxu0 %v107
    %v2822 = vpop.f32.mrf.mxu0
    %v2823 = vadd.f32 %v2754, %v2822
    %v2824 = vpop.f32.mrf.mxu0
    %v2825 = vadd.f32 %v2756, %v2824
    %2826 = vmatmul.bf16.gmra.mxu0 %v109
    %v2827 = vpop.f32.mrf.mxu0
    %v2828 = vadd.f32 %v2759, %v2827
    %v2829 = vpop.f32.mrf.mxu0
    %v2830 = vadd.f32 %v2761, %v2829
    %2831 = vmatmul.bf16.gmra.mxu0 %v111
    %v2832 = vpop.f32.mrf.mxu0
    %v2833 = vadd.f32 %v2764, %v2832
    %v2834 = vpop.f32.mrf.mxu0
    %v2835 = vadd.f32 %v2766, %v2834
    %2836 = vmatmul.bf16.gmra.mxu0 %v96
    %v2837 = vpop.f32.mrf.mxu0
    %v2838 = vadd.f32 %v2769, %v2837
    %v2839 = vpop.f32.mrf.mxu0
    %v2840 = vadd.f32 %v2771, %v2839
    %2841 = vmatmul.bf16.gmra.mxu0 %v101
    %v2842 = vpop.f32.mrf.mxu0
    %v2843 = vadd.f32 %v2774, %v2842
    %v2844 = vpop.f32.mrf.mxu0
    %v2845 = vadd.f32 %v2776, %v2844
    %2846 = vmatmul.bf16.gmra.mxu0 %v106
    %v2847 = vpop.f32.mrf.mxu0
    %v2848 = vadd.f32 %v2779, %v2847
    %v2849 = vpop.f32.mrf.mxu0
    %v2850 = vadd.f32 %v2781, %v2849
    %2851 = vmatmul.bf16.gmra.mxu0 %v108
    %v2852 = vpop.f32.mrf.mxu0
    %v2853 = vadd.f32 %v2784, %v2852
    %v2854 = vpop.f32.mrf.mxu0
    %v2855 = vadd.f32 %v2786, %v2854
    %2856 = vmatmul.bf16.gmra.mxu0 %v110
    %v2857 = vpop.f32.mrf.mxu0
    %v2858 = vadd.f32 %v2789, %v2857
    %v2859 = vpop.f32.mrf.mxu0
    %v2860 = vadd.f32 %v2791, %v2859
    %2861 = vmatmul.bf16.gmra.mxu0 %v112
    %v2862 = vpop.f32.mrf.mxu0
    %v2863 = vadd.f32 %v2794, %v2862
    %v2864 = vpop.f32.mrf.mxu0
    %v2865 = vadd.f32 %v2796, %v2864
    %2866 = vdwg.mxu0
    %2867 = vmatpush.bf16.msra.mxu0 %v1313
    %2868 = vmatpush.bf16.msra.mxu0 %v1307
    %2869 = vmatpush.bf16.msra.mxu0 %v1301
    %2870 = vmatpush.bf16.msra.mxu0 %v1295
    %2871 = vmatpush.bf16.msra.mxu0 %v1289
    %2872 = vmatpush.bf16.msra.mxu0 %v1283
    %2873 = vmatpush.bf16.msra.mxu0 %v1277
    %2874 = vmatpush.bf16.msra.mxu0 %v1271
    %2875 = vmatmul.bf16.gmra.mxu0 %v96
    %v2876 = vpop.f32.mrf.mxu0
    %v2877 = vadd.f32 %v2808, %v2876
    %v2878 = vpop.f32.mrf.mxu0
    %v2879 = vadd.f32 %v2810, %v2878
    %2880 = vmatmul.bf16.gmra.mxu0 %v101
    %v2881 = vpop.f32.mrf.mxu0
    %v2882 = vadd.f32 %v2813, %v2881
    %v2883 = vpop.f32.mrf.mxu0
    %v2884 = vadd.f32 %v2815, %v2883
    %2885 = vmatmul.bf16.gmra.mxu0 %v106
    %v2886 = vpop.f32.mrf.mxu0
    %v2887 = vadd.f32 %v2818, %v2886
    %v2888 = vpop.f32.mrf.mxu0
    %v2889 = vadd.f32 %v2820, %v2888
    %2890 = vmatmul.bf16.gmra.mxu0 %v108
    %v2891 = vpop.f32.mrf.mxu0
    %v2892 = vadd.f32 %v2823, %v2891
    %v2893 = vpop.f32.mrf.mxu0
    %v2894 = vadd.f32 %v2825, %v2893
    %2895 = vmatmul.bf16.gmra.mxu0 %v110
    %v2896 = vpop.f32.mrf.mxu0
    %v2897 = vadd.f32 %v2828, %v2896
    %v2898 = vpop.f32.mrf.mxu0
    %v2899 = vadd.f32 %v2830, %v2898
    %2900 = vmatmul.bf16.gmra.mxu0 %v112
    %v2901 = vpop.f32.mrf.mxu0
    %v2902 = vadd.f32 %v2833, %v2901
    %v2903 = vpop.f32.mrf.mxu0
    %v2904 = vadd.f32 %v2835, %v2903
    %2905 = vmatmul.bf16.gmra.mxu0 %v107
    %v2906 = vpop.f32.mrf.mxu0
    %v2907 = vadd.f32 %v2838, %v2906
    %v2908 = vpop.f32.mrf.mxu0
    %v2909 = vadd.f32 %v2840, %v2908
    %2910 = vmatmul.bf16.gmra.mxu0 %v109
    %v2911 = vpop.f32.mrf.mxu0
    %v2912 = vadd.f32 %v2843, %v2911
    %v2913 = vpop.f32.mrf.mxu0
    %v2914 = vadd.f32 %v2845, %v2913
    %2915 = vmatmul.bf16.gmra.mxu0 %v111
    %v2916 = vpop.f32.mrf.mxu0
    %v2917 = vadd.f32 %v2848, %v2916
    %v2918 = vpop.f32.mrf.mxu0
    %v2919 = vadd.f32 %v2850, %v2918
    %2920 = vmatmul.bf16.gmra.mxu0 %v113
    %v2921 = vpop.f32.mrf.mxu0
    %v2922 = vadd.f32 %v2853, %v2921
    %v2923 = vpop.f32.mrf.mxu0
    %v2924 = vadd.f32 %v2855, %v2923
    %2925 = vmatmul.bf16.gmra.mxu0 %v114
    %v2926 = vpop.f32.mrf.mxu0
    %v2927 = vadd.f32 %v2858, %v2926
    %v2928 = vpop.f32.mrf.mxu0
    %v2929 = vadd.f32 %v2860, %v2928
    %2930 = vmatmul.bf16.gmra.mxu0 %v115
    %v2931 = vpop.f32.mrf.mxu0
    %v2932 = vadd.f32 %v2863, %v2931
    %v2933 = vpop.f32.mrf.mxu0
    %v2934 = vadd.f32 %v2865, %v2933
    %2935 = vdwg.mxu0
    %2936 = vmatpush.bf16.msra.mxu0 %v1122
    %2937 = vmatpush.bf16.msra.mxu0 %v1116
    %2938 = vmatpush.bf16.msra.mxu0 %v1110
    %2939 = vmatpush.bf16.msra.mxu0 %v1104
    %2940 = vmatpush.bf16.msra.mxu0 %v1098
    %2941 = vmatpush.bf16.msra.mxu0 %v1092
    %2942 = vmatpush.bf16.msra.mxu0 %v1086
    %2943 = vmatpush.bf16.msra.mxu0 %v1080
    %2944 = vmatmul.bf16.gmra.mxu0 %v92
    %v2945 = vpop.f32.mrf.mxu0
    %v2946 = vadd.f32 0.0, %v2945
    %v2947 = vpop.f32.mrf.mxu0
    %v2948 = vadd.f32 0.0, %v2947
    %2949 = vmatmul.bf16.gmra.mxu0 %v97
    %v2950 = vpop.f32.mrf.mxu0
    %v2951 = vadd.f32 0.0, %v2950
    %v2952 = vpop.f32.mrf.mxu0
    %v2953 = vadd.f32 0.0, %v2952
    %2954 = vmatmul.bf16.gmra.mxu0 %v102
    %v2955 = vpop.f32.mrf.mxu0
    %v2956 = vadd.f32 0.0, %v2955
    %v2957 = vpop.f32.mrf.mxu0
    %v2958 = vadd.f32 0.0, %v2957
    %2959 = vmatmul.bf16.gmra.mxu0 %v94
    %v2960 = vpop.f32.mrf.mxu0
    %v2961 = vadd.f32 0.0, %v2960
    %v2962 = vpop.f32.mrf.mxu0
    %v2963 = vadd.f32 0.0, %v2962
    %2964 = vmatmul.bf16.gmra.mxu0 %v99
    %v2965 = vpop.f32.mrf.mxu0
    %v2966 = vadd.f32 0.0, %v2965
    %v2967 = vpop.f32.mrf.mxu0
    %v2968 = vadd.f32 0.0, %v2967
    %2969 = vmatmul.bf16.gmra.mxu0 %v104
    %v2970 = vpop.f32.mrf.mxu0
    %v2971 = vadd.f32 0.0, %v2970
    %v2972 = vpop.f32.mrf.mxu0
    %v2973 = vadd.f32 0.0, %v2972
    %2974 = vmatmul.bf16.gmra.mxu0 %v93
    %v2975 = vpop.f32.mrf.mxu0
    %v2976 = vadd.f32 0.0, %v2975
    %v2977 = vpop.f32.mrf.mxu0
    %v2978 = vadd.f32 0.0, %v2977
    %2979 = vmatmul.bf16.gmra.mxu0 %v98
    %v2980 = vpop.f32.mrf.mxu0
    %v2981 = vadd.f32 0.0, %v2980
    %v2982 = vpop.f32.mrf.mxu0
    %v2983 = vadd.f32 0.0, %v2982
    %2984 = vmatmul.bf16.gmra.mxu0 %v103
    %v2985 = vpop.f32.mrf.mxu0
    %v2986 = vadd.f32 0.0, %v2985
    %v2987 = vpop.f32.mrf.mxu0
    %v2988 = vadd.f32 0.0, %v2987
    %2989 = vmatmul.bf16.gmra.mxu0 %v95
    %v2990 = vpop.f32.mrf.mxu0
    %v2991 = vadd.f32 0.0, %v2990
    %v2992 = vpop.f32.mrf.mxu0
    %v2993 = vadd.f32 0.0, %v2992
    %2994 = vmatmul.bf16.gmra.mxu0 %v100
    %v2995 = vpop.f32.mrf.mxu0
    %v2996 = vadd.f32 0.0, %v2995
    %v2997 = vpop.f32.mrf.mxu0
    %v2998 = vadd.f32 0.0, %v2997
    %2999 = vmatmul.bf16.gmra.mxu0 %v105
    %v3000 = vpop.f32.mrf.mxu0
    %v3001 = vadd.f32 0.0, %v3000
    %v3002 = vpop.f32.mrf.mxu0
    %v3003 = vadd.f32 0.0, %v3002
    %3004 = vdwg.mxu0
    %3005 = vmatpush.bf16.msra.mxu0 %v1170
    %3006 = vmatpush.bf16.msra.mxu0 %v1164
    %3007 = vmatpush.bf16.msra.mxu0 %v1158
    %3008 = vmatpush.bf16.msra.mxu0 %v1152
    %3009 = vmatpush.bf16.msra.mxu0 %v1146
    %3010 = vmatpush.bf16.msra.mxu0 %v1140
    %3011 = vmatpush.bf16.msra.mxu0 %v1134
    %3012 = vmatpush.bf16.msra.mxu0 %v1128
    %3013 = vmatmul.bf16.gmra.mxu0 %v93
    %v3014 = vpop.f32.mrf.mxu0
    %v3015 = vadd.f32 %v2946, %v3014
    %v3016 = vpop.f32.mrf.mxu0
    %v3017 = vadd.f32 %v2948, %v3016
    %3018 = vmatmul.bf16.gmra.mxu0 %v98
    %v3019 = vpop.f32.mrf.mxu0
    %v3020 = vadd.f32 %v2951, %v3019
    %v3021 = vpop.f32.mrf.mxu0
    %v3022 = vadd.f32 %v2953, %v3021
    %3023 = vmatmul.bf16.gmra.mxu0 %v103
    %v3024 = vpop.f32.mrf.mxu0
    %v3025 = vadd.f32 %v2956, %v3024
    %v3026 = vpop.f32.mrf.mxu0
    %v3027 = vadd.f32 %v2958, %v3026
    %3028 = vmatmul.bf16.gmra.mxu0 %v95
    %v3029 = vpop.f32.mrf.mxu0
    %v3030 = vadd.f32 %v2961, %v3029
    %v3031 = vpop.f32.mrf.mxu0
    %v3032 = vadd.f32 %v2963, %v3031
    %3033 = vmatmul.bf16.gmra.mxu0 %v100
    %v3034 = vpop.f32.mrf.mxu0
    %v3035 = vadd.f32 %v2966, %v3034
    %v3036 = vpop.f32.mrf.mxu0
    %v3037 = vadd.f32 %v2968, %v3036
    %3038 = vmatmul.bf16.gmra.mxu0 %v105
    %v3039 = vpop.f32.mrf.mxu0
    %v3040 = vadd.f32 %v2971, %v3039
    %v3041 = vpop.f32.mrf.mxu0
    %v3042 = vadd.f32 %v2973, %v3041
    %3043 = vmatmul.bf16.gmra.mxu0 %v94
    %v3044 = vpop.f32.mrf.mxu0
    %v3045 = vadd.f32 %v2976, %v3044
    %v3046 = vpop.f32.mrf.mxu0
    %v3047 = vadd.f32 %v2978, %v3046
    %3048 = vmatmul.bf16.gmra.mxu0 %v99
    %v3049 = vpop.f32.mrf.mxu0
    %v3050 = vadd.f32 %v2981, %v3049
    %v3051 = vpop.f32.mrf.mxu0
    %v3052 = vadd.f32 %v2983, %v3051
    %3053 = vmatmul.bf16.gmra.mxu0 %v104
    %v3054 = vpop.f32.mrf.mxu0
    %v3055 = vadd.f32 %v2986, %v3054
    %v3056 = vpop.f32.mrf.mxu0
    %v3057 = vadd.f32 %v2988, %v3056
    %3058 = vmatmul.bf16.gmra.mxu0 %v96
    %v3059 = vpop.f32.mrf.mxu0
    %v3060 = vadd.f32 %v2991, %v3059
    %v3061 = vpop.f32.mrf.mxu0
    %v3062 = vadd.f32 %v2993, %v3061
    %3063 = vmatmul.bf16.gmra.mxu0 %v101
    %v3064 = vpop.f32.mrf.mxu0
    %v3065 = vadd.f32 %v2996, %v3064
    %v3066 = vpop.f32.mrf.mxu0
    %v3067 = vadd.f32 %v2998, %v3066
    %3068 = vmatmul.bf16.gmra.mxu0 %v106
    %v3069 = vpop.f32.mrf.mxu0
    %v3070 = vadd.f32 %v3001, %v3069
    %v3071 = vpop.f32.mrf.mxu0
    %v3072 = vadd.f32 %v3003, %v3071
    %3073 = vdwg.mxu0
    %3074 = vmatpush.bf16.msra.mxu0 %v1218
    %3075 = vmatpush.bf16.msra.mxu0 %v1212
    %3076 = vmatpush.bf16.msra.mxu0 %v1206
    %3077 = vmatpush.bf16.msra.mxu0 %v1200
    %3078 = vmatpush.bf16.msra.mxu0 %v1194
    %3079 = vmatpush.bf16.msra.mxu0 %v1188
    %3080 = vmatpush.bf16.msra.mxu0 %v1182
    %3081 = vmatpush.bf16.msra.mxu0 %v1176
    %3082 = vmatmul.bf16.gmra.mxu0 %v94
    %v3083 = vpop.f32.mrf.mxu0
    %v3084 = vadd.f32 %v3015, %v3083
    %v3085 = vpop.f32.mrf.mxu0
    %v3086 = vadd.f32 %v3017, %v3085
    %3087 = vmatmul.bf16.gmra.mxu0 %v99
    %v3088 = vpop.f32.mrf.mxu0
    %v3089 = vadd.f32 %v3020, %v3088
    %v3090 = vpop.f32.mrf.mxu0
    %v3091 = vadd.f32 %v3022, %v3090
    %3092 = vmatmul.bf16.gmra.mxu0 %v104
    %v3093 = vpop.f32.mrf.mxu0
    %v3094 = vadd.f32 %v3025, %v3093
    %v3095 = vpop.f32.mrf.mxu0
    %v3096 = vadd.f32 %v3027, %v3095
    %3097 = vmatmul.bf16.gmra.mxu0 %v96
    %v3098 = vpop.f32.mrf.mxu0
    %v3099 = vadd.f32 %v3030, %v3098
    %v3100 = vpop.f32.mrf.mxu0
    %v3101 = vadd.f32 %v3032, %v3100
    %3102 = vmatmul.bf16.gmra.mxu0 %v101
    %v3103 = vpop.f32.mrf.mxu0
    %v3104 = vadd.f32 %v3035, %v3103
    %v3105 = vpop.f32.mrf.mxu0
    %v3106 = vadd.f32 %v3037, %v3105
    %3107 = vmatmul.bf16.gmra.mxu0 %v106
    %v3108 = vpop.f32.mrf.mxu0
    %v3109 = vadd.f32 %v3040, %v3108
    %v3110 = vpop.f32.mrf.mxu0
    %v3111 = vadd.f32 %v3042, %v3110
    %3112 = vmatmul.bf16.gmra.mxu0 %v95
    %v3113 = vpop.f32.mrf.mxu0
    %v3114 = vadd.f32 %v3045, %v3113
    %v3115 = vpop.f32.mrf.mxu0
    %v3116 = vadd.f32 %v3047, %v3115
    %3117 = vmatmul.bf16.gmra.mxu0 %v100
    %v3118 = vpop.f32.mrf.mxu0
    %v3119 = vadd.f32 %v3050, %v3118
    %v3120 = vpop.f32.mrf.mxu0
    %v3121 = vadd.f32 %v3052, %v3120
    %3122 = vmatmul.bf16.gmra.mxu0 %v105
    %v3123 = vpop.f32.mrf.mxu0
    %v3124 = vadd.f32 %v3055, %v3123
    %v3125 = vpop.f32.mrf.mxu0
    %v3126 = vadd.f32 %v3057, %v3125
    %3127 = vmatmul.bf16.gmra.mxu0 %v107
    %v3128 = vpop.f32.mrf.mxu0
    %v3129 = vadd.f32 %v3060, %v3128
    %v3130 = vpop.f32.mrf.mxu0
    %v3131 = vadd.f32 %v3062, %v3130
    %3132 = vmatmul.bf16.gmra.mxu0 %v109
    %v3133 = vpop.f32.mrf.mxu0
    %v3134 = vadd.f32 %v3065, %v3133
    %v3135 = vpop.f32.mrf.mxu0
    %v3136 = vadd.f32 %v3067, %v3135
    %3137 = vmatmul.bf16.gmra.mxu0 %v111
    %v3138 = vpop.f32.mrf.mxu0
    %v3139 = vadd.f32 %v3070, %v3138
    %v3140 = vpop.f32.mrf.mxu0
    %v3141 = vadd.f32 %v3072, %v3140
    %3142 = vdwg.mxu0
    %3143 = vmatpush.bf16.msra.mxu0 %v1266
    %3144 = vmatpush.bf16.msra.mxu0 %v1260
    %3145 = vmatpush.bf16.msra.mxu0 %v1254
    %3146 = vmatpush.bf16.msra.mxu0 %v1248
    %3147 = vmatpush.bf16.msra.mxu0 %v1242
    %3148 = vmatpush.bf16.msra.mxu0 %v1236
    %3149 = vmatpush.bf16.msra.mxu0 %v1230
    %3150 = vmatpush.bf16.msra.mxu0 %v1224
    %3151 = vmatmul.bf16.gmra.mxu0 %v95
    %v3152 = vpop.f32.mrf.mxu0
    %v3153 = vadd.f32 %v3084, %v3152
    %v3154 = vpop.f32.mrf.mxu0
    %v3155 = vadd.f32 %v3086, %v3154
    %3156 = vmatmul.bf16.gmra.mxu0 %v100
    %v3157 = vpop.f32.mrf.mxu0
    %v3158 = vadd.f32 %v3089, %v3157
    %v3159 = vpop.f32.mrf.mxu0
    %v3160 = vadd.f32 %v3091, %v3159
    %3161 = vmatmul.bf16.gmra.mxu0 %v105
    %v3162 = vpop.f32.mrf.mxu0
    %v3163 = vadd.f32 %v3094, %v3162
    %v3164 = vpop.f32.mrf.mxu0
    %v3165 = vadd.f32 %v3096, %v3164
    %3166 = vmatmul.bf16.gmra.mxu0 %v107
    %v3167 = vpop.f32.mrf.mxu0
    %v3168 = vadd.f32 %v3099, %v3167
    %v3169 = vpop.f32.mrf.mxu0
    %v3170 = vadd.f32 %v3101, %v3169
    %3171 = vmatmul.bf16.gmra.mxu0 %v109
    %v3172 = vpop.f32.mrf.mxu0
    %v3173 = vadd.f32 %v3104, %v3172
    %v3174 = vpop.f32.mrf.mxu0
    %v3175 = vadd.f32 %v3106, %v3174
    %3176 = vmatmul.bf16.gmra.mxu0 %v111
    %v3177 = vpop.f32.mrf.mxu0
    %v3178 = vadd.f32 %v3109, %v3177
    %v3179 = vpop.f32.mrf.mxu0
    %v3180 = vadd.f32 %v3111, %v3179
    %3181 = vmatmul.bf16.gmra.mxu0 %v96
    %v3182 = vpop.f32.mrf.mxu0
    %v3183 = vadd.f32 %v3114, %v3182
    %v3184 = vpop.f32.mrf.mxu0
    %v3185 = vadd.f32 %v3116, %v3184
    %3186 = vmatmul.bf16.gmra.mxu0 %v101
    %v3187 = vpop.f32.mrf.mxu0
    %v3188 = vadd.f32 %v3119, %v3187
    %v3189 = vpop.f32.mrf.mxu0
    %v3190 = vadd.f32 %v3121, %v3189
    %3191 = vmatmul.bf16.gmra.mxu0 %v106
    %v3192 = vpop.f32.mrf.mxu0
    %v3193 = vadd.f32 %v3124, %v3192
    %v3194 = vpop.f32.mrf.mxu0
    %v3195 = vadd.f32 %v3126, %v3194
    %3196 = vmatmul.bf16.gmra.mxu0 %v108
    %v3197 = vpop.f32.mrf.mxu0
    %v3198 = vadd.f32 %v3129, %v3197
    %v3199 = vpop.f32.mrf.mxu0
    %v3200 = vadd.f32 %v3131, %v3199
    %3201 = vmatmul.bf16.gmra.mxu0 %v110
    %v3202 = vpop.f32.mrf.mxu0
    %v3203 = vadd.f32 %v3134, %v3202
    %v3204 = vpop.f32.mrf.mxu0
    %v3205 = vadd.f32 %v3136, %v3204
    %3206 = vmatmul.bf16.gmra.mxu0 %v112
    %v3207 = vpop.f32.mrf.mxu0
    %v3208 = vadd.f32 %v3139, %v3207
    %v3209 = vpop.f32.mrf.mxu0
    %v3210 = vadd.f32 %v3141, %v3209
    %3211 = vdwg.mxu0
    %3212 = vmatpush.bf16.msra.mxu0 %v1314
    %3213 = vmatpush.bf16.msra.mxu0 %v1308
    %3214 = vmatpush.bf16.msra.mxu0 %v1302
    %3215 = vmatpush.bf16.msra.mxu0 %v1296
    %3216 = vmatpush.bf16.msra.mxu0 %v1290
    %3217 = vmatpush.bf16.msra.mxu0 %v1284
    %3218 = vmatpush.bf16.msra.mxu0 %v1278
    %3219 = vmatpush.bf16.msra.mxu0 %v1272
    %3220 = vmatmul.bf16.gmra.mxu0 %v96
    %v3221 = vpop.f32.mrf.mxu0
    %v3222 = vadd.f32 %v3153, %v3221
    %v3223 = vpop.f32.mrf.mxu0
    %v3224 = vadd.f32 %v3155, %v3223
    %3225 = vmatmul.bf16.gmra.mxu0 %v101
    %v3226 = vpop.f32.mrf.mxu0
    %v3227 = vadd.f32 %v3158, %v3226
    %v3228 = vpop.f32.mrf.mxu0
    %v3229 = vadd.f32 %v3160, %v3228
    %3230 = vmatmul.bf16.gmra.mxu0 %v106
    %v3231 = vpop.f32.mrf.mxu0
    %v3232 = vadd.f32 %v3163, %v3231
    %v3233 = vpop.f32.mrf.mxu0
    %v3234 = vadd.f32 %v3165, %v3233
    %3235 = vmatmul.bf16.gmra.mxu0 %v108
    %v3236 = vpop.f32.mrf.mxu0
    %v3237 = vadd.f32 %v3168, %v3236
    %v3238 = vpop.f32.mrf.mxu0
    %v3239 = vadd.f32 %v3170, %v3238
    %3240 = vmatmul.bf16.gmra.mxu0 %v110
    %v3241 = vpop.f32.mrf.mxu0
    %v3242 = vadd.f32 %v3173, %v3241
    %v3243 = vpop.f32.mrf.mxu0
    %v3244 = vadd.f32 %v3175, %v3243
    %3245 = vmatmul.bf16.gmra.mxu0 %v112
    %v3246 = vpop.f32.mrf.mxu0
    %v3247 = vadd.f32 %v3178, %v3246
    %v3248 = vpop.f32.mrf.mxu0
    %v3249 = vadd.f32 %v3180, %v3248
    %3250 = vmatmul.bf16.gmra.mxu0 %v107
    %v3251 = vpop.f32.mrf.mxu0
    %v3252 = vadd.f32 %v3183, %v3251
    %v3253 = vpop.f32.mrf.mxu0
    %v3254 = vadd.f32 %v3185, %v3253
    %3255 = vmatmul.bf16.gmra.mxu0 %v109
    %v3256 = vpop.f32.mrf.mxu0
    %v3257 = vadd.f32 %v3188, %v3256
    %v3258 = vpop.f32.mrf.mxu0
    %v3259 = vadd.f32 %v3190, %v3258
    %3260 = vmatmul.bf16.gmra.mxu0 %v111
    %v3261 = vpop.f32.mrf.mxu0
    %v3262 = vadd.f32 %v3193, %v3261
    %v3263 = vpop.f32.mrf.mxu0
    %v3264 = vadd.f32 %v3195, %v3263
    %3265 = vmatmul.bf16.gmra.mxu0 %v113
    %v3266 = vpop.f32.mrf.mxu0
    %v3267 = vadd.f32 %v3198, %v3266
    %v3268 = vpop.f32.mrf.mxu0
    %v3269 = vadd.f32 %v3200, %v3268
    %3270 = vmatmul.bf16.gmra.mxu0 %v114
    %v3271 = vpop.f32.mrf.mxu0
    %v3272 = vadd.f32 %v3203, %v3271
    %v3273 = vpop.f32.mrf.mxu0
    %v3274 = vadd.f32 %v3205, %v3273
    %3275 = vmatmul.bf16.gmra.mxu0 %v115
    %v3276 = vpop.f32.mrf.mxu0
    %v3277 = vadd.f32 %v3208, %v3276
    %v3278 = vpop.f32.mrf.mxu0
    %v3279 = vadd.f32 %v3210, %v3278
    %3280 = vdwg.mxu0
    %3281 = vmatpush.bf16.msra.mxu0 %v1123
    %3282 = vmatpush.bf16.msra.mxu0 %v1117
    %3283 = vmatpush.bf16.msra.mxu0 %v1111
    %3284 = vmatpush.bf16.msra.mxu0 %v1105
    %3285 = vmatpush.bf16.msra.mxu0 %v1099
    %3286 = vmatpush.bf16.msra.mxu0 %v1093
    %3287 = vmatpush.bf16.msra.mxu0 %v1087
    %3288 = vmatpush.bf16.msra.mxu0 %v1081
    %3289 = vmatmul.bf16.gmra.mxu0 %v92
    %v3290 = vpop.f32.mrf.mxu0
    %v3291 = vadd.f32 0.0, %v3290
    %v3292 = vpop.f32.mrf.mxu0
    %v3293 = vadd.f32 0.0, %v3292
    %3294 = vmatmul.bf16.gmra.mxu0 %v97
    %v3295 = vpop.f32.mrf.mxu0
    %v3296 = vadd.f32 0.0, %v3295
    %v3297 = vpop.f32.mrf.mxu0
    %v3298 = vadd.f32 0.0, %v3297
    %3299 = vmatmul.bf16.gmra.mxu0 %v102
    %v3300 = vpop.f32.mrf.mxu0
    %v3301 = vadd.f32 0.0, %v3300
    %v3302 = vpop.f32.mrf.mxu0
    %v3303 = vadd.f32 0.0, %v3302
    %3304 = vmatmul.bf16.gmra.mxu0 %v94
    %v3305 = vpop.f32.mrf.mxu0
    %v3306 = vadd.f32 0.0, %v3305
    %v3307 = vpop.f32.mrf.mxu0
    %v3308 = vadd.f32 0.0, %v3307
    %3309 = vmatmul.bf16.gmra.mxu0 %v99
    %v3310 = vpop.f32.mrf.mxu0
    %v3311 = vadd.f32 0.0, %v3310
    %v3312 = vpop.f32.mrf.mxu0
    %v3313 = vadd.f32 0.0, %v3312
    %3314 = vmatmul.bf16.gmra.mxu0 %v104
    %v3315 = vpop.f32.mrf.mxu0
    %v3316 = vadd.f32 0.0, %v3315
    %v3317 = vpop.f32.mrf.mxu0
    %v3318 = vadd.f32 0.0, %v3317
    %3319 = vmatmul.bf16.gmra.mxu0 %v93
    %v3320 = vpop.f32.mrf.mxu0
    %v3321 = vadd.f32 0.0, %v3320
    %v3322 = vpop.f32.mrf.mxu0
    %v3323 = vadd.f32 0.0, %v3322
    %3324 = vmatmul.bf16.gmra.mxu0 %v98
    %v3325 = vpop.f32.mrf.mxu0
    %v3326 = vadd.f32 0.0, %v3325
    %v3327 = vpop.f32.mrf.mxu0
    %v3328 = vadd.f32 0.0, %v3327
    %3329 = vmatmul.bf16.gmra.mxu0 %v103
    %v3330 = vpop.f32.mrf.mxu0
    %v3331 = vadd.f32 0.0, %v3330
    %v3332 = vpop.f32.mrf.mxu0
    %v3333 = vadd.f32 0.0, %v3332
    %3334 = vmatmul.bf16.gmra.mxu0 %v95
    %v3335 = vpop.f32.mrf.mxu0
    %v3336 = vadd.f32 0.0, %v3335
    %v3337 = vpop.f32.mrf.mxu0
    %v3338 = vadd.f32 0.0, %v3337
    %3339 = vmatmul.bf16.gmra.mxu0 %v100
    %v3340 = vpop.f32.mrf.mxu0
    %v3341 = vadd.f32 0.0, %v3340
    %v3342 = vpop.f32.mrf.mxu0
    %v3343 = vadd.f32 0.0, %v3342
    %3344 = vmatmul.bf16.gmra.mxu0 %v105
    %v3345 = vpop.f32.mrf.mxu0
    %v3346 = vadd.f32 0.0, %v3345
    %v3347 = vpop.f32.mrf.mxu0
    %v3348 = vadd.f32 0.0, %v3347
    %3349 = vdwg.mxu0
    %3350 = vmatpush.bf16.msra.mxu0 %v1171
    %3351 = vmatpush.bf16.msra.mxu0 %v1165
    %3352 = vmatpush.bf16.msra.mxu0 %v1159
    %3353 = vmatpush.bf16.msra.mxu0 %v1153
    %3354 = vmatpush.bf16.msra.mxu0 %v1147
    %3355 = vmatpush.bf16.msra.mxu0 %v1141
    %3356 = vmatpush.bf16.msra.mxu0 %v1135
    %3357 = vmatpush.bf16.msra.mxu0 %v1129
    %3358 = vmatmul.bf16.gmra.mxu0 %v93
    %v3359 = vpop.f32.mrf.mxu0
    %v3360 = vadd.f32 %v3291, %v3359
    %v3361 = vpop.f32.mrf.mxu0
    %v3362 = vadd.f32 %v3293, %v3361
    %3363 = vmatmul.bf16.gmra.mxu0 %v98
    %v3364 = vpop.f32.mrf.mxu0
    %v3365 = vadd.f32 %v3296, %v3364
    %v3366 = vpop.f32.mrf.mxu0
    %v3367 = vadd.f32 %v3298, %v3366
    %3368 = vmatmul.bf16.gmra.mxu0 %v103
    %v3369 = vpop.f32.mrf.mxu0
    %v3370 = vadd.f32 %v3301, %v3369
    %v3371 = vpop.f32.mrf.mxu0
    %v3372 = vadd.f32 %v3303, %v3371
    %3373 = vmatmul.bf16.gmra.mxu0 %v95
    %v3374 = vpop.f32.mrf.mxu0
    %v3375 = vadd.f32 %v3306, %v3374
    %v3376 = vpop.f32.mrf.mxu0
    %v3377 = vadd.f32 %v3308, %v3376
    %3378 = vmatmul.bf16.gmra.mxu0 %v100
    %v3379 = vpop.f32.mrf.mxu0
    %v3380 = vadd.f32 %v3311, %v3379
    %v3381 = vpop.f32.mrf.mxu0
    %v3382 = vadd.f32 %v3313, %v3381
    %3383 = vmatmul.bf16.gmra.mxu0 %v105
    %v3384 = vpop.f32.mrf.mxu0
    %v3385 = vadd.f32 %v3316, %v3384
    %v3386 = vpop.f32.mrf.mxu0
    %v3387 = vadd.f32 %v3318, %v3386
    %3388 = vmatmul.bf16.gmra.mxu0 %v94
    %v3389 = vpop.f32.mrf.mxu0
    %v3390 = vadd.f32 %v3321, %v3389
    %v3391 = vpop.f32.mrf.mxu0
    %v3392 = vadd.f32 %v3323, %v3391
    %3393 = vmatmul.bf16.gmra.mxu0 %v99
    %v3394 = vpop.f32.mrf.mxu0
    %v3395 = vadd.f32 %v3326, %v3394
    %v3396 = vpop.f32.mrf.mxu0
    %v3397 = vadd.f32 %v3328, %v3396
    %3398 = vmatmul.bf16.gmra.mxu0 %v104
    %v3399 = vpop.f32.mrf.mxu0
    %v3400 = vadd.f32 %v3331, %v3399
    %v3401 = vpop.f32.mrf.mxu0
    %v3402 = vadd.f32 %v3333, %v3401
    %3403 = vmatmul.bf16.gmra.mxu0 %v96
    %v3404 = vpop.f32.mrf.mxu0
    %v3405 = vadd.f32 %v3336, %v3404
    %v3406 = vpop.f32.mrf.mxu0
    %v3407 = vadd.f32 %v3338, %v3406
    %3408 = vmatmul.bf16.gmra.mxu0 %v101
    %v3409 = vpop.f32.mrf.mxu0
    %v3410 = vadd.f32 %v3341, %v3409
    %v3411 = vpop.f32.mrf.mxu0
    %v3412 = vadd.f32 %v3343, %v3411
    %3413 = vmatmul.bf16.gmra.mxu0 %v106
    %v3414 = vpop.f32.mrf.mxu0
    %v3415 = vadd.f32 %v3346, %v3414
    %v3416 = vpop.f32.mrf.mxu0
    %v3417 = vadd.f32 %v3348, %v3416
    %3418 = vdwg.mxu0
    %3419 = vmatpush.bf16.msra.mxu0 %v1219
    %3420 = vmatpush.bf16.msra.mxu0 %v1213
    %3421 = vmatpush.bf16.msra.mxu0 %v1207
    %3422 = vmatpush.bf16.msra.mxu0 %v1201
    %3423 = vmatpush.bf16.msra.mxu0 %v1195
    %3424 = vmatpush.bf16.msra.mxu0 %v1189
    %3425 = vmatpush.bf16.msra.mxu0 %v1183
    %3426 = vmatpush.bf16.msra.mxu0 %v1177
    %3427 = vmatmul.bf16.gmra.mxu0 %v94
    %v3428 = vpop.f32.mrf.mxu0
    %v3429 = vadd.f32 %v3360, %v3428
    %v3430 = vpop.f32.mrf.mxu0
    %v3431 = vadd.f32 %v3362, %v3430
    %3432 = vmatmul.bf16.gmra.mxu0 %v99
    %v3433 = vpop.f32.mrf.mxu0
    %v3434 = vadd.f32 %v3365, %v3433
    %v3435 = vpop.f32.mrf.mxu0
    %v3436 = vadd.f32 %v3367, %v3435
    %3437 = vmatmul.bf16.gmra.mxu0 %v104
    %v3438 = vpop.f32.mrf.mxu0
    %v3439 = vadd.f32 %v3370, %v3438
    %v3440 = vpop.f32.mrf.mxu0
    %v3441 = vadd.f32 %v3372, %v3440
    %3442 = vmatmul.bf16.gmra.mxu0 %v96
    %v3443 = vpop.f32.mrf.mxu0
    %v3444 = vadd.f32 %v3375, %v3443
    %v3445 = vpop.f32.mrf.mxu0
    %v3446 = vadd.f32 %v3377, %v3445
    %3447 = vmatmul.bf16.gmra.mxu0 %v101
    %v3448 = vpop.f32.mrf.mxu0
    %v3449 = vadd.f32 %v3380, %v3448
    %v3450 = vpop.f32.mrf.mxu0
    %v3451 = vadd.f32 %v3382, %v3450
    %3452 = vmatmul.bf16.gmra.mxu0 %v106
    %v3453 = vpop.f32.mrf.mxu0
    %v3454 = vadd.f32 %v3385, %v3453
    %v3455 = vpop.f32.mrf.mxu0
    %v3456 = vadd.f32 %v3387, %v3455
    %3457 = vmatmul.bf16.gmra.mxu0 %v95
    %v3458 = vpop.f32.mrf.mxu0
    %v3459 = vadd.f32 %v3390, %v3458
    %v3460 = vpop.f32.mrf.mxu0
    %v3461 = vadd.f32 %v3392, %v3460
    %3462 = vmatmul.bf16.gmra.mxu0 %v100
    %v3463 = vpop.f32.mrf.mxu0
    %v3464 = vadd.f32 %v3395, %v3463
    %v3465 = vpop.f32.mrf.mxu0
    %v3466 = vadd.f32 %v3397, %v3465
    %3467 = vmatmul.bf16.gmra.mxu0 %v105
    %v3468 = vpop.f32.mrf.mxu0
    %v3469 = vadd.f32 %v3400, %v3468
    %v3470 = vpop.f32.mrf.mxu0
    %v3471 = vadd.f32 %v3402, %v3470
    %3472 = vmatmul.bf16.gmra.mxu0 %v107
    %v3473 = vpop.f32.mrf.mxu0
    %v3474 = vadd.f32 %v3405, %v3473
    %v3475 = vpop.f32.mrf.mxu0
    %v3476 = vadd.f32 %v3407, %v3475
    %3477 = vmatmul.bf16.gmra.mxu0 %v109
    %v3478 = vpop.f32.mrf.mxu0
    %v3479 = vadd.f32 %v3410, %v3478
    %v3480 = vpop.f32.mrf.mxu0
    %v3481 = vadd.f32 %v3412, %v3480
    %3482 = vmatmul.bf16.gmra.mxu0 %v111
    %v3483 = vpop.f32.mrf.mxu0
    %v3484 = vadd.f32 %v3415, %v3483
    %v3485 = vpop.f32.mrf.mxu0
    %v3486 = vadd.f32 %v3417, %v3485
    %3487 = vdwg.mxu0
    %3488 = vmatpush.bf16.msra.mxu0 %v1267
    %3489 = vmatpush.bf16.msra.mxu0 %v1261
    %3490 = vmatpush.bf16.msra.mxu0 %v1255
    %3491 = vmatpush.bf16.msra.mxu0 %v1249
    %3492 = vmatpush.bf16.msra.mxu0 %v1243
    %3493 = vmatpush.bf16.msra.mxu0 %v1237
    %3494 = vmatpush.bf16.msra.mxu0 %v1231
    %3495 = vmatpush.bf16.msra.mxu0 %v1225
    %3496 = vmatmul.bf16.gmra.mxu0 %v95
    %v3497 = vpop.f32.mrf.mxu0
    %v3498 = vadd.f32 %v3429, %v3497
    %v3499 = vpop.f32.mrf.mxu0
    %v3500 = vadd.f32 %v3431, %v3499
    %3501 = vmatmul.bf16.gmra.mxu0 %v100
    %v3502 = vpop.f32.mrf.mxu0
    %v3503 = vadd.f32 %v3434, %v3502
    %v3504 = vpop.f32.mrf.mxu0
    %v3505 = vadd.f32 %v3436, %v3504
    %3506 = vmatmul.bf16.gmra.mxu0 %v105
    %v3507 = vpop.f32.mrf.mxu0
    %v3508 = vadd.f32 %v3439, %v3507
    %v3509 = vpop.f32.mrf.mxu0
    %v3510 = vadd.f32 %v3441, %v3509
    %3511 = vmatmul.bf16.gmra.mxu0 %v107
    %v3512 = vpop.f32.mrf.mxu0
    %v3513 = vadd.f32 %v3444, %v3512
    %v3514 = vpop.f32.mrf.mxu0
    %v3515 = vadd.f32 %v3446, %v3514
    %3516 = vmatmul.bf16.gmra.mxu0 %v109
    %v3517 = vpop.f32.mrf.mxu0
    %v3518 = vadd.f32 %v3449, %v3517
    %v3519 = vpop.f32.mrf.mxu0
    %v3520 = vadd.f32 %v3451, %v3519
    %3521 = vmatmul.bf16.gmra.mxu0 %v111
    %v3522 = vpop.f32.mrf.mxu0
    %v3523 = vadd.f32 %v3454, %v3522
    %v3524 = vpop.f32.mrf.mxu0
    %v3525 = vadd.f32 %v3456, %v3524
    %3526 = vmatmul.bf16.gmra.mxu0 %v96
    %v3527 = vpop.f32.mrf.mxu0
    %v3528 = vadd.f32 %v3459, %v3527
    %v3529 = vpop.f32.mrf.mxu0
    %v3530 = vadd.f32 %v3461, %v3529
    %3531 = vmatmul.bf16.gmra.mxu0 %v101
    %v3532 = vpop.f32.mrf.mxu0
    %v3533 = vadd.f32 %v3464, %v3532
    %v3534 = vpop.f32.mrf.mxu0
    %v3535 = vadd.f32 %v3466, %v3534
    %3536 = vmatmul.bf16.gmra.mxu0 %v106
    %v3537 = vpop.f32.mrf.mxu0
    %v3538 = vadd.f32 %v3469, %v3537
    %v3539 = vpop.f32.mrf.mxu0
    %v3540 = vadd.f32 %v3471, %v3539
    %3541 = vmatmul.bf16.gmra.mxu0 %v108
    %v3542 = vpop.f32.mrf.mxu0
    %v3543 = vadd.f32 %v3474, %v3542
    %v3544 = vpop.f32.mrf.mxu0
    %v3545 = vadd.f32 %v3476, %v3544
    %3546 = vmatmul.bf16.gmra.mxu0 %v110
    %v3547 = vpop.f32.mrf.mxu0
    %v3548 = vadd.f32 %v3479, %v3547
    %v3549 = vpop.f32.mrf.mxu0
    %v3550 = vadd.f32 %v3481, %v3549
    %3551 = vmatmul.bf16.gmra.mxu0 %v112
    %v3552 = vpop.f32.mrf.mxu0
    %v3553 = vadd.f32 %v3484, %v3552
    %v3554 = vpop.f32.mrf.mxu0
    %v3555 = vadd.f32 %v3486, %v3554
    %3556 = vdwg.mxu0
    %3557 = vmatpush.bf16.msra.mxu0 %v1315
    %3558 = vmatpush.bf16.msra.mxu0 %v1309
    %3559 = vmatpush.bf16.msra.mxu0 %v1303
    %3560 = vmatpush.bf16.msra.mxu0 %v1297
    %3561 = vmatpush.bf16.msra.mxu0 %v1291
    %3562 = vmatpush.bf16.msra.mxu0 %v1285
    %3563 = vmatpush.bf16.msra.mxu0 %v1279
    %3564 = vmatpush.bf16.msra.mxu0 %v1273
    %3565 = vmatmul.bf16.gmra.mxu0 %v96
    %v3566 = vpop.f32.mrf.mxu0
    %v3567 = vadd.f32 %v3498, %v3566
    %v3568 = vpop.f32.mrf.mxu0
    %v3569 = vadd.f32 %v3500, %v3568
    %3570 = vmatmul.bf16.gmra.mxu0 %v101
    %v3571 = vpop.f32.mrf.mxu0
    %v3572 = vadd.f32 %v3503, %v3571
    %v3573 = vpop.f32.mrf.mxu0
    %v3574 = vadd.f32 %v3505, %v3573
    %3575 = vmatmul.bf16.gmra.mxu0 %v106
    %v3576 = vpop.f32.mrf.mxu0
    %v3577 = vadd.f32 %v3508, %v3576
    %v3578 = vpop.f32.mrf.mxu0
    %v3579 = vadd.f32 %v3510, %v3578
    %3580 = vmatmul.bf16.gmra.mxu0 %v108
    %v3581 = vpop.f32.mrf.mxu0
    %v3582 = vadd.f32 %v3513, %v3581
    %v3583 = vpop.f32.mrf.mxu0
    %v3584 = vadd.f32 %v3515, %v3583
    %3585 = vmatmul.bf16.gmra.mxu0 %v110
    %v3586 = vpop.f32.mrf.mxu0
    %v3587 = vadd.f32 %v3518, %v3586
    %v3588 = vpop.f32.mrf.mxu0
    %v3589 = vadd.f32 %v3520, %v3588
    %3590 = vmatmul.bf16.gmra.mxu0 %v112
    %v3591 = vpop.f32.mrf.mxu0
    %v3592 = vadd.f32 %v3523, %v3591
    %v3593 = vpop.f32.mrf.mxu0
    %v3594 = vadd.f32 %v3525, %v3593
    %3595 = vmatmul.bf16.gmra.mxu0 %v107
    %v3596 = vpop.f32.mrf.mxu0
    %v3597 = vadd.f32 %v3528, %v3596
    %v3598 = vpop.f32.mrf.mxu0
    %v3599 = vadd.f32 %v3530, %v3598
    %3600 = vmatmul.bf16.gmra.mxu0 %v109
    %v3601 = vpop.f32.mrf.mxu0
    %v3602 = vadd.f32 %v3533, %v3601
    %v3603 = vpop.f32.mrf.mxu0
    %v3604 = vadd.f32 %v3535, %v3603
    %3605 = vmatmul.bf16.gmra.mxu0 %v111
    %v3606 = vpop.f32.mrf.mxu0
    %v3607 = vadd.f32 %v3538, %v3606
    %v3608 = vpop.f32.mrf.mxu0
    %v3609 = vadd.f32 %v3540, %v3608
    %3610 = vmatmul.bf16.gmra.mxu0 %v113
    %v3611 = vpop.f32.mrf.mxu0
    %v3612 = vadd.f32 %v3543, %v3611
    %v3613 = vpop.f32.mrf.mxu0
    %v3614 = vadd.f32 %v3545, %v3613
    %3615 = vmatmul.bf16.gmra.mxu0 %v114
    %v3616 = vpop.f32.mrf.mxu0
    %v3617 = vadd.f32 %v3548, %v3616
    %v3618 = vpop.f32.mrf.mxu0
    %v3619 = vadd.f32 %v3550, %v3618
    %3620 = vmatmul.bf16.gmra.mxu0 %v115
    %v3621 = vpop.f32.mrf.mxu0
    %v3622 = vadd.f32 %v3553, %v3621
    %v3623 = vpop.f32.mrf.mxu0
    %v3624 = vadd.f32 %v3555, %v3623
    %3625 = vdwg.mxu0
    %v3626 = vmax.f32 %v1842, %v1872
    %v3627 = vmax.f32 %v2187, %v2217
    %v3628 = vmax.f32 %v2532, %v2562
    %v3629 = vmax.f32 %v2877, %v2907
    %v3630 = vmax.f32 %v3222, %v3252
    %v3631 = vmax.f32 %v3567, %v3597
    %v3632 = vmax.f32 %v1844, %v1874
    %v3633 = vmax.f32 %v2189, %v2219
    %v3634 = vmax.f32 %v2534, %v2564
    %v3635 = vmax.f32 %v2879, %v2909
    %v3636 = vmax.f32 %v3224, %v3254
    %v3637 = vmax.f32 %v3569, %v3599
    %v3638 = vmax.f32 %v1847, %v1877
    %v3639 = vmax.f32 %v2192, %v2222
    %v3640 = vmax.f32 %v2537, %v2567
    %v3641 = vmax.f32 %v2882, %v2912
    %v3642 = vmax.f32 %v3227, %v3257
    %v3643 = vmax.f32 %v3572, %v3602
    %v3644 = vmax.f32 %v1849, %v1879
    %v3645 = vmax.f32 %v2194, %v2224
    %v3646 = vmax.f32 %v2539, %v2569
    %v3647 = vmax.f32 %v2884, %v2914
    %v3648 = vmax.f32 %v3229, %v3259
    %v3649 = vmax.f32 %v3574, %v3604
    %v3650 = vmax.f32 %v1852, %v1882
    %v3651 = vmax.f32 %v2197, %v2227
    %v3652 = vmax.f32 %v2542, %v2572
    %v3653 = vmax.f32 %v2887, %v2917
    %v3654 = vmax.f32 %v3232, %v3262
    %v3655 = vmax.f32 %v3577, %v3607
    %v3656 = vmax.f32 %v1854, %v1884
    %v3657 = vmax.f32 %v2199, %v2229
    %v3658 = vmax.f32 %v2544, %v2574
    %v3659 = vmax.f32 %v2889, %v2919
    %v3660 = vmax.f32 %v3234, %v3264
    %v3661 = vmax.f32 %v3579, %v3609
    %v3662 = vmax.f32 %v1857, %v1887
    %v3663 = vmax.f32 %v2202, %v2232
    %v3664 = vmax.f32 %v2547, %v2577
    %v3665 = vmax.f32 %v2892, %v2922
    %v3666 = vmax.f32 %v3237, %v3267
    %v3667 = vmax.f32 %v3582, %v3612
    %v3668 = vmax.f32 %v1859, %v1889
    %v3669 = vmax.f32 %v2204, %v2234
    %v3670 = vmax.f32 %v2549, %v2579
    %v3671 = vmax.f32 %v2894, %v2924
    %v3672 = vmax.f32 %v3239, %v3269
    %v3673 = vmax.f32 %v3584, %v3614
    %v3674 = vmax.f32 %v1862, %v1892
    %v3675 = vmax.f32 %v2207, %v2237
    %v3676 = vmax.f32 %v2552, %v2582
    %v3677 = vmax.f32 %v2897, %v2927
    %v3678 = vmax.f32 %v3242, %v3272
    %v3679 = vmax.f32 %v3587, %v3617
    %v3680 = vmax.f32 %v1864, %v1894
    %v3681 = vmax.f32 %v2209, %v2239
    %v3682 = vmax.f32 %v2554, %v2584
    %v3683 = vmax.f32 %v2899, %v2929
    %v3684 = vmax.f32 %v3244, %v3274
    %v3685 = vmax.f32 %v3589, %v3619
    %v3686 = vmax.f32 %v1867, %v1897
    %v3687 = vmax.f32 %v2212, %v2242
    %v3688 = vmax.f32 %v2557, %v2587
    %v3689 = vmax.f32 %v2902, %v2932
    %v3690 = vmax.f32 %v3247, %v3277
    %v3691 = vmax.f32 %v3592, %v3622
    %v3692 = vmax.f32 %v1869, %v1899
    %v3693 = vmax.f32 %v2214, %v2244
    %v3694 = vmax.f32 %v2559, %v2589
    %v3695 = vmax.f32 %v2904, %v2934
    %v3696 = vmax.f32 %v3249, %v3279
    %v3697 = vmax.f32 %v3594, %v3624
    %v3698 = vmax.f32 %v3626, %v3629
    %v3699 = vmax.f32 %v3627, %v3630
    %v3700 = vmax.f32 %v3628, %v3631
    %v3701 = vmax.f32 %v3632, %v3635
    %v3702 = vmax.f32 %v3633, %v3636
    %v3703 = vmax.f32 %v3634, %v3637
    %v3704 = vmax.f32 %v3638, %v3641
    %v3705 = vmax.f32 %v3639, %v3642
    %v3706 = vmax.f32 %v3640, %v3643
    %v3707 = vmax.f32 %v3644, %v3647
    %v3708 = vmax.f32 %v3645, %v3648
    %v3709 = vmax.f32 %v3646, %v3649
    %v3710 = vmax.f32 %v3650, %v3653
    %v3711 = vmax.f32 %v3651, %v3654
    %v3712 = vmax.f32 %v3652, %v3655
    %v3713 = vmax.f32 %v3656, %v3659
    %v3714 = vmax.f32 %v3657, %v3660
    %v3715 = vmax.f32 %v3658, %v3661
    %v3716 = vmax.f32 %v3662, %v3665
    %v3717 = vmax.f32 %v3663, %v3666
    %v3718 = vmax.f32 %v3664, %v3667
    %v3719 = vmax.f32 %v3668, %v3671
    %v3720 = vmax.f32 %v3669, %v3672
    %v3721 = vmax.f32 %v3670, %v3673
    %v3722 = vmax.f32 %v3674, %v3677
    %v3723 = vmax.f32 %v3675, %v3678
    %v3724 = vmax.f32 %v3676, %v3679
    %v3725 = vmax.f32 %v3680, %v3683
    %v3726 = vmax.f32 %v3681, %v3684
    %v3727 = vmax.f32 %v3682, %v3685
    %v3728 = vmax.f32 %v3686, %v3689
    %v3729 = vmax.f32 %v3687, %v3690
    %v3730 = vmax.f32 %v3688, %v3691
    %v3731 = vmax.f32 %v3692, %v3695
    %v3732 = vmax.f32 %v3693, %v3696
    %v3733 = vmax.f32 %v3694, %v3697
    %v3734 = vld [vmem:[%s2] sm:$0x7]
    %v3736 = vperm.slane %v3734, 0
    %v3737 = vperm.slane %v3734, 1
    %v3738 = vperm.slane %v3734, 2
    %v3742 = vadd.f32 %v3698, %v3736
    %v3743 = vadd.f32 %v3699, %v3737
    %v3744 = vadd.f32 %v3700, %v3738
    %v3745 = vadd.f32 %v3701, %v3736
    %v3746 = vadd.f32 %v3702, %v3737
    %v3747 = vadd.f32 %v3703, %v3738
    %v3748 = vadd.f32 %v3704, %v3736
    %v3749 = vadd.f32 %v3705, %v3737
    %v3750 = vadd.f32 %v3706, %v3738
    %v3751 = vadd.f32 %v3707, %v3736
    %v3752 = vadd.f32 %v3708, %v3737
    %v3753 = vadd.f32 %v3709, %v3738
    %v3754 = vadd.f32 %v3710, %v3736
    %v3755 = vadd.f32 %v3711, %v3737
    %v3756 = vadd.f32 %v3712, %v3738
    %v3757 = vadd.f32 %v3713, %v3736
    %v3758 = vadd.f32 %v3714, %v3737
    %v3759 = vadd.f32 %v3715, %v3738
    %v3760 = vadd.f32 %v3716, %v3736
    %v3761 = vadd.f32 %v3717, %v3737
    %v3762 = vadd.f32 %v3718, %v3738
    %v3763 = vadd.f32 %v3719, %v3736
    %v3764 = vadd.f32 %v3720, %v3737
    %v3765 = vadd.f32 %v3721, %v3738
    %v3766 = vadd.f32 %v3722, %v3736
    %v3767 = vadd.f32 %v3723, %v3737
    %v3768 = vadd.f32 %v3724, %v3738
    %v3769 = vadd.f32 %v3725, %v3736
    %v3770 = vadd.f32 %v3726, %v3737
    %v3771 = vadd.f32 %v3727, %v3738
    %v3772 = vadd.f32 %v3728, %v3736
    %v3773 = vadd.f32 %v3729, %v3737
    %v3774 = vadd.f32 %v3730, %v3738
    %v3775 = vadd.f32 %v3731, %v3736
    %v3776 = vadd.f32 %v3732, %v3737
    %v3777 = vadd.f32 %v3733, %v3738
    %v3778 = vmax.f32 %v3742, 0.0
    %v3779 = vmax.f32 %v3743, 0.0
    %v3780 = vmax.f32 %v3744, 0.0
    %v3781 = vmax.f32 %v3745, 0.0
    %v3782 = vmax.f32 %v3746, 0.0
    %v3783 = vmax.f32 %v3747, 0.0
    %v3784 = vmax.f32 %v3748, 0.0
    %v3785 = vmax.f32 %v3749, 0.0
    %v3786 = vmax.f32 %v3750, 0.0
    %v3787 = vmax.f32 %v3751, 0.0
    %v3788 = vmax.f32 %v3752, 0.0
    %v3789 = vmax.f32 %v3753, 0.0
    %v3790 = vmax.f32 %v3754, 0.0
    %v3791 = vmax.f32 %v3755, 0.0
    %v3792 = vmax.f32 %v3756, 0.0
    %v3793 = vmax.f32 %v3757, 0.0
    %v3794 = vmax.f32 %v3758, 0.0
    %v3795 = vmax.f32 %v3759, 0.0
    %v3796 = vmax.f32 %v3760, 0.0
    %v3797 = vmax.f32 %v3761, 0.0
    %v3798 = vmax.f32 %v3762, 0.0
    %v3799 = vmax.f32 %v3763, 0.0
    %v3800 = vmax.f32 %v3764, 0.0
    %v3801 = vmax.f32 %v3765, 0.0
    %v3802 = vmax.f32 %v3766, 0.0
    %v3803 = vmax.f32 %v3767, 0.0
    %v3804 = vmax.f32 %v3768, 0.0
    %v3805 = vmax.f32 %v3769, 0.0
    %v3806 = vmax.f32 %v3770, 0.0
    %v3807 = vmax.f32 %v3771, 0.0
    %v3808 = vmax.f32 %v3772, 0.0
    %v3809 = vmax.f32 %v3773, 0.0
    %v3810 = vmax.f32 %v3774, 0.0
    %v3811 = vmax.f32 %v3775, 0.0
    %v3812 = vmax.f32 %v3776, 0.0
    %v3813 = vmax.f32 %v3777, 0.0
    %v3814 = vpack.c.bf16 %v3781, %v3778
    %v3815 = vpack.c.bf16 %v3782, %v3779
    %v3816 = vpack.c.bf16 %v3783, %v3780
    %v3817 = vpack.c.bf16 %v3799, %v3796
    %v3818 = vpack.c.bf16 %v3800, %v3797
    %v3819 = vpack.c.bf16 %v3801, %v3798
    %v3820 = vpack.c.bf16 %v3784, %v3781
    %v3821 = vpack.c.bf16 %v3785, %v3782
    %v3822 = vpack.c.bf16 %v3786, %v3783
    %v3823 = vpack.c.bf16 %v3802, %v3799
    %v3824 = vpack.c.bf16 %v3803, %v3800
    %v3825 = vpack.c.bf16 %v3804, %v3801
    %v3826 = vpack.c.bf16 %v3787, %v3784
    %v3827 = vpack.c.bf16 %v3788, %v3785
    %v3828 = vpack.c.bf16 %v3789, %v3786
    %v3829 = vpack.c.bf16 %v3805, %v3802
    %v3830 = vpack.c.bf16 %v3806, %v3803
    %v3831 = vpack.c.bf16 %v3807, %v3804
    %v3832 = vpack.c.bf16 %v3790, %v3787
    %v3833 = vpack.c.bf16 %v3791, %v3788
    %v3834 = vpack.c.bf16 %v3792, %v3789
    %v3835 = vpack.c.bf16 %v3808, %v3805
    %v3836 = vpack.c.bf16 %v3809, %v3806
    %v3837 = vpack.c.bf16 %v3810, %v3807
    %v3838 = vpack.c.bf16 %v3793, %v3790
    %v3839 = vpack.c.bf16 %v3794, %v3791
    %v3840 = vpack.c.bf16 %v3795, %v3792
    %v3841 = vpack.c.bf16 %v3811, %v3808
    %v3842 = vpack.c.bf16 %v3812, %v3809
    %v3843 = vpack.c.bf16 %v3813, %v3810
    %v3844 = vld [vmem:[#allocation4] sm:$0xff]
    %v3845 = vld [vmem:[#allocation4 + $0x8] sm:$0xff]
    %v3846 = vld [vmem:[#allocation4 + $0x10] sm:$0xff]
    %v3847 = vld [vmem:[#allocation4 + $0x18] sm:$0xff]
    %v3848 = vld [vmem:[#allocation4 + $0x20] sm:$0xff]
    %v3849 = vld [vmem:[#allocation4 + $0x28] sm:$0xff]
    %v3850 = vld [vmem:[#allocation4 + $0x30] sm:$0xff]
    %v3851 = vld [vmem:[#allocation4 + $0x38] sm:$0xff]
    %v3852 = vld [vmem:[#allocation4 + $0x40] sm:$0xff]
    %v3853 = vld [vmem:[#allocation4 + $0x48] sm:$0xff]
    %v3854 = vld [vmem:[#allocation4 + $0x50] sm:$0xff]
    %v3855 = vld [vmem:[#allocation4 + $0x58] sm:$0xff]
    %v3856 = vld [vmem:[#allocation4 + $0x60] sm:$0xff]
    %v3857 = vld [vmem:[#allocation4 + $0x68] sm:$0xff]
    %v3858 = vld [vmem:[#allocation4 + $0x70] sm:$0xff]
    %v3859 = vld [vmem:[#allocation4 + $0x78] sm:$0xff]
    %v3860 = vld [vmem:[#allocation4 + $0x80] sm:$0xff]
    %v3861 = vld [vmem:[#allocation4 + $0x88] sm:$0xff]
    %v3862 = vld [vmem:[#allocation4 + $0x90] sm:$0xff]
    %v3863 = vld [vmem:[#allocation4 + $0x98] sm:$0xff]
    %v3864 = vld [vmem:[#allocation4 + $0xa0] sm:$0xff]
    %v3865 = vld [vmem:[#allocation4 + $0xa8] sm:$0xff]
    %v3866 = vld [vmem:[#allocation4 + $0xb0] sm:$0xff]
    %v3867 = vld [vmem:[#allocation4 + $0xb8] sm:$0xff]
    %v3868 = vld [vmem:[#allocation4 + $0xc0] sm:$0xff]
    %v3869 = vld [vmem:[#allocation4 + $0xc8] sm:$0xff]
    %v3870 = vld [vmem:[#allocation4 + $0xd0] sm:$0xff]
    %v3871 = vld [vmem:[#allocation4 + $0xd8] sm:$0xff]
    %v3872 = vld [vmem:[#allocation4 + $0xe0] sm:$0xff]
    %v3873 = vld [vmem:[#allocation4 + $0xe8] sm:$0xff]
    %v3874 = vld [vmem:[#allocation4 + $0xf0] sm:$0xff]
    %v3875 = vld [vmem:[#allocation4 + $0xf8] sm:$0xff]
    %v3876 = vld [vmem:[#allocation4 + $0x100] sm:$0xff]
    %v3877 = vld [vmem:[#allocation4 + $0x108] sm:$0xff]
    %v3878 = vld [vmem:[#allocation4 + $0x110] sm:$0xff]
    %v3879 = vld [vmem:[#allocation4 + $0x118] sm:$0xff]
    %v3880 = vld [vmem:[#allocation4 + $0x120] sm:$0xff]
    %v3881 = vld [vmem:[#allocation4 + $0x128] sm:$0xff]
    %v3882 = vld [vmem:[#allocation4 + $0x130] sm:$0xff]
    %v3883 = vld [vmem:[#allocation4 + $0x138] sm:$0xff]
    %v3884 = vld [vmem:[#allocation4 + $0x140] sm:$0xff]
    %v3885 = vld [vmem:[#allocation4 + $0x148] sm:$0xff]
    %v3886 = vld [vmem:[#allocation4 + $0x150] sm:$0xff]
    %v3887 = vld [vmem:[#allocation4 + $0x158] sm:$0xff]
    %v3888 = vld [vmem:[#allocation4 + $0x160] sm:$0xff]
    %v3889 = vld [vmem:[#allocation4 + $0x168] sm:$0xff]
    %v3890 = vld [vmem:[#allocation4 + $0x170] sm:$0xff]
    %v3891 = vld [vmem:[#allocation4 + $0x178] sm:$0xff]
    %v3892 = vld [vmem:[#allocation4 + $0x180] sm:$0xff]
    %v3893 = vld [vmem:[#allocation4 + $0x188] sm:$0xff]
    %v3894 = vld [vmem:[#allocation4 + $0x190] sm:$0xff]
    %v3895 = vld [vmem:[#allocation4 + $0x198] sm:$0xff]
    %v3896 = vld [vmem:[#allocation4 + $0x1a0] sm:$0xff]
    %v3897 = vld [vmem:[#allocation4 + $0x1a8] sm:$0xff]
    %v3898 = vld [vmem:[#allocation4 + $0x1b0] sm:$0xff]
    %v3899 = vld [vmem:[#allocation4 + $0x1b8] sm:$0xff]
    %v3900 = vld [vmem:[#allocation4 + $0x1c0] sm:$0xff]
    %v3901 = vld [vmem:[#allocation4 + $0x1c8] sm:$0xff]
    %v3902 = vld [vmem:[#allocation4 + $0x1d0] sm:$0xff]
    %v3903 = vld [vmem:[#allocation4 + $0x1d8] sm:$0xff]
    %v3904 = vld [vmem:[#allocation4 + $0x1e0] sm:$0xff]
    %v3905 = vld [vmem:[#allocation4 + $0x1e8] sm:$0xff]
    %v3906 = vld [vmem:[#allocation4 + $0x1f0] sm:$0xff]
    %v3907 = vld [vmem:[#allocation4 + $0x1f8] sm:$0xff]
    %v3908 = vld [vmem:[#allocation4 + $0x200] sm:$0xff]
    %v3909 = vld [vmem:[#allocation4 + $0x208] sm:$0xff]
    %v3910 = vld [vmem:[#allocation4 + $0x210] sm:$0xff]
    %v3911 = vld [vmem:[#allocation4 + $0x218] sm:$0xff]
    %v3912 = vld [vmem:[#allocation4 + $0x220] sm:$0xff]
    %v3913 = vld [vmem:[#allocation4 + $0x228] sm:$0xff]
    %v3914 = vld [vmem:[#allocation4 + $0x230] sm:$0xff]
    %v3915 = vld [vmem:[#allocation4 + $0x238] sm:$0xff]
    %v3916 = vld [vmem:[#allocation4 + $0x240] sm:$0xff]
    %v3917 = vld [vmem:[#allocation4 + $0x248] sm:$0xff]
    %v3918 = vld [vmem:[#allocation4 + $0x250] sm:$0xff]
    %v3919 = vld [vmem:[#allocation4 + $0x258] sm:$0xff]
    %v3920 = vld [vmem:[#allocation4 + $0x260] sm:$0xff]
    %v3921 = vld [vmem:[#allocation4 + $0x268] sm:$0xff]
    %v3922 = vld [vmem:[#allocation4 + $0x270] sm:$0xff]
    %v3923 = vld [vmem:[#allocation4 + $0x278] sm:$0xff]
    %v3924 = vld [vmem:[#allocation4 + $0x280] sm:$0xff]
    %v3925 = vld [vmem:[#allocation4 + $0x288] sm:$0xff]
    %v3926 = vld [vmem:[#allocation4 + $0x290] sm:$0xff]
    %v3927 = vld [vmem:[#allocation4 + $0x298] sm:$0xff]
    %v3928 = vld [vmem:[#allocation4 + $0x2a0] sm:$0xff]
    %v3929 = vld [vmem:[#allocation4 + $0x2a8] sm:$0xff]
    %v3930 = vld [vmem:[#allocation4 + $0x2b0] sm:$0xff]
    %v3931 = vld [vmem:[#allocation4 + $0x2b8] sm:$0xff]
    %v3932 = vld [vmem:[#allocation4 + $0x2c0] sm:$0xff]
    %v3933 = vld [vmem:[#allocation4 + $0x2c8] sm:$0xff]
    %v3934 = vld [vmem:[#allocation4 + $0x2d0] sm:$0xff]
    %v3935 = vld [vmem:[#allocation4 + $0x2d8] sm:$0xff]
    %v3936 = vld [vmem:[#allocation4 + $0x2e0] sm:$0xff]
    %v3937 = vld [vmem:[#allocation4 + $0x2e8] sm:$0xff]
    %v3938 = vld [vmem:[#allocation4 + $0x2f0] sm:$0xff]
    %v3939 = vld [vmem:[#allocation4 + $0x2f8] sm:$0xff]
    %v3940 = vld [vmem:[#allocation4 + $0x300] sm:$0xff]
    %v3941 = vld [vmem:[#allocation4 + $0x308] sm:$0xff]
    %v3942 = vld [vmem:[#allocation4 + $0x310] sm:$0xff]
    %v3943 = vld [vmem:[#allocation4 + $0x318] sm:$0xff]
    %v3944 = vld [vmem:[#allocation4 + $0x320] sm:$0xff]
    %v3945 = vld [vmem:[#allocation4 + $0x328] sm:$0xff]
    %v3946 = vld [vmem:[#allocation4 + $0x330] sm:$0xff]
    %v3947 = vld [vmem:[#allocation4 + $0x338] sm:$0xff]
    %v3948 = vld [vmem:[#allocation4 + $0x340] sm:$0xff]
    %v3949 = vld [vmem:[#allocation4 + $0x348] sm:$0xff]
    %v3950 = vld [vmem:[#allocation4 + $0x350] sm:$0xff]
    %v3951 = vld [vmem:[#allocation4 + $0x358] sm:$0xff]
    %v3952 = vld [vmem:[#allocation4 + $0x360] sm:$0xff]
    %v3953 = vld [vmem:[#allocation4 + $0x368] sm:$0xff]
    %v3954 = vld [vmem:[#allocation4 + $0x370] sm:$0xff]
    %v3955 = vld [vmem:[#allocation4 + $0x378] sm:$0xff]
    %v3956 = vld [vmem:[#allocation4 + $0x380] sm:$0xff]
    %v3957 = vld [vmem:[#allocation4 + $0x388] sm:$0xff]
    %v3958 = vld [vmem:[#allocation4 + $0x390] sm:$0xff]
    %v3959 = vld [vmem:[#allocation4 + $0x398] sm:$0xff]
    %v3960 = vld [vmem:[#allocation4 + $0x3a0] sm:$0xff]
    %v3961 = vld [vmem:[#allocation4 + $0x3a8] sm:$0xff]
    %v3962 = vld [vmem:[#allocation4 + $0x3b0] sm:$0xff]
    %v3963 = vld [vmem:[#allocation4 + $0x3b8] sm:$0xff]
    %v3964 = vld [vmem:[#allocation4 + $0x3c0] sm:$0xff]
    %v3965 = vld [vmem:[#allocation4 + $0x3c8] sm:$0xff]
    %v3966 = vld [vmem:[#allocation4 + $0x3d0] sm:$0xff]
    %v3967 = vld [vmem:[#allocation4 + $0x3d8] sm:$0xff]
    %v3968 = vld [vmem:[#allocation4 + $0x3e0] sm:$0xff]
    %v3969 = vld [vmem:[#allocation4 + $0x3e8] sm:$0xff]
    %v3970 = vld [vmem:[#allocation4 + $0x3f0] sm:$0xff]
    %v3971 = vld [vmem:[#allocation4 + $0x3f8] sm:$0xff]
    %v3972 = vld [vmem:[#allocation4 + $0x400] sm:$0xff]
    %v3973 = vld [vmem:[#allocation4 + $0x408] sm:$0xff]
    %v3974 = vld [vmem:[#allocation4 + $0x410] sm:$0xff]
    %v3975 = vld [vmem:[#allocation4 + $0x418] sm:$0xff]
    %v3976 = vld [vmem:[#allocation4 + $0x420] sm:$0xff]
    %v3977 = vld [vmem:[#allocation4 + $0x428] sm:$0xff]
    %v3978 = vld [vmem:[#allocation4 + $0x430] sm:$0xff]
    %v3979 = vld [vmem:[#allocation4 + $0x438] sm:$0xff]
    %v3980 = vld [vmem:[#allocation4 + $0x440] sm:$0xff]
    %v3981 = vld [vmem:[#allocation4 + $0x448] sm:$0xff]
    %v3982 = vld [vmem:[#allocation4 + $0x450] sm:$0xff]
    %v3983 = vld [vmem:[#allocation4 + $0x458] sm:$0xff]
    %v3984 = vld [vmem:[#allocation4 + $0x460] sm:$0xff]
    %v3985 = vld [vmem:[#allocation4 + $0x468] sm:$0xff]
    %v3986 = vld [vmem:[#allocation4 + $0x470] sm:$0xff]
    %v3987 = vld [vmem:[#allocation4 + $0x478] sm:$0xff]
    %v3988 = vld [vmem:[#allocation4 + $0x480] sm:$0xff]
    %v3989 = vld [vmem:[#allocation4 + $0x488] sm:$0xff]
    %v3990 = vld [vmem:[#allocation4 + $0x490] sm:$0xff]
    %v3991 = vld [vmem:[#allocation4 + $0x498] sm:$0xff]
    %v3992 = vld [vmem:[#allocation4 + $0x4a0] sm:$0xff]
    %v3993 = vld [vmem:[#allocation4 + $0x4a8] sm:$0xff]
    %v3994 = vld [vmem:[#allocation4 + $0x4b0] sm:$0xff]
    %v3995 = vld [vmem:[#allocation4 + $0x4b8] sm:$0xff]
    %v3996 = vld [vmem:[#allocation4 + $0x4c0] sm:$0xff]
    %v3997 = vld [vmem:[#allocation4 + $0x4c8] sm:$0xff]
    %v3998 = vld [vmem:[#allocation4 + $0x4d0] sm:$0xff]
    %v3999 = vld [vmem:[#allocation4 + $0x4d8] sm:$0xff]
    %v4000 = vld [vmem:[#allocation4 + $0x4e0] sm:$0xff]
    %v4001 = vld [vmem:[#allocation4 + $0x4e8] sm:$0xff]
    %v4002 = vld [vmem:[#allocation4 + $0x4f0] sm:$0xff]
    %v4003 = vld [vmem:[#allocation4 + $0x4f8] sm:$0xff]
    %v4004 = vld [vmem:[#allocation4 + $0x500] sm:$0xff]
    %v4005 = vld [vmem:[#allocation4 + $0x508] sm:$0xff]
    %v4006 = vld [vmem:[#allocation4 + $0x510] sm:$0xff]
    %v4007 = vld [vmem:[#allocation4 + $0x518] sm:$0xff]
    %v4008 = vld [vmem:[#allocation4 + $0x520] sm:$0xff]
    %v4009 = vld [vmem:[#allocation4 + $0x528] sm:$0xff]
    %v4010 = vld [vmem:[#allocation4 + $0x530] sm:$0xff]
    %v4011 = vld [vmem:[#allocation4 + $0x538] sm:$0xff]
    %v4012 = vld [vmem:[#allocation4 + $0x540] sm:$0xff]
    %v4013 = vld [vmem:[#allocation4 + $0x548] sm:$0xff]
    %v4014 = vld [vmem:[#allocation4 + $0x550] sm:$0xff]
    %v4015 = vld [vmem:[#allocation4 + $0x558] sm:$0xff]
    %v4016 = vld [vmem:[#allocation4 + $0x560] sm:$0xff]
    %v4017 = vld [vmem:[#allocation4 + $0x568] sm:$0xff]
    %v4018 = vld [vmem:[#allocation4 + $0x570] sm:$0xff]
    %v4019 = vld [vmem:[#allocation4 + $0x578] sm:$0xff]
    %v4020 = vld [vmem:[#allocation4 + $0x580] sm:$0xff]
    %v4021 = vld [vmem:[#allocation4 + $0x588] sm:$0xff]
    %v4022 = vld [vmem:[#allocation4 + $0x590] sm:$0xff]
    %v4023 = vld [vmem:[#allocation4 + $0x598] sm:$0xff]
    %v4024 = vld [vmem:[#allocation4 + $0x5a0] sm:$0xff]
    %v4025 = vld [vmem:[#allocation4 + $0x5a8] sm:$0xff]
    %v4026 = vld [vmem:[#allocation4 + $0x5b0] sm:$0xff]
    %v4027 = vld [vmem:[#allocation4 + $0x5b8] sm:$0xff]
    %v4028 = vld [vmem:[#allocation4 + $0x5c0] sm:$0xff]
    %v4029 = vld [vmem:[#allocation4 + $0x5c8] sm:$0xff]
    %v4030 = vld [vmem:[#allocation4 + $0x5d0] sm:$0xff]
    %v4031 = vld [vmem:[#allocation4 + $0x5d8] sm:$0xff]
    %v4032 = vld [vmem:[#allocation4 + $0x5e0] sm:$0xff]
    %v4033 = vld [vmem:[#allocation4 + $0x5e8] sm:$0xff]
    %v4034 = vld [vmem:[#allocation4 + $0x5f0] sm:$0xff]
    %v4035 = vld [vmem:[#allocation4 + $0x5f8] sm:$0xff]
    %v4036 = vld [vmem:[#allocation4 + $0x600] sm:$0xff]
    %v4037 = vld [vmem:[#allocation4 + $0x608] sm:$0xff]
    %v4038 = vld [vmem:[#allocation4 + $0x610] sm:$0xff]
    %v4039 = vld [vmem:[#allocation4 + $0x618] sm:$0xff]
    %v4040 = vld [vmem:[#allocation4 + $0x620] sm:$0xff]
    %v4041 = vld [vmem:[#allocation4 + $0x628] sm:$0xff]
    %v4042 = vld [vmem:[#allocation4 + $0x630] sm:$0xff]
    %v4043 = vld [vmem:[#allocation4 + $0x638] sm:$0xff]
    %v4044 = vld [vmem:[#allocation4 + $0x640] sm:$0xff]
    %v4045 = vld [vmem:[#allocation4 + $0x648] sm:$0xff]
    %v4046 = vld [vmem:[#allocation4 + $0x650] sm:$0xff]
    %v4047 = vld [vmem:[#allocation4 + $0x658] sm:$0xff]
    %v4048 = vld [vmem:[#allocation4 + $0x660] sm:$0xff]
    %v4049 = vld [vmem:[#allocation4 + $0x668] sm:$0xff]
    %v4050 = vld [vmem:[#allocation4 + $0x670] sm:$0xff]
    %v4051 = vld [vmem:[#allocation4 + $0x678] sm:$0xff]
    %v4052 = vld [vmem:[#allocation4 + $0x680] sm:$0xff]
    %v4053 = vld [vmem:[#allocation4 + $0x688] sm:$0xff]
    %v4054 = vld [vmem:[#allocation4 + $0x690] sm:$0xff]
    %v4055 = vld [vmem:[#allocation4 + $0x698] sm:$0xff]
    %v4056 = vld [vmem:[#allocation4 + $0x6a0] sm:$0xff]
    %v4057 = vld [vmem:[#allocation4 + $0x6a8] sm:$0xff]
    %v4058 = vld [vmem:[#allocation4 + $0x6b0] sm:$0xff]
    %v4059 = vld [vmem:[#allocation4 + $0x6b8] sm:$0xff]
    %v4060 = vld [vmem:[#allocation4 + $0x6c0] sm:$0xff]
    %v4061 = vld [vmem:[#allocation4 + $0x6c8] sm:$0xff]
    %v4062 = vld [vmem:[#allocation4 + $0x6d0] sm:$0xff]
    %v4063 = vld [vmem:[#allocation4 + $0x6d8] sm:$0xff]
    %v4064 = vld [vmem:[#allocation4 + $0x6e0] sm:$0xff]
    %v4065 = vld [vmem:[#allocation4 + $0x6e8] sm:$0xff]
    %v4066 = vld [vmem:[#allocation4 + $0x6f0] sm:$0xff]
    %v4067 = vld [vmem:[#allocation4 + $0x6f8] sm:$0xff]
    %v4068 = vld [vmem:[#allocation4 + $0x700] sm:$0xff]
    %v4069 = vld [vmem:[#allocation4 + $0x708] sm:$0xff]
    %v4070 = vld [vmem:[#allocation4 + $0x710] sm:$0xff]
    %v4071 = vld [vmem:[#allocation4 + $0x718] sm:$0xff]
    %v4072 = vld [vmem:[#allocation4 + $0x720] sm:$0xff]
    %v4073 = vld [vmem:[#allocation4 + $0x728] sm:$0xff]
    %v4074 = vld [vmem:[#allocation4 + $0x730] sm:$0xff]
    %v4075 = vld [vmem:[#allocation4 + $0x738] sm:$0xff]
    %v4076 = vld [vmem:[#allocation4 + $0x740] sm:$0xff]
    %v4077 = vld [vmem:[#allocation4 + $0x748] sm:$0xff]
    %v4078 = vld [vmem:[#allocation4 + $0x750] sm:$0xff]
    %v4079 = vld [vmem:[#allocation4 + $0x758] sm:$0xff]
    %v4080 = vld [vmem:[#allocation4 + $0x760] sm:$0xff]
    %v4081 = vld [vmem:[#allocation4 + $0x768] sm:$0xff]
    %v4082 = vld [vmem:[#allocation4 + $0x770] sm:$0xff]
    %v4083 = vld [vmem:[#allocation4 + $0x778] sm:$0xff]
    %v4324 = vunpack.c.l.b16 %v3844
    %v4325 = vunpack.c.h.b16 %v3844
    %v4326 = vunpack.c.l.b16 %v3845
    %v4327 = vunpack.c.h.b16 %v3845
    %v4328 = vunpack.c.l.b16 %v3846
    %v4329 = vunpack.c.h.b16 %v3846
    %v4330 = vunpack.c.l.b16 %v3847
    %v4331 = vunpack.c.h.b16 %v3847
    %v4332 = vunpack.c.l.b16 %v3848
    %v4333 = vunpack.c.h.b16 %v3848
    %v4334 = vunpack.c.l.b16 %v3849
    %v4335 = vunpack.c.h.b16 %v3849
    %v4336 = vunpack.c.l.b16 %v3850
    %v4337 = vunpack.c.h.b16 %v3850
    %v4338 = vunpack.c.l.b16 %v3851
    %v4339 = vunpack.c.h.b16 %v3851
    %v4340 = vunpack.c.l.b16 %v3852
    %v4341 = vunpack.c.h.b16 %v3852
    %v4342 = vunpack.c.l.b16 %v3853
    %v4343 = vunpack.c.h.b16 %v3853
    %v4344 = vunpack.c.l.b16 %v3854
    %v4345 = vunpack.c.h.b16 %v3854
    %v4346 = vunpack.c.l.b16 %v3855
    %v4347 = vunpack.c.h.b16 %v3855
    %v4348 = vunpack.c.l.b16 %v3856
    %v4349 = vunpack.c.h.b16 %v3856
    %v4350 = vunpack.c.l.b16 %v3857
    %v4351 = vunpack.c.h.b16 %v3857
    %v4352 = vunpack.c.l.b16 %v3858
    %v4353 = vunpack.c.h.b16 %v3858
    %v4354 = vunpack.c.l.b16 %v3859
    %v4355 = vunpack.c.h.b16 %v3859
    %v4356 = vunpack.c.l.b16 %v3860
    %v4357 = vunpack.c.h.b16 %v3860
    %v4358 = vunpack.c.l.b16 %v3861
    %v4359 = vunpack.c.h.b16 %v3861
    %v4360 = vunpack.c.l.b16 %v3862
    %v4361 = vunpack.c.h.b16 %v3862
    %v4362 = vunpack.c.l.b16 %v3863
    %v4363 = vunpack.c.h.b16 %v3863
    %v4364 = vunpack.c.l.b16 %v3864
    %v4365 = vunpack.c.h.b16 %v3864
    %v4366 = vunpack.c.l.b16 %v3865
    %v4367 = vunpack.c.h.b16 %v3865
    %v4368 = vunpack.c.l.b16 %v3866
    %v4369 = vunpack.c.h.b16 %v3866
    %v4370 = vunpack.c.l.b16 %v3867
    %v4371 = vunpack.c.h.b16 %v3867
    %v4372 = vunpack.c.l.b16 %v3868
    %v4373 = vunpack.c.h.b16 %v3868
    %v4374 = vunpack.c.l.b16 %v3869
    %v4375 = vunpack.c.h.b16 %v3869
    %v4376 = vunpack.c.l.b16 %v3870
    %v4377 = vunpack.c.h.b16 %v3870
    %v4378 = vunpack.c.l.b16 %v3871
    %v4379 = vunpack.c.h.b16 %v3871
    %v4380 = vunpack.c.l.b16 %v3872
    %v4381 = vunpack.c.h.b16 %v3872
    %v4382 = vunpack.c.l.b16 %v3873
    %v4383 = vunpack.c.h.b16 %v3873
    %v4384 = vunpack.c.l.b16 %v3874
    %v4385 = vunpack.c.h.b16 %v3874
    %v4386 = vunpack.c.l.b16 %v3875
    %v4387 = vunpack.c.h.b16 %v3875
    %v4388 = vunpack.c.l.b16 %v3876
    %v4389 = vunpack.c.h.b16 %v3876
    %v4390 = vunpack.c.l.b16 %v3877
    %v4391 = vunpack.c.h.b16 %v3877
    %v4392 = vunpack.c.l.b16 %v3878
    %v4393 = vunpack.c.h.b16 %v3878
    %v4394 = vunpack.c.l.b16 %v3879
    %v4395 = vunpack.c.h.b16 %v3879
    %v4396 = vunpack.c.l.b16 %v3880
    %v4397 = vunpack.c.h.b16 %v3880
    %v4398 = vunpack.c.l.b16 %v3881
    %v4399 = vunpack.c.h.b16 %v3881
    %v4400 = vunpack.c.l.b16 %v3882
    %v4401 = vunpack.c.h.b16 %v3882
    %v4402 = vunpack.c.l.b16 %v3883
    %v4403 = vunpack.c.h.b16 %v3883
    %v4404 = vunpack.c.l.b16 %v3884
    %v4405 = vunpack.c.h.b16 %v3884
    %v4406 = vunpack.c.l.b16 %v3885
    %v4407 = vunpack.c.h.b16 %v3885
    %v4408 = vunpack.c.l.b16 %v3886
    %v4409 = vunpack.c.h.b16 %v3886
    %v4410 = vunpack.c.l.b16 %v3887
    %v4411 = vunpack.c.h.b16 %v3887
    %v4412 = vunpack.c.l.b16 %v3888
    %v4413 = vunpack.c.h.b16 %v3888
    %v4414 = vunpack.c.l.b16 %v3889
    %v4415 = vunpack.c.h.b16 %v3889
    %v4416 = vunpack.c.l.b16 %v3890
    %v4417 = vunpack.c.h.b16 %v3890
    %v4418 = vunpack.c.l.b16 %v3891
    %v4419 = vunpack.c.h.b16 %v3891
    %v4420 = vunpack.c.l.b16 %v3892
    %v4421 = vunpack.c.h.b16 %v3892
    %v4422 = vunpack.c.l.b16 %v3893
    %v4423 = vunpack.c.h.b16 %v3893
    %v4424 = vunpack.c.l.b16 %v3894
    %v4425 = vunpack.c.h.b16 %v3894
    %v4426 = vunpack.c.l.b16 %v3895
    %v4427 = vunpack.c.h.b16 %v3895
    %v4428 = vunpack.c.l.b16 %v3896
    %v4429 = vunpack.c.h.b16 %v3896
    %v4430 = vunpack.c.l.b16 %v3897
    %v4431 = vunpack.c.h.b16 %v3897
    %v4432 = vunpack.c.l.b16 %v3898
    %v4433 = vunpack.c.h.b16 %v3898
    %v4434 = vunpack.c.l.b16 %v3899
    %v4435 = vunpack.c.h.b16 %v3899
    %v4436 = vunpack.c.l.b16 %v3900
    %v4437 = vunpack.c.h.b16 %v3900
    %v4438 = vunpack.c.l.b16 %v3901
    %v4439 = vunpack.c.h.b16 %v3901
    %v4440 = vunpack.c.l.b16 %v3902
    %v4441 = vunpack.c.h.b16 %v3902
    %v4442 = vunpack.c.l.b16 %v3903
    %v4443 = vunpack.c.h.b16 %v3903
    %v4444 = vunpack.c.l.b16 %v3904
    %v4445 = vunpack.c.h.b16 %v3904
    %v4446 = vunpack.c.l.b16 %v3905
    %v4447 = vunpack.c.h.b16 %v3905
    %v4448 = vunpack.c.l.b16 %v3906
    %v4449 = vunpack.c.h.b16 %v3906
    %v4450 = vunpack.c.l.b16 %v3907
    %v4451 = vunpack.c.h.b16 %v3907
    %v4452 = vunpack.c.l.b16 %v3908
    %v4453 = vunpack.c.h.b16 %v3908
    %v4454 = vunpack.c.l.b16 %v3909
    %v4455 = vunpack.c.h.b16 %v3909
    %v4456 = vunpack.c.l.b16 %v3910
    %v4457 = vunpack.c.h.b16 %v3910
    %v4458 = vunpack.c.l.b16 %v3911
    %v4459 = vunpack.c.h.b16 %v3911
    %v4460 = vunpack.c.l.b16 %v3912
    %v4461 = vunpack.c.h.b16 %v3912
    %v4462 = vunpack.c.l.b16 %v3913
    %v4463 = vunpack.c.h.b16 %v3913
    %v4464 = vunpack.c.l.b16 %v3914
    %v4465 = vunpack.c.h.b16 %v3914
    %v4466 = vunpack.c.l.b16 %v3915
    %v4467 = vunpack.c.h.b16 %v3915
    %v4468 = vunpack.c.l.b16 %v3916
    %v4469 = vunpack.c.h.b16 %v3916
    %v4470 = vunpack.c.l.b16 %v3917
    %v4471 = vunpack.c.h.b16 %v3917
    %v4472 = vunpack.c.l.b16 %v3918
    %v4473 = vunpack.c.h.b16 %v3918
    %v4474 = vunpack.c.l.b16 %v3919
    %v4475 = vunpack.c.h.b16 %v3919
    %v4476 = vunpack.c.l.b16 %v3920
    %v4477 = vunpack.c.h.b16 %v3920
    %v4478 = vunpack.c.l.b16 %v3921
    %v4479 = vunpack.c.h.b16 %v3921
    %v4480 = vunpack.c.l.b16 %v3922
    %v4481 = vunpack.c.h.b16 %v3922
    %v4482 = vunpack.c.l.b16 %v3923
    %v4483 = vunpack.c.h.b16 %v3923
    %v4484 = vunpack.c.l.b16 %v3924
    %v4485 = vunpack.c.h.b16 %v3924
    %v4486 = vunpack.c.l.b16 %v3925
    %v4487 = vunpack.c.h.b16 %v3925
    %v4488 = vunpack.c.l.b16 %v3926
    %v4489 = vunpack.c.h.b16 %v3926
    %v4490 = vunpack.c.l.b16 %v3927
    %v4491 = vunpack.c.h.b16 %v3927
    %v4492 = vunpack.c.l.b16 %v3928
    %v4493 = vunpack.c.h.b16 %v3928
    %v4494 = vunpack.c.l.b16 %v3929
    %v4495 = vunpack.c.h.b16 %v3929
    %v4496 = vunpack.c.l.b16 %v3930
    %v4497 = vunpack.c.h.b16 %v3930
    %v4498 = vunpack.c.l.b16 %v3931
    %v4499 = vunpack.c.h.b16 %v3931
    %v4500 = vunpack.c.l.b16 %v3932
    %v4501 = vunpack.c.h.b16 %v3932
    %v4502 = vunpack.c.l.b16 %v3933
    %v4503 = vunpack.c.h.b16 %v3933
    %v4504 = vunpack.c.l.b16 %v3934
    %v4505 = vunpack.c.h.b16 %v3934
    %v4506 = vunpack.c.l.b16 %v3935
    %v4507 = vunpack.c.h.b16 %v3935
    %v4508 = vunpack.c.l.b16 %v3936
    %v4509 = vunpack.c.h.b16 %v3936
    %v4510 = vunpack.c.l.b16 %v3937
    %v4511 = vunpack.c.h.b16 %v3937
    %v4512 = vunpack.c.l.b16 %v3938
    %v4513 = vunpack.c.h.b16 %v3938
    %v4514 = vunpack.c.l.b16 %v3939
    %v4515 = vunpack.c.h.b16 %v3939
    %v4516 = vunpack.c.l.b16 %v3940
    %v4517 = vunpack.c.h.b16 %v3940
    %v4518 = vunpack.c.l.b16 %v3941
    %v4519 = vunpack.c.h.b16 %v3941
    %v4520 = vunpack.c.l.b16 %v3942
    %v4521 = vunpack.c.h.b16 %v3942
    %v4522 = vunpack.c.l.b16 %v3943
    %v4523 = vunpack.c.h.b16 %v3943
    %v4524 = vunpack.c.l.b16 %v3944
    %v4525 = vunpack.c.h.b16 %v3944
    %v4526 = vunpack.c.l.b16 %v3945
    %v4527 = vunpack.c.h.b16 %v3945
    %v4528 = vunpack.c.l.b16 %v3946
    %v4529 = vunpack.c.h.b16 %v3946
    %v4530 = vunpack.c.l.b16 %v3947
    %v4531 = vunpack.c.h.b16 %v3947
    %v4532 = vunpack.c.l.b16 %v3948
    %v4533 = vunpack.c.h.b16 %v3948
    %v4534 = vunpack.c.l.b16 %v3949
    %v4535 = vunpack.c.h.b16 %v3949
    %v4536 = vunpack.c.l.b16 %v3950
    %v4537 = vunpack.c.h.b16 %v3950
    %v4538 = vunpack.c.l.b16 %v3951
    %v4539 = vunpack.c.h.b16 %v3951
    %v4540 = vunpack.c.l.b16 %v3952
    %v4541 = vunpack.c.h.b16 %v3952
    %v4542 = vunpack.c.l.b16 %v3953
    %v4543 = vunpack.c.h.b16 %v3953
    %v4544 = vunpack.c.l.b16 %v3954
    %v4545 = vunpack.c.h.b16 %v3954
    %v4546 = vunpack.c.l.b16 %v3955
    %v4547 = vunpack.c.h.b16 %v3955
    %v4548 = vunpack.c.l.b16 %v3956
    %v4549 = vunpack.c.h.b16 %v3956
    %v4550 = vunpack.c.l.b16 %v3957
    %v4551 = vunpack.c.h.b16 %v3957
    %v4552 = vunpack.c.l.b16 %v3958
    %v4553 = vunpack.c.h.b16 %v3958
    %v4554 = vunpack.c.l.b16 %v3959
    %v4555 = vunpack.c.h.b16 %v3959
    %v4556 = vunpack.c.l.b16 %v3960
    %v4557 = vunpack.c.h.b16 %v3960
    %v4558 = vunpack.c.l.b16 %v3961
    %v4559 = vunpack.c.h.b16 %v3961
    %v4560 = vunpack.c.l.b16 %v3962
    %v4561 = vunpack.c.h.b16 %v3962
    %v4562 = vunpack.c.l.b16 %v3963
    %v4563 = vunpack.c.h.b16 %v3963
    %v4564 = vunpack.c.l.b16 %v3964
    %v4565 = vunpack.c.h.b16 %v3964
    %v4566 = vunpack.c.l.b16 %v3965
    %v4567 = vunpack.c.h.b16 %v3965
    %v4568 = vunpack.c.l.b16 %v3966
    %v4569 = vunpack.c.h.b16 %v3966
    %v4570 = vunpack.c.l.b16 %v3967
    %v4571 = vunpack.c.h.b16 %v3967
    %v4572 = vunpack.c.l.b16 %v3968
    %v4573 = vunpack.c.h.b16 %v3968
    %v4574 = vunpack.c.l.b16 %v3969
    %v4575 = vunpack.c.h.b16 %v3969
    %v4576 = vunpack.c.l.b16 %v3970
    %v4577 = vunpack.c.h.b16 %v3970
    %v4578 = vunpack.c.l.b16 %v3971
    %v4579 = vunpack.c.h.b16 %v3971
    %v4580 = vunpack.c.l.b16 %v3972
    %v4581 = vunpack.c.h.b16 %v3972
    %v4582 = vunpack.c.l.b16 %v3973
    %v4583 = vunpack.c.h.b16 %v3973
    %v4584 = vunpack.c.l.b16 %v3974
    %v4585 = vunpack.c.h.b16 %v3974
    %v4586 = vunpack.c.l.b16 %v3975
    %v4587 = vunpack.c.h.b16 %v3975
    %v4588 = vunpack.c.l.b16 %v3976
    %v4589 = vunpack.c.h.b16 %v3976
    %v4590 = vunpack.c.l.b16 %v3977
    %v4591 = vunpack.c.h.b16 %v3977
    %v4592 = vunpack.c.l.b16 %v3978
    %v4593 = vunpack.c.h.b16 %v3978
    %v4594 = vunpack.c.l.b16 %v3979
    %v4595 = vunpack.c.h.b16 %v3979
    %v4596 = vunpack.c.l.b16 %v3980
    %v4597 = vunpack.c.h.b16 %v3980
    %v4598 = vunpack.c.l.b16 %v3981
    %v4599 = vunpack.c.h.b16 %v3981
    %v4600 = vunpack.c.l.b16 %v3982
    %v4601 = vunpack.c.h.b16 %v3982
    %v4602 = vunpack.c.l.b16 %v3983
    %v4603 = vunpack.c.h.b16 %v3983
    %v4604 = vunpack.c.l.b16 %v3984
    %v4605 = vunpack.c.h.b16 %v3984
    %v4606 = vunpack.c.l.b16 %v3985
    %v4607 = vunpack.c.h.b16 %v3985
    %v4608 = vunpack.c.l.b16 %v3986
    %v4609 = vunpack.c.h.b16 %v3986
    %v4610 = vunpack.c.l.b16 %v3987
    %v4611 = vunpack.c.h.b16 %v3987
    %v4612 = vunpack.c.l.b16 %v3988
    %v4613 = vunpack.c.h.b16 %v3988
    %v4614 = vunpack.c.l.b16 %v3989
    %v4615 = vunpack.c.h.b16 %v3989
    %v4616 = vunpack.c.l.b16 %v3990
    %v4617 = vunpack.c.h.b16 %v3990
    %v4618 = vunpack.c.l.b16 %v3991
    %v4619 = vunpack.c.h.b16 %v3991
    %v4620 = vunpack.c.l.b16 %v3992
    %v4621 = vunpack.c.h.b16 %v3992
    %v4622 = vunpack.c.l.b16 %v3993
    %v4623 = vunpack.c.h.b16 %v3993
    %v4624 = vunpack.c.l.b16 %v3994
    %v4625 = vunpack.c.h.b16 %v3994
    %v4626 = vunpack.c.l.b16 %v3995
    %v4627 = vunpack.c.h.b16 %v3995
    %v4628 = vunpack.c.l.b16 %v3996
    %v4629 = vunpack.c.h.b16 %v3996
    %v4630 = vunpack.c.l.b16 %v3997
    %v4631 = vunpack.c.h.b16 %v3997
    %v4632 = vunpack.c.l.b16 %v3998
    %v4633 = vunpack.c.h.b16 %v3998
    %v4634 = vunpack.c.l.b16 %v3999
    %v4635 = vunpack.c.h.b16 %v3999
    %v4636 = vunpack.c.l.b16 %v4000
    %v4637 = vunpack.c.h.b16 %v4000
    %v4638 = vunpack.c.l.b16 %v4001
    %v4639 = vunpack.c.h.b16 %v4001
    %v4640 = vunpack.c.l.b16 %v4002
    %v4641 = vunpack.c.h.b16 %v4002
    %v4642 = vunpack.c.l.b16 %v4003
    %v4643 = vunpack.c.h.b16 %v4003
    %v4644 = vunpack.c.l.b16 %v4004
    %v4645 = vunpack.c.h.b16 %v4004
    %v4646 = vunpack.c.l.b16 %v4005
    %v4647 = vunpack.c.h.b16 %v4005
    %v4648 = vunpack.c.l.b16 %v4006
    %v4649 = vunpack.c.h.b16 %v4006
    %v4650 = vunpack.c.l.b16 %v4007
    %v4651 = vunpack.c.h.b16 %v4007
    %v4652 = vunpack.c.l.b16 %v4008
    %v4653 = vunpack.c.h.b16 %v4008
    %v4654 = vunpack.c.l.b16 %v4009
    %v4655 = vunpack.c.h.b16 %v4009
    %v4656 = vunpack.c.l.b16 %v4010
    %v4657 = vunpack.c.h.b16 %v4010
    %v4658 = vunpack.c.l.b16 %v4011
    %v4659 = vunpack.c.h.b16 %v4011
    %v4660 = vunpack.c.l.b16 %v4012
    %v4661 = vunpack.c.h.b16 %v4012
    %v4662 = vunpack.c.l.b16 %v4013
    %v4663 = vunpack.c.h.b16 %v4013
    %v4664 = vunpack.c.l.b16 %v4014
    %v4665 = vunpack.c.h.b16 %v4014
    %v4666 = vunpack.c.l.b16 %v4015
    %v4667 = vunpack.c.h.b16 %v4015
    %v4668 = vunpack.c.l.b16 %v4016
    %v4669 = vunpack.c.h.b16 %v4016
    %v4670 = vunpack.c.l.b16 %v4017
    %v4671 = vunpack.c.h.b16 %v4017
    %v4672 = vunpack.c.l.b16 %v4018
    %v4673 = vunpack.c.h.b16 %v4018
    %v4674 = vunpack.c.l.b16 %v4019
    %v4675 = vunpack.c.h.b16 %v4019
    %v4676 = vunpack.c.l.b16 %v4020
    %v4677 = vunpack.c.h.b16 %v4020
    %v4678 = vunpack.c.l.b16 %v4021
    %v4679 = vunpack.c.h.b16 %v4021
    %v4680 = vunpack.c.l.b16 %v4022
    %v4681 = vunpack.c.h.b16 %v4022
    %v4682 = vunpack.c.l.b16 %v4023
    %v4683 = vunpack.c.h.b16 %v4023
    %v4684 = vunpack.c.l.b16 %v4024
    %v4685 = vunpack.c.h.b16 %v4024
    %v4686 = vunpack.c.l.b16 %v4025
    %v4687 = vunpack.c.h.b16 %v4025
    %v4688 = vunpack.c.l.b16 %v4026
    %v4689 = vunpack.c.h.b16 %v4026
    %v4690 = vunpack.c.l.b16 %v4027
    %v4691 = vunpack.c.h.b16 %v4027
    %v4692 = vunpack.c.l.b16 %v4028
    %v4693 = vunpack.c.h.b16 %v4028
    %v4694 = vunpack.c.l.b16 %v4029
    %v4695 = vunpack.c.h.b16 %v4029
    %v4696 = vunpack.c.l.b16 %v4030
    %v4697 = vunpack.c.h.b16 %v4030
    %v4698 = vunpack.c.l.b16 %v4031
    %v4699 = vunpack.c.h.b16 %v4031
    %v4700 = vunpack.c.l.b16 %v4032
    %v4701 = vunpack.c.h.b16 %v4032
    %v4702 = vunpack.c.l.b16 %v4033
    %v4703 = vunpack.c.h.b16 %v4033
    %v4704 = vunpack.c.l.b16 %v4034
    %v4705 = vunpack.c.h.b16 %v4034
    %v4706 = vunpack.c.l.b16 %v4035
    %v4707 = vunpack.c.h.b16 %v4035
    %v4708 = vunpack.c.l.b16 %v4036
    %v4709 = vunpack.c.h.b16 %v4036
    %v4710 = vunpack.c.l.b16 %v4037
    %v4711 = vunpack.c.h.b16 %v4037
    %v4712 = vunpack.c.l.b16 %v4038
    %v4713 = vunpack.c.h.b16 %v4038
    %v4714 = vunpack.c.l.b16 %v4039
    %v4715 = vunpack.c.h.b16 %v4039
    %v4716 = vunpack.c.l.b16 %v4040
    %v4717 = vunpack.c.h.b16 %v4040
    %v4718 = vunpack.c.l.b16 %v4041
    %v4719 = vunpack.c.h.b16 %v4041
    %v4720 = vunpack.c.l.b16 %v4042
    %v4721 = vunpack.c.h.b16 %v4042
    %v4722 = vunpack.c.l.b16 %v4043
    %v4723 = vunpack.c.h.b16 %v4043
    %v4724 = vunpack.c.l.b16 %v4044
    %v4725 = vunpack.c.h.b16 %v4044
    %v4726 = vunpack.c.l.b16 %v4045
    %v4727 = vunpack.c.h.b16 %v4045
    %v4728 = vunpack.c.l.b16 %v4046
    %v4729 = vunpack.c.h.b16 %v4046
    %v4730 = vunpack.c.l.b16 %v4047
    %v4731 = vunpack.c.h.b16 %v4047
    %v4732 = vunpack.c.l.b16 %v4048
    %v4733 = vunpack.c.h.b16 %v4048
    %v4734 = vunpack.c.l.b16 %v4049
    %v4735 = vunpack.c.h.b16 %v4049
    %v4736 = vunpack.c.l.b16 %v4050
    %v4737 = vunpack.c.h.b16 %v4050
    %v4738 = vunpack.c.l.b16 %v4051
    %v4739 = vunpack.c.h.b16 %v4051
    %v4740 = vunpack.c.l.b16 %v4052
    %v4741 = vunpack.c.h.b16 %v4052
    %v4742 = vunpack.c.l.b16 %v4053
    %v4743 = vunpack.c.h.b16 %v4053
    %v4744 = vunpack.c.l.b16 %v4054
    %v4745 = vunpack.c.h.b16 %v4054
    %v4746 = vunpack.c.l.b16 %v4055
    %v4747 = vunpack.c.h.b16 %v4055
    %v4748 = vunpack.c.l.b16 %v4056
    %v4749 = vunpack.c.h.b16 %v4056
    %v4750 = vunpack.c.l.b16 %v4057
    %v4751 = vunpack.c.h.b16 %v4057
    %v4752 = vunpack.c.l.b16 %v4058
    %v4753 = vunpack.c.h.b16 %v4058
    %v4754 = vunpack.c.l.b16 %v4059
    %v4755 = vunpack.c.h.b16 %v4059
    %v4756 = vunpack.c.l.b16 %v4060
    %v4757 = vunpack.c.h.b16 %v4060
    %v4758 = vunpack.c.l.b16 %v4061
    %v4759 = vunpack.c.h.b16 %v4061
    %v4760 = vunpack.c.l.b16 %v4062
    %v4761 = vunpack.c.h.b16 %v4062
    %v4762 = vunpack.c.l.b16 %v4063
    %v4763 = vunpack.c.h.b16 %v4063
    %v4764 = vunpack.c.l.b16 %v4064
    %v4765 = vunpack.c.h.b16 %v4064
    %v4766 = vunpack.c.l.b16 %v4065
    %v4767 = vunpack.c.h.b16 %v4065
    %v4768 = vunpack.c.l.b16 %v4066
    %v4769 = vunpack.c.h.b16 %v4066
    %v4770 = vunpack.c.l.b16 %v4067
    %v4771 = vunpack.c.h.b16 %v4067
    %v4772 = vunpack.c.l.b16 %v4068
    %v4773 = vunpack.c.h.b16 %v4068
    %v4774 = vunpack.c.l.b16 %v4069
    %v4775 = vunpack.c.h.b16 %v4069
    %v4776 = vunpack.c.l.b16 %v4070
    %v4777 = vunpack.c.h.b16 %v4070
    %v4778 = vunpack.c.l.b16 %v4071
    %v4779 = vunpack.c.h.b16 %v4071
    %v4780 = vunpack.c.l.b16 %v4072
    %v4781 = vunpack.c.h.b16 %v4072
    %v4782 = vunpack.c.l.b16 %v4073
    %v4783 = vunpack.c.h.b16 %v4073
    %v4784 = vunpack.c.l.b16 %v4074
    %v4785 = vunpack.c.h.b16 %v4074
    %v4786 = vunpack.c.l.b16 %v4075
    %v4787 = vunpack.c.h.b16 %v4075
    %v4788 = vunpack.c.l.b16 %v4076
    %v4789 = vunpack.c.h.b16 %v4076
    %v4790 = vunpack.c.l.b16 %v4077
    %v4791 = vunpack.c.h.b16 %v4077
    %v4792 = vunpack.c.l.b16 %v4078
    %v4793 = vunpack.c.h.b16 %v4078
    %v4794 = vunpack.c.l.b16 %v4079
    %v4795 = vunpack.c.h.b16 %v4079
    %v4796 = vunpack.c.l.b16 %v4080
    %v4797 = vunpack.c.h.b16 %v4080
    %v4798 = vunpack.c.l.b16 %v4081
    %v4799 = vunpack.c.h.b16 %v4081
    %v4800 = vunpack.c.l.b16 %v4082
    %v4801 = vunpack.c.h.b16 %v4082
    %v4802 = vunpack.c.l.b16 %v4083
    %v4803 = vunpack.c.h.b16 %v4083
    %v4804 = vpack.c.b16 %v4326, %v4324
    %v4805 = vpack.c.b16 %v4327, %v4325
    %v4806 = vpack.c.b16 %v4330, %v4328
    %v4807 = vpack.c.b16 %v4331, %v4329
    %v4808 = vpack.c.b16 %v4334, %v4332
    %v4809 = vpack.c.b16 %v4335, %v4333
    %v4810 = vpack.c.b16 %v4338, %v4336
    %v4811 = vpack.c.b16 %v4339, %v4337
    %v4812 = vpack.c.b16 %v4342, %v4340
    %v4813 = vpack.c.b16 %v4343, %v4341
    %v4814 = vpack.c.b16 %v4346, %v4344
    %v4815 = vpack.c.b16 %v4347, %v4345
    %v4816 = vpack.c.b16 %v4350, %v4348
    %v4817 = vpack.c.b16 %v4351, %v4349
    %v4818 = vpack.c.b16 %v4354, %v4352
    %v4819 = vpack.c.b16 %v4355, %v4353
    %v4820 = vpack.c.b16 %v4358, %v4356
    %v4821 = vpack.c.b16 %v4359, %v4357
    %v4822 = vpack.c.b16 %v4362, %v4360
    %v4823 = vpack.c.b16 %v4363, %v4361
    %v4824 = vpack.c.b16 %v4366, %v4364
    %v4825 = vpack.c.b16 %v4367, %v4365
    %v4826 = vpack.c.b16 %v4370, %v4368
    %v4827 = vpack.c.b16 %v4371, %v4369
    %v4828 = vpack.c.b16 %v4374, %v4372
    %v4829 = vpack.c.b16 %v4375, %v4373
    %v4830 = vpack.c.b16 %v4378, %v4376
    %v4831 = vpack.c.b16 %v4379, %v4377
    %v4832 = vpack.c.b16 %v4382, %v4380
    %v4833 = vpack.c.b16 %v4383, %v4381
    %v4834 = vpack.c.b16 %v4386, %v4384
    %v4835 = vpack.c.b16 %v4387, %v4385
    %v4836 = vpack.c.b16 %v4390, %v4388
    %v4837 = vpack.c.b16 %v4391, %v4389
    %v4838 = vpack.c.b16 %v4394, %v4392
    %v4839 = vpack.c.b16 %v4395, %v4393
    %v4840 = vpack.c.b16 %v4398, %v4396
    %v4841 = vpack.c.b16 %v4399, %v4397
    %v4842 = vpack.c.b16 %v4402, %v4400
    %v4843 = vpack.c.b16 %v4403, %v4401
    %v4844 = vpack.c.b16 %v4406, %v4404
    %v4845 = vpack.c.b16 %v4407, %v4405
    %v4846 = vpack.c.b16 %v4410, %v4408
    %v4847 = vpack.c.b16 %v4411, %v4409
    %v4848 = vpack.c.b16 %v4414, %v4412
    %v4849 = vpack.c.b16 %v4415, %v4413
    %v4850 = vpack.c.b16 %v4418, %v4416
    %v4851 = vpack.c.b16 %v4419, %v4417
    %v4852 = vpack.c.b16 %v4422, %v4420
    %v4853 = vpack.c.b16 %v4423, %v4421
    %v4854 = vpack.c.b16 %v4426, %v4424
    %v4855 = vpack.c.b16 %v4427, %v4425
    %v4856 = vpack.c.b16 %v4430, %v4428
    %v4857 = vpack.c.b16 %v4431, %v4429
    %v4858 = vpack.c.b16 %v4434, %v4432
    %v4859 = vpack.c.b16 %v4435, %v4433
    %v4860 = vpack.c.b16 %v4438, %v4436
    %v4861 = vpack.c.b16 %v4439, %v4437
    %v4862 = vpack.c.b16 %v4442, %v4440
    %v4863 = vpack.c.b16 %v4443, %v4441
    %v4864 = vpack.c.b16 %v4446, %v4444
    %v4865 = vpack.c.b16 %v4447, %v4445
    %v4866 = vpack.c.b16 %v4450, %v4448
    %v4867 = vpack.c.b16 %v4451, %v4449
    %v4868 = vpack.c.b16 %v4454, %v4452
    %v4869 = vpack.c.b16 %v4455, %v4453
    %v4870 = vpack.c.b16 %v4458, %v4456
    %v4871 = vpack.c.b16 %v4459, %v4457
    %v4872 = vpack.c.b16 %v4462, %v4460
    %v4873 = vpack.c.b16 %v4463, %v4461
    %v4874 = vpack.c.b16 %v4466, %v4464
    %v4875 = vpack.c.b16 %v4467, %v4465
    %v4876 = vpack.c.b16 %v4470, %v4468
    %v4877 = vpack.c.b16 %v4471, %v4469
    %v4878 = vpack.c.b16 %v4474, %v4472
    %v4879 = vpack.c.b16 %v4475, %v4473
    %v4880 = vpack.c.b16 %v4478, %v4476
    %v4881 = vpack.c.b16 %v4479, %v4477
    %v4882 = vpack.c.b16 %v4482, %v4480
    %v4883 = vpack.c.b16 %v4483, %v4481
    %v4884 = vpack.c.b16 %v4486, %v4484
    %v4885 = vpack.c.b16 %v4487, %v4485
    %v4886 = vpack.c.b16 %v4490, %v4488
    %v4887 = vpack.c.b16 %v4491, %v4489
    %v4888 = vpack.c.b16 %v4494, %v4492
    %v4889 = vpack.c.b16 %v4495, %v4493
    %v4890 = vpack.c.b16 %v4498, %v4496
    %v4891 = vpack.c.b16 %v4499, %v4497
    %v4892 = vpack.c.b16 %v4502, %v4500
    %v4893 = vpack.c.b16 %v4503, %v4501
    %v4894 = vpack.c.b16 %v4506, %v4504
    %v4895 = vpack.c.b16 %v4507, %v4505
    %v4896 = vpack.c.b16 %v4510, %v4508
    %v4897 = vpack.c.b16 %v4511, %v4509
    %v4898 = vpack.c.b16 %v4514, %v4512
    %v4899 = vpack.c.b16 %v4515, %v4513
    %v4900 = vpack.c.b16 %v4518, %v4516
    %v4901 = vpack.c.b16 %v4519, %v4517
    %v4902 = vpack.c.b16 %v4522, %v4520
    %v4903 = vpack.c.b16 %v4523, %v4521
    %v4904 = vpack.c.b16 %v4526, %v4524
    %v4905 = vpack.c.b16 %v4527, %v4525
    %v4906 = vpack.c.b16 %v4530, %v4528
    %v4907 = vpack.c.b16 %v4531, %v4529
    %v4908 = vpack.c.b16 %v4534, %v4532
    %v4909 = vpack.c.b16 %v4535, %v4533
    %v4910 = vpack.c.b16 %v4538, %v4536
    %v4911 = vpack.c.b16 %v4539, %v4537
    %v4912 = vpack.c.b16 %v4542, %v4540
    %v4913 = vpack.c.b16 %v4543, %v4541
    %v4914 = vpack.c.b16 %v4546, %v4544
    %v4915 = vpack.c.b16 %v4547, %v4545
    %v4916 = vpack.c.b16 %v4550, %v4548
    %v4917 = vpack.c.b16 %v4551, %v4549
    %v4918 = vpack.c.b16 %v4554, %v4552
    %v4919 = vpack.c.b16 %v4555, %v4553
    %v4920 = vpack.c.b16 %v4558, %v4556
    %v4921 = vpack.c.b16 %v4559, %v4557
    %v4922 = vpack.c.b16 %v4562, %v4560
    %v4923 = vpack.c.b16 %v4563, %v4561
    %v4924 = vpack.c.b16 %v4566, %v4564
    %v4925 = vpack.c.b16 %v4567, %v4565
    %v4926 = vpack.c.b16 %v4570, %v4568
    %v4927 = vpack.c.b16 %v4571, %v4569
    %v4928 = vpack.c.b16 %v4574, %v4572
    %v4929 = vpack.c.b16 %v4575, %v4573
    %v4930 = vpack.c.b16 %v4578, %v4576
    %v4931 = vpack.c.b16 %v4579, %v4577
    %v4932 = vpack.c.b16 %v4582, %v4580
    %v4933 = vpack.c.b16 %v4583, %v4581
    %v4934 = vpack.c.b16 %v4586, %v4584
    %v4935 = vpack.c.b16 %v4587, %v4585
    %v4936 = vpack.c.b16 %v4590, %v4588
    %v4937 = vpack.c.b16 %v4591, %v4589
    %v4938 = vpack.c.b16 %v4594, %v4592
    %v4939 = vpack.c.b16 %v4595, %v4593
    %v4940 = vpack.c.b16 %v4598, %v4596
    %v4941 = vpack.c.b16 %v4599, %v4597
    %v4942 = vpack.c.b16 %v4602, %v4600
    %v4943 = vpack.c.b16 %v4603, %v4601
    %v4944 = vpack.c.b16 %v4606, %v4604
    %v4945 = vpack.c.b16 %v4607, %v4605
    %v4946 = vpack.c.b16 %v4610, %v4608
    %v4947 = vpack.c.b16 %v4611, %v4609
    %v4948 = vpack.c.b16 %v4614, %v4612
    %v4949 = vpack.c.b16 %v4615, %v4613
    %v4950 = vpack.c.b16 %v4618, %v4616
    %v4951 = vpack.c.b16 %v4619, %v4617
    %v4952 = vpack.c.b16 %v4622, %v4620
    %v4953 = vpack.c.b16 %v4623, %v4621
    %v4954 = vpack.c.b16 %v4626, %v4624
    %v4955 = vpack.c.b16 %v4627, %v4625
    %v4956 = vpack.c.b16 %v4630, %v4628
    %v4957 = vpack.c.b16 %v4631, %v4629
    %v4958 = vpack.c.b16 %v4634, %v4632
    %v4959 = vpack.c.b16 %v4635, %v4633
    %v4960 = vpack.c.b16 %v4638, %v4636
    %v4961 = vpack.c.b16 %v4639, %v4637
    %v4962 = vpack.c.b16 %v4642, %v4640
    %v4963 = vpack.c.b16 %v4643, %v4641
    %v4964 = vpack.c.b16 %v4646, %v4644
    %v4965 = vpack.c.b16 %v4647, %v4645
    %v4966 = vpack.c.b16 %v4650, %v4648
    %v4967 = vpack.c.b16 %v4651, %v4649
    %v4968 = vpack.c.b16 %v4654, %v4652
    %v4969 = vpack.c.b16 %v4655, %v4653
    %v4970 = vpack.c.b16 %v4658, %v4656
    %v4971 = vpack.c.b16 %v4659, %v4657
    %v4972 = vpack.c.b16 %v4662, %v4660
    %v4973 = vpack.c.b16 %v4663, %v4661
    %v4974 = vpack.c.b16 %v4666, %v4664
    %v4975 = vpack.c.b16 %v4667, %v4665
    %v4976 = vpack.c.b16 %v4670, %v4668
    %v4977 = vpack.c.b16 %v4671, %v4669
    %v4978 = vpack.c.b16 %v4674, %v4672
    %v4979 = vpack.c.b16 %v4675, %v4673
    %v4980 = vpack.c.b16 %v4678, %v4676
    %v4981 = vpack.c.b16 %v4679, %v4677
    %v4982 = vpack.c.b16 %v4682, %v4680
    %v4983 = vpack.c.b16 %v4683, %v4681
    %v4984 = vpack.c.b16 %v4686, %v4684
    %v4985 = vpack.c.b16 %v4687, %v4685
    %v4986 = vpack.c.b16 %v4690, %v4688
    %v4987 = vpack.c.b16 %v4691, %v4689
    %v4988 = vpack.c.b16 %v4694, %v4692
    %v4989 = vpack.c.b16 %v4695, %v4693
    %v4990 = vpack.c.b16 %v4698, %v4696
    %v4991 = vpack.c.b16 %v4699, %v4697
    %v4992 = vpack.c.b16 %v4702, %v4700
    %v4993 = vpack.c.b16 %v4703, %v4701
    %v4994 = vpack.c.b16 %v4706, %v4704
    %v4995 = vpack.c.b16 %v4707, %v4705
    %v4996 = vpack.c.b16 %v4710, %v4708
    %v4997 = vpack.c.b16 %v4711, %v4709
    %v4998 = vpack.c.b16 %v4714, %v4712
    %v4999 = vpack.c.b16 %v4715, %v4713
    %v5000 = vpack.c.b16 %v4718, %v4716
    %v5001 = vpack.c.b16 %v4719, %v4717
    %v5002 = vpack.c.b16 %v4722, %v4720
    %v5003 = vpack.c.b16 %v4723, %v4721
    %v5004 = vpack.c.b16 %v4726, %v4724
    %v5005 = vpack.c.b16 %v4727, %v4725
    %v5006 = vpack.c.b16 %v4730, %v4728
    %v5007 = vpack.c.b16 %v4731, %v4729
    %v5008 = vpack.c.b16 %v4734, %v4732
    %v5009 = vpack.c.b16 %v4735, %v4733
    %v5010 = vpack.c.b16 %v4738, %v4736
    %v5011 = vpack.c.b16 %v4739, %v4737
    %v5012 = vpack.c.b16 %v4742, %v4740
    %v5013 = vpack.c.b16 %v4743, %v4741
    %v5014 = vpack.c.b16 %v4746, %v4744
    %v5015 = vpack.c.b16 %v4747, %v4745
    %v5016 = vpack.c.b16 %v4750, %v4748
    %v5017 = vpack.c.b16 %v4751, %v4749
    %v5018 = vpack.c.b16 %v4754, %v4752
    %v5019 = vpack.c.b16 %v4755, %v4753
    %v5020 = vpack.c.b16 %v4758, %v4756
    %v5021 = vpack.c.b16 %v4759, %v4757
    %v5022 = vpack.c.b16 %v4762, %v4760
    %v5023 = vpack.c.b16 %v4763, %v4761
    %v5024 = vpack.c.b16 %v4766, %v4764
    %v5025 = vpack.c.b16 %v4767, %v4765
    %v5026 = vpack.c.b16 %v4770, %v4768
    %v5027 = vpack.c.b16 %v4771, %v4769
    %v5028 = vpack.c.b16 %v4774, %v4772
    %v5029 = vpack.c.b16 %v4775, %v4773
    %v5030 = vpack.c.b16 %v4778, %v4776
    %v5031 = vpack.c.b16 %v4779, %v4777
    %v5032 = vpack.c.b16 %v4782, %v4780
    %v5033 = vpack.c.b16 %v4783, %v4781
    %v5034 = vpack.c.b16 %v4786, %v4784
    %v5035 = vpack.c.b16 %v4787, %v4785
    %v5036 = vpack.c.b16 %v4790, %v4788
    %v5037 = vpack.c.b16 %v4791, %v4789
    %v5038 = vpack.c.b16 %v4794, %v4792
    %v5039 = vpack.c.b16 %v4795, %v4793
    %v5040 = vpack.c.b16 %v4798, %v4796
    %v5041 = vpack.c.b16 %v4799, %v4797
    %v5042 = vpack.c.b16 %v4802, %v4800
    %v5043 = vpack.c.b16 %v4803, %v4801
    %5284 = vmatpush.bf16.msra.mxu0 %v4818
    %5285 = vmatpush.bf16.msra.mxu0 %v4816
    %5286 = vmatpush.bf16.msra.mxu0 %v4814
    %5287 = vmatpush.bf16.msra.mxu0 %v4812
    %5288 = vmatpush.bf16.msra.mxu0 %v4810
    %5289 = vmatpush.bf16.msra.mxu0 %v4808
    %5290 = vmatpush.bf16.msra.mxu0 %v4806
    %5291 = vmatpush.bf16.msra.mxu0 %v4804
    %5292 = vmatmul.bf16.gmra.mxu0 %v3814
    %v5293 = vpop.f32.mrf.mxu0
    %v5294 = vadd.f32 0.0, %v5293
    %v5295 = vpop.f32.mrf.mxu0
    %v5296 = vadd.f32 0.0, %v5295
    %5297 = vmatmul.bf16.gmra.mxu0 %v3826
    %v5298 = vpop.f32.mrf.mxu0
    %v5299 = vadd.f32 0.0, %v5298
    %v5300 = vpop.f32.mrf.mxu0
    %v5301 = vadd.f32 0.0, %v5300
    %5302 = vmatmul.bf16.gmra.mxu0 %v3817
    %v5303 = vpop.f32.mrf.mxu0
    %v5304 = vadd.f32 0.0, %v5303
    %v5305 = vpop.f32.mrf.mxu0
    %v5306 = vadd.f32 0.0, %v5305
    %5307 = vmatmul.bf16.gmra.mxu0 %v3829
    %v5308 = vpop.f32.mrf.mxu0
    %v5309 = vadd.f32 0.0, %v5308
    %v5310 = vpop.f32.mrf.mxu0
    %v5311 = vadd.f32 0.0, %v5310
    %5312 = vdwg.mxu0
    %5313 = vmatpush.bf16.msra.mxu0 %v4834
    %5314 = vmatpush.bf16.msra.mxu0 %v4832
    %5315 = vmatpush.bf16.msra.mxu0 %v4830
    %5316 = vmatpush.bf16.msra.mxu0 %v4828
    %5317 = vmatpush.bf16.msra.mxu0 %v4826
    %5318 = vmatpush.bf16.msra.mxu0 %v4824
    %5319 = vmatpush.bf16.msra.mxu0 %v4822
    %5320 = vmatpush.bf16.msra.mxu0 %v4820
    %5321 = vmatmul.bf16.gmra.mxu0 %v3815
    %v5322 = vpop.f32.mrf.mxu0
    %v5323 = vadd.f32 %v5294, %v5322
    %v5324 = vpop.f32.mrf.mxu0
    %v5325 = vadd.f32 %v5296, %v5324
    %5326 = vmatmul.bf16.gmra.mxu0 %v3827
    %v5327 = vpop.f32.mrf.mxu0
    %v5328 = vadd.f32 %v5299, %v5327
    %v5329 = vpop.f32.mrf.mxu0
    %v5330 = vadd.f32 %v5301, %v5329
    %5331 = vmatmul.bf16.gmra.mxu0 %v3818
    %v5332 = vpop.f32.mrf.mxu0
    %v5333 = vadd.f32 %v5304, %v5332
    %v5334 = vpop.f32.mrf.mxu0
    %v5335 = vadd.f32 %v5306, %v5334
    %5336 = vmatmul.bf16.gmra.mxu0 %v3830
    %v5337 = vpop.f32.mrf.mxu0
    %v5338 = vadd.f32 %v5309, %v5337
    %v5339 = vpop.f32.mrf.mxu0
    %v5340 = vadd.f32 %v5311, %v5339
    %5341 = vdwg.mxu0
    %5342 = vmatpush.bf16.msra.mxu0 %v4850
    %5343 = vmatpush.bf16.msra.mxu0 %v4848
    %5344 = vmatpush.bf16.msra.mxu0 %v4846
    %5345 = vmatpush.bf16.msra.mxu0 %v4844
    %5346 = vmatpush.bf16.msra.mxu0 %v4842
    %5347 = vmatpush.bf16.msra.mxu0 %v4840
    %5348 = vmatpush.bf16.msra.mxu0 %v4838
    %5349 = vmatpush.bf16.msra.mxu0 %v4836
    %5350 = vmatmul.bf16.gmra.mxu0 %v3816
    %v5351 = vpop.f32.mrf.mxu0
    %v5352 = vadd.f32 %v5323, %v5351
    %v5353 = vpop.f32.mrf.mxu0
    %v5354 = vadd.f32 %v5325, %v5353
    %5355 = vmatmul.bf16.gmra.mxu0 %v3828
    %v5356 = vpop.f32.mrf.mxu0
    %v5357 = vadd.f32 %v5328, %v5356
    %v5358 = vpop.f32.mrf.mxu0
    %v5359 = vadd.f32 %v5330, %v5358
    %5360 = vmatmul.bf16.gmra.mxu0 %v3819
    %v5361 = vpop.f32.mrf.mxu0
    %v5362 = vadd.f32 %v5333, %v5361
    %v5363 = vpop.f32.mrf.mxu0
    %v5364 = vadd.f32 %v5335, %v5363
    %5365 = vmatmul.bf16.gmra.mxu0 %v3831
    %v5366 = vpop.f32.mrf.mxu0
    %v5367 = vadd.f32 %v5338, %v5366
    %v5368 = vpop.f32.mrf.mxu0
    %v5369 = vadd.f32 %v5340, %v5368
    %5370 = vdwg.mxu0
    %5371 = vmatpush.bf16.msra.mxu0 %v4866
    %5372 = vmatpush.bf16.msra.mxu0 %v4864
    %5373 = vmatpush.bf16.msra.mxu0 %v4862
    %5374 = vmatpush.bf16.msra.mxu0 %v4860
    %5375 = vmatpush.bf16.msra.mxu0 %v4858
    %5376 = vmatpush.bf16.msra.mxu0 %v4856
    %5377 = vmatpush.bf16.msra.mxu0 %v4854
    %5378 = vmatpush.bf16.msra.mxu0 %v4852
    %5379 = vmatmul.bf16.gmra.mxu0 %v3817
    %v5380 = vpop.f32.mrf.mxu0
    %v5381 = vadd.f32 %v5352, %v5380
    %v5382 = vpop.f32.mrf.mxu0
    %v5383 = vadd.f32 %v5354, %v5382
    %5384 = vmatmul.bf16.gmra.mxu0 %v3829
    %v5385 = vpop.f32.mrf.mxu0
    %v5386 = vadd.f32 %v5357, %v5385
    %v5387 = vpop.f32.mrf.mxu0
    %v5388 = vadd.f32 %v5359, %v5387
    %5389 = vmatmul.bf16.gmra.mxu0 %v3820
    %v5390 = vpop.f32.mrf.mxu0
    %v5391 = vadd.f32 %v5362, %v5390
    %v5392 = vpop.f32.mrf.mxu0
    %v5393 = vadd.f32 %v5364, %v5392
    %5394 = vmatmul.bf16.gmra.mxu0 %v3832
    %v5395 = vpop.f32.mrf.mxu0
    %v5396 = vadd.f32 %v5367, %v5395
    %v5397 = vpop.f32.mrf.mxu0
    %v5398 = vadd.f32 %v5369, %v5397
    %5399 = vdwg.mxu0
    %5400 = vmatpush.bf16.msra.mxu0 %v4882
    %5401 = vmatpush.bf16.msra.mxu0 %v4880
    %5402 = vmatpush.bf16.msra.mxu0 %v4878
    %5403 = vmatpush.bf16.msra.mxu0 %v4876
    %5404 = vmatpush.bf16.msra.mxu0 %v4874
    %5405 = vmatpush.bf16.msra.mxu0 %v4872
    %5406 = vmatpush.bf16.msra.mxu0 %v4870
    %5407 = vmatpush.bf16.msra.mxu0 %v4868
    %5408 = vmatmul.bf16.gmra.mxu0 %v3818
    %v5409 = vpop.f32.mrf.mxu0
    %v5410 = vadd.f32 %v5381, %v5409
    %v5411 = vpop.f32.mrf.mxu0
    %v5412 = vadd.f32 %v5383, %v5411
    %5413 = vmatmul.bf16.gmra.mxu0 %v3830
    %v5414 = vpop.f32.mrf.mxu0
    %v5415 = vadd.f32 %v5386, %v5414
    %v5416 = vpop.f32.mrf.mxu0
    %v5417 = vadd.f32 %v5388, %v5416
    %5418 = vmatmul.bf16.gmra.mxu0 %v3821
    %v5419 = vpop.f32.mrf.mxu0
    %v5420 = vadd.f32 %v5391, %v5419
    %v5421 = vpop.f32.mrf.mxu0
    %v5422 = vadd.f32 %v5393, %v5421
    %5423 = vmatmul.bf16.gmra.mxu0 %v3833
    %v5424 = vpop.f32.mrf.mxu0
    %v5425 = vadd.f32 %v5396, %v5424
    %v5426 = vpop.f32.mrf.mxu0
    %v5427 = vadd.f32 %v5398, %v5426
    %5428 = vdwg.mxu0
    %5429 = vmatpush.bf16.msra.mxu0 %v4898
    %5430 = vmatpush.bf16.msra.mxu0 %v4896
    %5431 = vmatpush.bf16.msra.mxu0 %v4894
    %5432 = vmatpush.bf16.msra.mxu0 %v4892
    %5433 = vmatpush.bf16.msra.mxu0 %v4890
    %5434 = vmatpush.bf16.msra.mxu0 %v4888
    %5435 = vmatpush.bf16.msra.mxu0 %v4886
    %5436 = vmatpush.bf16.msra.mxu0 %v4884
    %5437 = vmatmul.bf16.gmra.mxu0 %v3819
    %v5438 = vpop.f32.mrf.mxu0
    %v5439 = vadd.f32 %v5410, %v5438
    %v5440 = vpop.f32.mrf.mxu0
    %v5441 = vadd.f32 %v5412, %v5440
    %5442 = vmatmul.bf16.gmra.mxu0 %v3831
    %v5443 = vpop.f32.mrf.mxu0
    %v5444 = vadd.f32 %v5415, %v5443
    %v5445 = vpop.f32.mrf.mxu0
    %v5446 = vadd.f32 %v5417, %v5445
    %5447 = vmatmul.bf16.gmra.mxu0 %v3822
    %v5448 = vpop.f32.mrf.mxu0
    %v5449 = vadd.f32 %v5420, %v5448
    %v5450 = vpop.f32.mrf.mxu0
    %v5451 = vadd.f32 %v5422, %v5450
    %5452 = vmatmul.bf16.gmra.mxu0 %v3834
    %v5453 = vpop.f32.mrf.mxu0
    %v5454 = vadd.f32 %v5425, %v5453
    %v5455 = vpop.f32.mrf.mxu0
    %v5456 = vadd.f32 %v5427, %v5455
    %5457 = vdwg.mxu0
    %5458 = vmatpush.bf16.msra.mxu0 %v4914
    %5459 = vmatpush.bf16.msra.mxu0 %v4912
    %5460 = vmatpush.bf16.msra.mxu0 %v4910
    %5461 = vmatpush.bf16.msra.mxu0 %v4908
    %5462 = vmatpush.bf16.msra.mxu0 %v4906
    %5463 = vmatpush.bf16.msra.mxu0 %v4904
    %5464 = vmatpush.bf16.msra.mxu0 %v4902
    %5465 = vmatpush.bf16.msra.mxu0 %v4900
    %5466 = vmatmul.bf16.gmra.mxu0 %v3820
    %v5467 = vpop.f32.mrf.mxu0
    %v5468 = vadd.f32 %v5439, %v5467
    %v5469 = vpop.f32.mrf.mxu0
    %v5470 = vadd.f32 %v5441, %v5469
    %5471 = vmatmul.bf16.gmra.mxu0 %v3832
    %v5472 = vpop.f32.mrf.mxu0
    %v5473 = vadd.f32 %v5444, %v5472
    %v5474 = vpop.f32.mrf.mxu0
    %v5475 = vadd.f32 %v5446, %v5474
    %5476 = vmatmul.bf16.gmra.mxu0 %v3823
    %v5477 = vpop.f32.mrf.mxu0
    %v5478 = vadd.f32 %v5449, %v5477
    %v5479 = vpop.f32.mrf.mxu0
    %v5480 = vadd.f32 %v5451, %v5479
    %5481 = vmatmul.bf16.gmra.mxu0 %v3835
    %v5482 = vpop.f32.mrf.mxu0
    %v5483 = vadd.f32 %v5454, %v5482
    %v5484 = vpop.f32.mrf.mxu0
    %v5485 = vadd.f32 %v5456, %v5484
    %5486 = vdwg.mxu0
    %5487 = vmatpush.bf16.msra.mxu0 %v4930
    %5488 = vmatpush.bf16.msra.mxu0 %v4928
    %5489 = vmatpush.bf16.msra.mxu0 %v4926
    %5490 = vmatpush.bf16.msra.mxu0 %v4924
    %5491 = vmatpush.bf16.msra.mxu0 %v4922
    %5492 = vmatpush.bf16.msra.mxu0 %v4920
    %5493 = vmatpush.bf16.msra.mxu0 %v4918
    %5494 = vmatpush.bf16.msra.mxu0 %v4916
    %5495 = vmatmul.bf16.gmra.mxu0 %v3821
    %v5496 = vpop.f32.mrf.mxu0
    %v5497 = vadd.f32 %v5468, %v5496
    %v5498 = vpop.f32.mrf.mxu0
    %v5499 = vadd.f32 %v5470, %v5498
    %5500 = vmatmul.bf16.gmra.mxu0 %v3833
    %v5501 = vpop.f32.mrf.mxu0
    %v5502 = vadd.f32 %v5473, %v5501
    %v5503 = vpop.f32.mrf.mxu0
    %v5504 = vadd.f32 %v5475, %v5503
    %5505 = vmatmul.bf16.gmra.mxu0 %v3824
    %v5506 = vpop.f32.mrf.mxu0
    %v5507 = vadd.f32 %v5478, %v5506
    %v5508 = vpop.f32.mrf.mxu0
    %v5509 = vadd.f32 %v5480, %v5508
    %5510 = vmatmul.bf16.gmra.mxu0 %v3836
    %v5511 = vpop.f32.mrf.mxu0
    %v5512 = vadd.f32 %v5483, %v5511
    %v5513 = vpop.f32.mrf.mxu0
    %v5514 = vadd.f32 %v5485, %v5513
    %5515 = vdwg.mxu0
    %5516 = vmatpush.bf16.msra.mxu0 %v4946
    %5517 = vmatpush.bf16.msra.mxu0 %v4944
    %5518 = vmatpush.bf16.msra.mxu0 %v4942
    %5519 = vmatpush.bf16.msra.mxu0 %v4940
    %5520 = vmatpush.bf16.msra.mxu0 %v4938
    %5521 = vmatpush.bf16.msra.mxu0 %v4936
    %5522 = vmatpush.bf16.msra.mxu0 %v4934
    %5523 = vmatpush.bf16.msra.mxu0 %v4932
    %5524 = vmatmul.bf16.gmra.mxu0 %v3822
    %v5525 = vpop.f32.mrf.mxu0
    %v5526 = vadd.f32 %v5497, %v5525
    %v5527 = vpop.f32.mrf.mxu0
    %v5528 = vadd.f32 %v5499, %v5527
    %5529 = vmatmul.bf16.gmra.mxu0 %v3834
    %v5530 = vpop.f32.mrf.mxu0
    %v5531 = vadd.f32 %v5502, %v5530
    %v5532 = vpop.f32.mrf.mxu0
    %v5533 = vadd.f32 %v5504, %v5532
    %5534 = vmatmul.bf16.gmra.mxu0 %v3825
    %v5535 = vpop.f32.mrf.mxu0
    %v5536 = vadd.f32 %v5507, %v5535
    %v5537 = vpop.f32.mrf.mxu0
    %v5538 = vadd.f32 %v5509, %v5537
    %5539 = vmatmul.bf16.gmra.mxu0 %v3837
    %v5540 = vpop.f32.mrf.mxu0
    %v5541 = vadd.f32 %v5512, %v5540
    %v5542 = vpop.f32.mrf.mxu0
    %v5543 = vadd.f32 %v5514, %v5542
    %5544 = vdwg.mxu0
    %5545 = vmatpush.bf16.msra.mxu0 %v4962
    %5546 = vmatpush.bf16.msra.mxu0 %v4960
    %5547 = vmatpush.bf16.msra.mxu0 %v4958
    %5548 = vmatpush.bf16.msra.mxu0 %v4956
    %5549 = vmatpush.bf16.msra.mxu0 %v4954
    %5550 = vmatpush.bf16.msra.mxu0 %v4952
    %5551 = vmatpush.bf16.msra.mxu0 %v4950
    %5552 = vmatpush.bf16.msra.mxu0 %v4948
    %5553 = vmatmul.bf16.gmra.mxu0 %v3823
    %v5554 = vpop.f32.mrf.mxu0
    %v5555 = vadd.f32 %v5526, %v5554
    %v5556 = vpop.f32.mrf.mxu0
    %v5557 = vadd.f32 %v5528, %v5556
    %5558 = vmatmul.bf16.gmra.mxu0 %v3835
    %v5559 = vpop.f32.mrf.mxu0
    %v5560 = vadd.f32 %v5531, %v5559
    %v5561 = vpop.f32.mrf.mxu0
    %v5562 = vadd.f32 %v5533, %v5561
    %5563 = vmatmul.bf16.gmra.mxu0 %v3826
    %v5564 = vpop.f32.mrf.mxu0
    %v5565 = vadd.f32 %v5536, %v5564
    %v5566 = vpop.f32.mrf.mxu0
    %v5567 = vadd.f32 %v5538, %v5566
    %5568 = vmatmul.bf16.gmra.mxu0 %v3838
    %v5569 = vpop.f32.mrf.mxu0
    %v5570 = vadd.f32 %v5541, %v5569
    %v5571 = vpop.f32.mrf.mxu0
    %v5572 = vadd.f32 %v5543, %v5571
    %5573 = vdwg.mxu0
    %5574 = vmatpush.bf16.msra.mxu0 %v4978
    %5575 = vmatpush.bf16.msra.mxu0 %v4976
    %5576 = vmatpush.bf16.msra.mxu0 %v4974
    %5577 = vmatpush.bf16.msra.mxu0 %v4972
    %5578 = vmatpush.bf16.msra.mxu0 %v4970
    %5579 = vmatpush.bf16.msra.mxu0 %v4968
    %5580 = vmatpush.bf16.msra.mxu0 %v4966
    %5581 = vmatpush.bf16.msra.mxu0 %v4964
    %5582 = vmatmul.bf16.gmra.mxu0 %v3824
    %v5583 = vpop.f32.mrf.mxu0
    %v5584 = vadd.f32 %v5555, %v5583
    %v5585 = vpop.f32.mrf.mxu0
    %v5586 = vadd.f32 %v5557, %v5585
    %5587 = vmatmul.bf16.gmra.mxu0 %v3836
    %v5588 = vpop.f32.mrf.mxu0
    %v5589 = vadd.f32 %v5560, %v5588
    %v5590 = vpop.f32.mrf.mxu0
    %v5591 = vadd.f32 %v5562, %v5590
    %5592 = vmatmul.bf16.gmra.mxu0 %v3827
    %v5593 = vpop.f32.mrf.mxu0
    %v5594 = vadd.f32 %v5565, %v5593
    %v5595 = vpop.f32.mrf.mxu0
    %v5596 = vadd.f32 %v5567, %v5595
    %5597 = vmatmul.bf16.gmra.mxu0 %v3839
    %v5598 = vpop.f32.mrf.mxu0
    %v5599 = vadd.f32 %v5570, %v5598
    %v5600 = vpop.f32.mrf.mxu0
    %v5601 = vadd.f32 %v5572, %v5600
    %5602 = vdwg.mxu0
    %5603 = vmatpush.bf16.msra.mxu0 %v4994
    %5604 = vmatpush.bf16.msra.mxu0 %v4992
    %5605 = vmatpush.bf16.msra.mxu0 %v4990
    %5606 = vmatpush.bf16.msra.mxu0 %v4988
    %5607 = vmatpush.bf16.msra.mxu0 %v4986
    %5608 = vmatpush.bf16.msra.mxu0 %v4984
    %5609 = vmatpush.bf16.msra.mxu0 %v4982
    %5610 = vmatpush.bf16.msra.mxu0 %v4980
    %5611 = vmatmul.bf16.gmra.mxu0 %v3825
    %v5612 = vpop.f32.mrf.mxu0
    %v5613 = vadd.f32 %v5584, %v5612
    %v5614 = vpop.f32.mrf.mxu0
    %v5615 = vadd.f32 %v5586, %v5614
    %5616 = vmatmul.bf16.gmra.mxu0 %v3837
    %v5617 = vpop.f32.mrf.mxu0
    %v5618 = vadd.f32 %v5589, %v5617
    %v5619 = vpop.f32.mrf.mxu0
    %v5620 = vadd.f32 %v5591, %v5619
    %5621 = vmatmul.bf16.gmra.mxu0 %v3828
    %v5622 = vpop.f32.mrf.mxu0
    %v5623 = vadd.f32 %v5594, %v5622
    %v5624 = vpop.f32.mrf.mxu0
    %v5625 = vadd.f32 %v5596, %v5624
    %5626 = vmatmul.bf16.gmra.mxu0 %v3840
    %v5627 = vpop.f32.mrf.mxu0
    %v5628 = vadd.f32 %v5599, %v5627
    %v5629 = vpop.f32.mrf.mxu0
    %v5630 = vadd.f32 %v5601, %v5629
    %5631 = vdwg.mxu0
    %5632 = vmatpush.bf16.msra.mxu0 %v5010
    %5633 = vmatpush.bf16.msra.mxu0 %v5008
    %5634 = vmatpush.bf16.msra.mxu0 %v5006
    %5635 = vmatpush.bf16.msra.mxu0 %v5004
    %5636 = vmatpush.bf16.msra.mxu0 %v5002
    %5637 = vmatpush.bf16.msra.mxu0 %v5000
    %5638 = vmatpush.bf16.msra.mxu0 %v4998
    %5639 = vmatpush.bf16.msra.mxu0 %v4996
    %5640 = vmatmul.bf16.gmra.mxu0 %v3826
    %v5641 = vpop.f32.mrf.mxu0
    %v5642 = vadd.f32 %v5613, %v5641
    %v5643 = vpop.f32.mrf.mxu0
    %v5644 = vadd.f32 %v5615, %v5643
    %5645 = vmatmul.bf16.gmra.mxu0 %v3838
    %v5646 = vpop.f32.mrf.mxu0
    %v5647 = vadd.f32 %v5618, %v5646
    %v5648 = vpop.f32.mrf.mxu0
    %v5649 = vadd.f32 %v5620, %v5648
    %5650 = vmatmul.bf16.gmra.mxu0 %v3829
    %v5651 = vpop.f32.mrf.mxu0
    %v5652 = vadd.f32 %v5623, %v5651
    %v5653 = vpop.f32.mrf.mxu0
    %v5654 = vadd.f32 %v5625, %v5653
    %5655 = vmatmul.bf16.gmra.mxu0 %v3841
    %v5656 = vpop.f32.mrf.mxu0
    %v5657 = vadd.f32 %v5628, %v5656
    %v5658 = vpop.f32.mrf.mxu0
    %v5659 = vadd.f32 %v5630, %v5658
    %5660 = vdwg.mxu0
    %5661 = vmatpush.bf16.msra.mxu0 %v5026
    %5662 = vmatpush.bf16.msra.mxu0 %v5024
    %5663 = vmatpush.bf16.msra.mxu0 %v5022
    %5664 = vmatpush.bf16.msra.mxu0 %v5020
    %5665 = vmatpush.bf16.msra.mxu0 %v5018
    %5666 = vmatpush.bf16.msra.mxu0 %v5016
    %5667 = vmatpush.bf16.msra.mxu0 %v5014
    %5668 = vmatpush.bf16.msra.mxu0 %v5012
    %5669 = vmatmul.bf16.gmra.mxu0 %v3827
    %v5670 = vpop.f32.mrf.mxu0
    %v5671 = vadd.f32 %v5642, %v5670
    %v5672 = vpop.f32.mrf.mxu0
    %v5673 = vadd.f32 %v5644, %v5672
    %5674 = vmatmul.bf16.gmra.mxu0 %v3839
    %v5675 = vpop.f32.mrf.mxu0
    %v5676 = vadd.f32 %v5647, %v5675
    %v5677 = vpop.f32.mrf.mxu0
    %v5678 = vadd.f32 %v5649, %v5677
    %5679 = vmatmul.bf16.gmra.mxu0 %v3830
    %v5680 = vpop.f32.mrf.mxu0
    %v5681 = vadd.f32 %v5652, %v5680
    %v5682 = vpop.f32.mrf.mxu0
    %v5683 = vadd.f32 %v5654, %v5682
    %5684 = vmatmul.bf16.gmra.mxu0 %v3842
    %v5685 = vpop.f32.mrf.mxu0
    %v5686 = vadd.f32 %v5657, %v5685
    %v5687 = vpop.f32.mrf.mxu0
    %v5688 = vadd.f32 %v5659, %v5687
    %5689 = vdwg.mxu0
    %5690 = vmatpush.bf16.msra.mxu0 %v5042
    %5691 = vmatpush.bf16.msra.mxu0 %v5040
    %5692 = vmatpush.bf16.msra.mxu0 %v5038
    %5693 = vmatpush.bf16.msra.mxu0 %v5036
    %5694 = vmatpush.bf16.msra.mxu0 %v5034
    %5695 = vmatpush.bf16.msra.mxu0 %v5032
    %5696 = vmatpush.bf16.msra.mxu0 %v5030
    %5697 = vmatpush.bf16.msra.mxu0 %v5028
    %5698 = vmatmul.bf16.gmra.mxu0 %v3828
    %v5699 = vpop.f32.mrf.mxu0
    %v5700 = vadd.f32 %v5671, %v5699
    %v5701 = vpop.f32.mrf.mxu0
    %v5702 = vadd.f32 %v5673, %v5701
    %5703 = vmatmul.bf16.gmra.mxu0 %v3840
    %v5704 = vpop.f32.mrf.mxu0
    %v5705 = vadd.f32 %v5676, %v5704
    %v5706 = vpop.f32.mrf.mxu0
    %v5707 = vadd.f32 %v5678, %v5706
    %5708 = vmatmul.bf16.gmra.mxu0 %v3831
    %v5709 = vpop.f32.mrf.mxu0
    %v5710 = vadd.f32 %v5681, %v5709
    %v5711 = vpop.f32.mrf.mxu0
    %v5712 = vadd.f32 %v5683, %v5711
    %5713 = vmatmul.bf16.gmra.mxu0 %v3843
    %v5714 = vpop.f32.mrf.mxu0
    %v5715 = vadd.f32 %v5686, %v5714
    %v5716 = vpop.f32.mrf.mxu0
    %v5717 = vadd.f32 %v5688, %v5716
    %5718 = vdwg.mxu0
    %5719 = vmatpush.bf16.msra.mxu0 %v4819
    %5720 = vmatpush.bf16.msra.mxu0 %v4817
    %5721 = vmatpush.bf16.msra.mxu0 %v4815
    %5722 = vmatpush.bf16.msra.mxu0 %v4813
    %5723 = vmatpush.bf16.msra.mxu0 %v4811
    %5724 = vmatpush.bf16.msra.mxu0 %v4809
    %5725 = vmatpush.bf16.msra.mxu0 %v4807
    %5726 = vmatpush.bf16.msra.mxu0 %v4805
    %5727 = vmatmul.bf16.gmra.mxu0 %v3814
    %v5728 = vpop.f32.mrf.mxu0
    %v5729 = vadd.f32 0.0, %v5728
    %v5730 = vpop.f32.mrf.mxu0
    %v5731 = vadd.f32 0.0, %v5730
    %5732 = vmatmul.bf16.gmra.mxu0 %v3826
    %v5733 = vpop.f32.mrf.mxu0
    %v5734 = vadd.f32 0.0, %v5733
    %v5735 = vpop.f32.mrf.mxu0
    %v5736 = vadd.f32 0.0, %v5735
    %5737 = vmatmul.bf16.gmra.mxu0 %v3817
    %v5738 = vpop.f32.mrf.mxu0
    %v5739 = vadd.f32 0.0, %v5738
    %v5740 = vpop.f32.mrf.mxu0
    %v5741 = vadd.f32 0.0, %v5740
    %5742 = vmatmul.bf16.gmra.mxu0 %v3829
    %v5743 = vpop.f32.mrf.mxu0
    %v5744 = vadd.f32 0.0, %v5743
    %v5745 = vpop.f32.mrf.mxu0
    %v5746 = vadd.f32 0.0, %v5745
    %5747 = vdwg.mxu0
    %5748 = vmatpush.bf16.msra.mxu0 %v4835
    %5749 = vmatpush.bf16.msra.mxu0 %v4833
    %5750 = vmatpush.bf16.msra.mxu0 %v4831
    %5751 = vmatpush.bf16.msra.mxu0 %v4829
    %5752 = vmatpush.bf16.msra.mxu0 %v4827
    %5753 = vmatpush.bf16.msra.mxu0 %v4825
    %5754 = vmatpush.bf16.msra.mxu0 %v4823
    %5755 = vmatpush.bf16.msra.mxu0 %v4821
    %5756 = vmatmul.bf16.gmra.mxu0 %v3815
    %v5757 = vpop.f32.mrf.mxu0
    %v5758 = vadd.f32 %v5729, %v5757
    %v5759 = vpop.f32.mrf.mxu0
    %v5760 = vadd.f32 %v5731, %v5759
    %5761 = vmatmul.bf16.gmra.mxu0 %v3827
    %v5762 = vpop.f32.mrf.mxu0
    %v5763 = vadd.f32 %v5734, %v5762
    %v5764 = vpop.f32.mrf.mxu0
    %v5765 = vadd.f32 %v5736, %v5764
    %5766 = vmatmul.bf16.gmra.mxu0 %v3818
    %v5767 = vpop.f32.mrf.mxu0
    %v5768 = vadd.f32 %v5739, %v5767
    %v5769 = vpop.f32.mrf.mxu0
    %v5770 = vadd.f32 %v5741, %v5769
    %5771 = vmatmul.bf16.gmra.mxu0 %v3830
    %v5772 = vpop.f32.mrf.mxu0
    %v5773 = vadd.f32 %v5744, %v5772
    %v5774 = vpop.f32.mrf.mxu0
    %v5775 = vadd.f32 %v5746, %v5774
    %5776 = vdwg.mxu0
    %5777 = vmatpush.bf16.msra.mxu0 %v4851
    %5778 = vmatpush.bf16.msra.mxu0 %v4849
    %5779 = vmatpush.bf16.msra.mxu0 %v4847
    %5780 = vmatpush.bf16.msra.mxu0 %v4845
    %5781 = vmatpush.bf16.msra.mxu0 %v4843
    %5782 = vmatpush.bf16.msra.mxu0 %v4841
    %5783 = vmatpush.bf16.msra.mxu0 %v4839
    %5784 = vmatpush.bf16.msra.mxu0 %v4837
    %5785 = vmatmul.bf16.gmra.mxu0 %v3816
    %v5786 = vpop.f32.mrf.mxu0
    %v5787 = vadd.f32 %v5758, %v5786
    %v5788 = vpop.f32.mrf.mxu0
    %v5789 = vadd.f32 %v5760, %v5788
    %5790 = vmatmul.bf16.gmra.mxu0 %v3828
    %v5791 = vpop.f32.mrf.mxu0
    %v5792 = vadd.f32 %v5763, %v5791
    %v5793 = vpop.f32.mrf.mxu0
    %v5794 = vadd.f32 %v5765, %v5793
    %5795 = vmatmul.bf16.gmra.mxu0 %v3819
    %v5796 = vpop.f32.mrf.mxu0
    %v5797 = vadd.f32 %v5768, %v5796
    %v5798 = vpop.f32.mrf.mxu0
    %v5799 = vadd.f32 %v5770, %v5798
    %5800 = vmatmul.bf16.gmra.mxu0 %v3831
    %v5801 = vpop.f32.mrf.mxu0
    %v5802 = vadd.f32 %v5773, %v5801
    %v5803 = vpop.f32.mrf.mxu0
    %v5804 = vadd.f32 %v5775, %v5803
    %5805 = vdwg.mxu0
    %5806 = vmatpush.bf16.msra.mxu0 %v4867
    %5807 = vmatpush.bf16.msra.mxu0 %v4865
    %5808 = vmatpush.bf16.msra.mxu0 %v4863
    %5809 = vmatpush.bf16.msra.mxu0 %v4861
    %5810 = vmatpush.bf16.msra.mxu0 %v4859
    %5811 = vmatpush.bf16.msra.mxu0 %v4857
    %5812 = vmatpush.bf16.msra.mxu0 %v4855
    %5813 = vmatpush.bf16.msra.mxu0 %v4853
    %5814 = vmatmul.bf16.gmra.mxu0 %v3817
    %v5815 = vpop.f32.mrf.mxu0
    %v5816 = vadd.f32 %v5787, %v5815
    %v5817 = vpop.f32.mrf.mxu0
    %v5818 = vadd.f32 %v5789, %v5817
    %5819 = vmatmul.bf16.gmra.mxu0 %v3829
    %v5820 = vpop.f32.mrf.mxu0
    %v5821 = vadd.f32 %v5792, %v5820
    %v5822 = vpop.f32.mrf.mxu0
    %v5823 = vadd.f32 %v5794, %v5822
    %5824 = vmatmul.bf16.gmra.mxu0 %v3820
    %v5825 = vpop.f32.mrf.mxu0
    %v5826 = vadd.f32 %v5797, %v5825
    %v5827 = vpop.f32.mrf.mxu0
    %v5828 = vadd.f32 %v5799, %v5827
    %5829 = vmatmul.bf16.gmra.mxu0 %v3832
    %v5830 = vpop.f32.mrf.mxu0
    %v5831 = vadd.f32 %v5802, %v5830
    %v5832 = vpop.f32.mrf.mxu0
    %v5833 = vadd.f32 %v5804, %v5832
    %5834 = vdwg.mxu0
    %5835 = vmatpush.bf16.msra.mxu0 %v4883
    %5836 = vmatpush.bf16.msra.mxu0 %v4881
    %5837 = vmatpush.bf16.msra.mxu0 %v4879
    %5838 = vmatpush.bf16.msra.mxu0 %v4877
    %5839 = vmatpush.bf16.msra.mxu0 %v4875
    %5840 = vmatpush.bf16.msra.mxu0 %v4873
    %5841 = vmatpush.bf16.msra.mxu0 %v4871
    %5842 = vmatpush.bf16.msra.mxu0 %v4869
    %5843 = vmatmul.bf16.gmra.mxu0 %v3818
    %v5844 = vpop.f32.mrf.mxu0
    %v5845 = vadd.f32 %v5816, %v5844
    %v5846 = vpop.f32.mrf.mxu0
    %v5847 = vadd.f32 %v5818, %v5846
    %5848 = vmatmul.bf16.gmra.mxu0 %v3830
    %v5849 = vpop.f32.mrf.mxu0
    %v5850 = vadd.f32 %v5821, %v5849
    %v5851 = vpop.f32.mrf.mxu0
    %v5852 = vadd.f32 %v5823, %v5851
    %5853 = vmatmul.bf16.gmra.mxu0 %v3821
    %v5854 = vpop.f32.mrf.mxu0
    %v5855 = vadd.f32 %v5826, %v5854
    %v5856 = vpop.f32.mrf.mxu0
    %v5857 = vadd.f32 %v5828, %v5856
    %5858 = vmatmul.bf16.gmra.mxu0 %v3833
    %v5859 = vpop.f32.mrf.mxu0
    %v5860 = vadd.f32 %v5831, %v5859
    %v5861 = vpop.f32.mrf.mxu0
    %v5862 = vadd.f32 %v5833, %v5861
    %5863 = vdwg.mxu0
    %5864 = vmatpush.bf16.msra.mxu0 %v4899
    %5865 = vmatpush.bf16.msra.mxu0 %v4897
    %5866 = vmatpush.bf16.msra.mxu0 %v4895
    %5867 = vmatpush.bf16.msra.mxu0 %v4893
    %5868 = vmatpush.bf16.msra.mxu0 %v4891
    %5869 = vmatpush.bf16.msra.mxu0 %v4889
    %5870 = vmatpush.bf16.msra.mxu0 %v4887
    %5871 = vmatpush.bf16.msra.mxu0 %v4885
    %5872 = vmatmul.bf16.gmra.mxu0 %v3819
    %v5873 = vpop.f32.mrf.mxu0
    %v5874 = vadd.f32 %v5845, %v5873
    %v5875 = vpop.f32.mrf.mxu0
    %v5876 = vadd.f32 %v5847, %v5875
    %5877 = vmatmul.bf16.gmra.mxu0 %v3831
    %v5878 = vpop.f32.mrf.mxu0
    %v5879 = vadd.f32 %v5850, %v5878
    %v5880 = vpop.f32.mrf.mxu0
    %v5881 = vadd.f32 %v5852, %v5880
    %5882 = vmatmul.bf16.gmra.mxu0 %v3822
    %v5883 = vpop.f32.mrf.mxu0
    %v5884 = vadd.f32 %v5855, %v5883
    %v5885 = vpop.f32.mrf.mxu0
    %v5886 = vadd.f32 %v5857, %v5885
    %5887 = vmatmul.bf16.gmra.mxu0 %v3834
    %v5888 = vpop.f32.mrf.mxu0
    %v5889 = vadd.f32 %v5860, %v5888
    %v5890 = vpop.f32.mrf.mxu0
    %v5891 = vadd.f32 %v5862, %v5890
    %5892 = vdwg.mxu0
    %5893 = vmatpush.bf16.msra.mxu0 %v4915
    %5894 = vmatpush.bf16.msra.mxu0 %v4913
    %5895 = vmatpush.bf16.msra.mxu0 %v4911
    %5896 = vmatpush.bf16.msra.mxu0 %v4909
    %5897 = vmatpush.bf16.msra.mxu0 %v4907
    %5898 = vmatpush.bf16.msra.mxu0 %v4905
    %5899 = vmatpush.bf16.msra.mxu0 %v4903
    %5900 = vmatpush.bf16.msra.mxu0 %v4901
    %5901 = vmatmul.bf16.gmra.mxu0 %v3820
    %v5902 = vpop.f32.mrf.mxu0
    %v5903 = vadd.f32 %v5874, %v5902
    %v5904 = vpop.f32.mrf.mxu0
    %v5905 = vadd.f32 %v5876, %v5904
    %5906 = vmatmul.bf16.gmra.mxu0 %v3832
    %v5907 = vpop.f32.mrf.mxu0
    %v5908 = vadd.f32 %v5879, %v5907
    %v5909 = vpop.f32.mrf.mxu0
    %v5910 = vadd.f32 %v5881, %v5909
    %5911 = vmatmul.bf16.gmra.mxu0 %v3823
    %v5912 = vpop.f32.mrf.mxu0
    %v5913 = vadd.f32 %v5884, %v5912
    %v5914 = vpop.f32.mrf.mxu0
    %v5915 = vadd.f32 %v5886, %v5914
    %5916 = vmatmul.bf16.gmra.mxu0 %v3835
    %v5917 = vpop.f32.mrf.mxu0
    %v5918 = vadd.f32 %v5889, %v5917
    %v5919 = vpop.f32.mrf.mxu0
    %v5920 = vadd.f32 %v5891, %v5919
    %5921 = vdwg.mxu0
    %5922 = vmatpush.bf16.msra.mxu0 %v4931
    %5923 = vmatpush.bf16.msra.mxu0 %v4929
    %5924 = vmatpush.bf16.msra.mxu0 %v4927
    %5925 = vmatpush.bf16.msra.mxu0 %v4925
    %5926 = vmatpush.bf16.msra.mxu0 %v4923
    %5927 = vmatpush.bf16.msra.mxu0 %v4921
    %5928 = vmatpush.bf16.msra.mxu0 %v4919
    %5929 = vmatpush.bf16.msra.mxu0 %v4917
    %5930 = vmatmul.bf16.gmra.mxu0 %v3821
    %v5931 = vpop.f32.mrf.mxu0
    %v5932 = vadd.f32 %v5903, %v5931
    %v5933 = vpop.f32.mrf.mxu0
    %v5934 = vadd.f32 %v5905, %v5933
    %5935 = vmatmul.bf16.gmra.mxu0 %v3833
    %v5936 = vpop.f32.mrf.mxu0
    %v5937 = vadd.f32 %v5908, %v5936
    %v5938 = vpop.f32.mrf.mxu0
    %v5939 = vadd.f32 %v5910, %v5938
    %5940 = vmatmul.bf16.gmra.mxu0 %v3824
    %v5941 = vpop.f32.mrf.mxu0
    %v5942 = vadd.f32 %v5913, %v5941
    %v5943 = vpop.f32.mrf.mxu0
    %v5944 = vadd.f32 %v5915, %v5943
    %5945 = vmatmul.bf16.gmra.mxu0 %v3836
    %v5946 = vpop.f32.mrf.mxu0
    %v5947 = vadd.f32 %v5918, %v5946
    %v5948 = vpop.f32.mrf.mxu0
    %v5949 = vadd.f32 %v5920, %v5948
    %5950 = vdwg.mxu0
    %5951 = vmatpush.bf16.msra.mxu0 %v4947
    %5952 = vmatpush.bf16.msra.mxu0 %v4945
    %5953 = vmatpush.bf16.msra.mxu0 %v4943
    %5954 = vmatpush.bf16.msra.mxu0 %v4941
    %5955 = vmatpush.bf16.msra.mxu0 %v4939
    %5956 = vmatpush.bf16.msra.mxu0 %v4937
    %5957 = vmatpush.bf16.msra.mxu0 %v4935
    %5958 = vmatpush.bf16.msra.mxu0 %v4933
    %5959 = vmatmul.bf16.gmra.mxu0 %v3822
    %v5960 = vpop.f32.mrf.mxu0
    %v5961 = vadd.f32 %v5932, %v5960
    %v5962 = vpop.f32.mrf.mxu0
    %v5963 = vadd.f32 %v5934, %v5962
    %5964 = vmatmul.bf16.gmra.mxu0 %v3834
    %v5965 = vpop.f32.mrf.mxu0
    %v5966 = vadd.f32 %v5937, %v5965
    %v5967 = vpop.f32.mrf.mxu0
    %v5968 = vadd.f32 %v5939, %v5967
    %5969 = vmatmul.bf16.gmra.mxu0 %v3825
    %v5970 = vpop.f32.mrf.mxu0
    %v5971 = vadd.f32 %v5942, %v5970
    %v5972 = vpop.f32.mrf.mxu0
    %v5973 = vadd.f32 %v5944, %v5972
    %5974 = vmatmul.bf16.gmra.mxu0 %v3837
    %v5975 = vpop.f32.mrf.mxu0
    %v5976 = vadd.f32 %v5947, %v5975
    %v5977 = vpop.f32.mrf.mxu0
    %v5978 = vadd.f32 %v5949, %v5977
    %5979 = vdwg.mxu0
    %5980 = vmatpush.bf16.msra.mxu0 %v4963
    %5981 = vmatpush.bf16.msra.mxu0 %v4961
    %5982 = vmatpush.bf16.msra.mxu0 %v4959
    %5983 = vmatpush.bf16.msra.mxu0 %v4957
    %5984 = vmatpush.bf16.msra.mxu0 %v4955
    %5985 = vmatpush.bf16.msra.mxu0 %v4953
    %5986 = vmatpush.bf16.msra.mxu0 %v4951
    %5987 = vmatpush.bf16.msra.mxu0 %v4949
    %5988 = vmatmul.bf16.gmra.mxu0 %v3823
    %v5989 = vpop.f32.mrf.mxu0
    %v5990 = vadd.f32 %v5961, %v5989
    %v5991 = vpop.f32.mrf.mxu0
    %v5992 = vadd.f32 %v5963, %v5991
    %5993 = vmatmul.bf16.gmra.mxu0 %v3835
    %v5994 = vpop.f32.mrf.mxu0
    %v5995 = vadd.f32 %v5966, %v5994
    %v5996 = vpop.f32.mrf.mxu0
    %v5997 = vadd.f32 %v5968, %v5996
    %5998 = vmatmul.bf16.gmra.mxu0 %v3826
    %v5999 = vpop.f32.mrf.mxu0
    %v6000 = vadd.f32 %v5971, %v5999
    %v6001 = vpop.f32.mrf.mxu0
    %v6002 = vadd.f32 %v5973, %v6001
    %6003 = vmatmul.bf16.gmra.mxu0 %v3838
    %v6004 = vpop.f32.mrf.mxu0
    %v6005 = vadd.f32 %v5976, %v6004
    %v6006 = vpop.f32.mrf.mxu0
    %v6007 = vadd.f32 %v5978, %v6006
    %6008 = vdwg.mxu0
    %6009 = vmatpush.bf16.msra.mxu0 %v4979
    %6010 = vmatpush.bf16.msra.mxu0 %v4977
    %6011 = vmatpush.bf16.msra.mxu0 %v4975
    %6012 = vmatpush.bf16.msra.mxu0 %v4973
    %6013 = vmatpush.bf16.msra.mxu0 %v4971
    %6014 = vmatpush.bf16.msra.mxu0 %v4969
    %6015 = vmatpush.bf16.msra.mxu0 %v4967
    %6016 = vmatpush.bf16.msra.mxu0 %v4965
    %6017 = vmatmul.bf16.gmra.mxu0 %v3824
    %v6018 = vpop.f32.mrf.mxu0
    %v6019 = vadd.f32 %v5990, %v6018
    %v6020 = vpop.f32.mrf.mxu0
    %v6021 = vadd.f32 %v5992, %v6020
    %6022 = vmatmul.bf16.gmra.mxu0 %v3836
    %v6023 = vpop.f32.mrf.mxu0
    %v6024 = vadd.f32 %v5995, %v6023
    %v6025 = vpop.f32.mrf.mxu0
    %v6026 = vadd.f32 %v5997, %v6025
    %6027 = vmatmul.bf16.gmra.mxu0 %v3827
    %v6028 = vpop.f32.mrf.mxu0
    %v6029 = vadd.f32 %v6000, %v6028
    %v6030 = vpop.f32.mrf.mxu0
    %v6031 = vadd.f32 %v6002, %v6030
    %6032 = vmatmul.bf16.gmra.mxu0 %v3839
    %v6033 = vpop.f32.mrf.mxu0
    %v6034 = vadd.f32 %v6005, %v6033
    %v6035 = vpop.f32.mrf.mxu0
    %v6036 = vadd.f32 %v6007, %v6035
    %6037 = vdwg.mxu0
    %6038 = vmatpush.bf16.msra.mxu0 %v4995
    %6039 = vmatpush.bf16.msra.mxu0 %v4993
    %6040 = vmatpush.bf16.msra.mxu0 %v4991
    %6041 = vmatpush.bf16.msra.mxu0 %v4989
    %6042 = vmatpush.bf16.msra.mxu0 %v4987
    %6043 = vmatpush.bf16.msra.mxu0 %v4985
    %6044 = vmatpush.bf16.msra.mxu0 %v4983
    %6045 = vmatpush.bf16.msra.mxu0 %v4981
    %6046 = vmatmul.bf16.gmra.mxu0 %v3825
    %v6047 = vpop.f32.mrf.mxu0
    %v6048 = vadd.f32 %v6019, %v6047
    %v6049 = vpop.f32.mrf.mxu0
    %v6050 = vadd.f32 %v6021, %v6049
    %6051 = vmatmul.bf16.gmra.mxu0 %v3837
    %v6052 = vpop.f32.mrf.mxu0
    %v6053 = vadd.f32 %v6024, %v6052
    %v6054 = vpop.f32.mrf.mxu0
    %v6055 = vadd.f32 %v6026, %v6054
    %6056 = vmatmul.bf16.gmra.mxu0 %v3828
    %v6057 = vpop.f32.mrf.mxu0
    %v6058 = vadd.f32 %v6029, %v6057
    %v6059 = vpop.f32.mrf.mxu0
    %v6060 = vadd.f32 %v6031, %v6059
    %6061 = vmatmul.bf16.gmra.mxu0 %v3840
    %v6062 = vpop.f32.mrf.mxu0
    %v6063 = vadd.f32 %v6034, %v6062
    %v6064 = vpop.f32.mrf.mxu0
    %v6065 = vadd.f32 %v6036, %v6064
    %6066 = vdwg.mxu0
    %6067 = vmatpush.bf16.msra.mxu0 %v5011
    %6068 = vmatpush.bf16.msra.mxu0 %v5009
    %6069 = vmatpush.bf16.msra.mxu0 %v5007
    %6070 = vmatpush.bf16.msra.mxu0 %v5005
    %6071 = vmatpush.bf16.msra.mxu0 %v5003
    %6072 = vmatpush.bf16.msra.mxu0 %v5001
    %6073 = vmatpush.bf16.msra.mxu0 %v4999
    %6074 = vmatpush.bf16.msra.mxu0 %v4997
    %6075 = vmatmul.bf16.gmra.mxu0 %v3826
    %v6076 = vpop.f32.mrf.mxu0
    %v6077 = vadd.f32 %v6048, %v6076
    %v6078 = vpop.f32.mrf.mxu0
    %v6079 = vadd.f32 %v6050, %v6078
    %6080 = vmatmul.bf16.gmra.mxu0 %v3838
    %v6081 = vpop.f32.mrf.mxu0
    %v6082 = vadd.f32 %v6053, %v6081
    %v6083 = vpop.f32.mrf.mxu0
    %v6084 = vadd.f32 %v6055, %v6083
    %6085 = vmatmul.bf16.gmra.mxu0 %v3829
    %v6086 = vpop.f32.mrf.mxu0
    %v6087 = vadd.f32 %v6058, %v6086
    %v6088 = vpop.f32.mrf.mxu0
    %v6089 = vadd.f32 %v6060, %v6088
    %6090 = vmatmul.bf16.gmra.mxu0 %v3841
    %v6091 = vpop.f32.mrf.mxu0
    %v6092 = vadd.f32 %v6063, %v6091
    %v6093 = vpop.f32.mrf.mxu0
    %v6094 = vadd.f32 %v6065, %v6093
    %6095 = vdwg.mxu0
    %6096 = vmatpush.bf16.msra.mxu0 %v5027
    %6097 = vmatpush.bf16.msra.mxu0 %v5025
    %6098 = vmatpush.bf16.msra.mxu0 %v5023
    %6099 = vmatpush.bf16.msra.mxu0 %v5021
    %6100 = vmatpush.bf16.msra.mxu0 %v5019
    %6101 = vmatpush.bf16.msra.mxu0 %v5017
    %6102 = vmatpush.bf16.msra.mxu0 %v5015
    %6103 = vmatpush.bf16.msra.mxu0 %v5013
    %6104 = vmatmul.bf16.gmra.mxu0 %v3827
    %v6105 = vpop.f32.mrf.mxu0
    %v6106 = vadd.f32 %v6077, %v6105
    %v6107 = vpop.f32.mrf.mxu0
    %v6108 = vadd.f32 %v6079, %v6107
    %6109 = vmatmul.bf16.gmra.mxu0 %v3839
    %v6110 = vpop.f32.mrf.mxu0
    %v6111 = vadd.f32 %v6082, %v6110
    %v6112 = vpop.f32.mrf.mxu0
    %v6113 = vadd.f32 %v6084, %v6112
    %6114 = vmatmul.bf16.gmra.mxu0 %v3830
    %v6115 = vpop.f32.mrf.mxu0
    %v6116 = vadd.f32 %v6087, %v6115
    %v6117 = vpop.f32.mrf.mxu0
    %v6118 = vadd.f32 %v6089, %v6117
    %6119 = vmatmul.bf16.gmra.mxu0 %v3842
    %v6120 = vpop.f32.mrf.mxu0
    %v6121 = vadd.f32 %v6092, %v6120
    %v6122 = vpop.f32.mrf.mxu0
    %v6123 = vadd.f32 %v6094, %v6122
    %6124 = vdwg.mxu0
    %6125 = vmatpush.bf16.msra.mxu0 %v5043
    %6126 = vmatpush.bf16.msra.mxu0 %v5041
    %6127 = vmatpush.bf16.msra.mxu0 %v5039
    %6128 = vmatpush.bf16.msra.mxu0 %v5037
    %6129 = vmatpush.bf16.msra.mxu0 %v5035
    %6130 = vmatpush.bf16.msra.mxu0 %v5033
    %6131 = vmatpush.bf16.msra.mxu0 %v5031
    %6132 = vmatpush.bf16.msra.mxu0 %v5029
    %6133 = vmatmul.bf16.gmra.mxu0 %v3828
    %v6134 = vpop.f32.mrf.mxu0
    %v6135 = vadd.f32 %v6106, %v6134
    %v6136 = vpop.f32.mrf.mxu0
    %v6137 = vadd.f32 %v6108, %v6136
    %6138 = vmatmul.bf16.gmra.mxu0 %v3840
    %v6139 = vpop.f32.mrf.mxu0
    %v6140 = vadd.f32 %v6111, %v6139
    %v6141 = vpop.f32.mrf.mxu0
    %v6142 = vadd.f32 %v6113, %v6141
    %6143 = vmatmul.bf16.gmra.mxu0 %v3831
    %v6144 = vpop.f32.mrf.mxu0
    %v6145 = vadd.f32 %v6116, %v6144
    %v6146 = vpop.f32.mrf.mxu0
    %v6147 = vadd.f32 %v6118, %v6146
    %6148 = vmatmul.bf16.gmra.mxu0 %v3843
    %v6149 = vpop.f32.mrf.mxu0
    %v6150 = vadd.f32 %v6121, %v6149
    %v6151 = vpop.f32.mrf.mxu0
    %v6152 = vadd.f32 %v6123, %v6151
    %6153 = vdwg.mxu0
    %v6154 = vmax.f32 %v5700, %v5710
    %v6155 = vmax.f32 %v6135, %v6145
    %v6156 = vmax.f32 %v5702, %v5712
    %v6157 = vmax.f32 %v6137, %v6147
    %v6158 = vmax.f32 %v5705, %v5715
    %v6159 = vmax.f32 %v6140, %v6150
    %v6160 = vmax.f32 %v5707, %v5717
    %v6161 = vmax.f32 %v6142, %v6152
    %v6162 = vmax.f32 %v6154, %v6155
    %v6163 = vmax.f32 %v6156, %v6157
    %v6164 = vmax.f32 %v6158, %v6159
    %v6165 = vmax.f32 %v6160, %v6161
    %v6166 = vld [vmem:[%s4] sm:$0x1]
    %v6168 = vperm.slane %v6166, 0
    %v6170 = vadd.f32 %v6162, %v6168
    %v6171 = vadd.f32 %v6163, %v6168
    %v6172 = vadd.f32 %v6164, %v6168
    %v6173 = vadd.f32 %v6165, %v6168
    %v6174 = vmax.f32 %v6170, 0.0
    %v6175 = vmax.f32 %v6171, 0.0
    %v6176 = vmax.f32 %v6172, 0.0
    %v6177 = vmax.f32 %v6173, 0.0
    %v6178 = vpack.c.bf16 %v6174, %v6174
    %v6179 = vpack.c.bf16 %v6175, %v6175
    %v6180 = vpack.c.bf16 %v6176, %v6176
    %v6181 = vpack.c.bf16 %v6177, %v6177
    %v6182 = vld [vmem:[%s5] sm:$0xf]
    %v6183 = vld [vmem:[%s5 + $0x4] sm:$0xf]
    %v6184 = vld [vmem:[%s5 + $0x8] sm:$0xf]
    %v6185 = vld [vmem:[%s5 + $0xc] sm:$0xf]
    %v6186 = vld [vmem:[%s5 + $0x10] sm:$0xf]
    %v6187 = vld [vmem:[%s5 + $0x14] sm:$0xf]
    %v6188 = vld [vmem:[%s5 + $0x18] sm:$0xf]
    %v6189 = vld [vmem:[%s5 + $0x1c] sm:$0xf]
    %v6190 = vld [vmem:[%s5 + $0x20] sm:$0xf]
    %v6191 = vld [vmem:[%s5 + $0x24] sm:$0xf]
    %v6192 = vld [vmem:[%s5 + $0x28] sm:$0xf]
    %v6193 = vld [vmem:[%s5 + $0x2c] sm:$0xf]
    %v6194 = vld [vmem:[%s5 + $0x30] sm:$0xf]
    %v6195 = vld [vmem:[%s5 + $0x34] sm:$0xf]
    %v6196 = vld [vmem:[%s5 + $0x38] sm:$0xf]
    %v6197 = vld [vmem:[%s5 + $0x3c] sm:$0xf]
    %v6198 = vld [vmem:[%s5 + $0x40] sm:$0xf]
    %v6199 = vld [vmem:[%s5 + $0x44] sm:$0xf]
    %v6200 = vld [vmem:[%s5 + $0x48] sm:$0xf]
    %v6201 = vld [vmem:[%s5 + $0x4c] sm:$0xf]
    %v6202 = vld [vmem:[%s5 + $0x50] sm:$0xf]
    %v6203 = vld [vmem:[%s5 + $0x54] sm:$0xf]
    %v6204 = vld [vmem:[%s5 + $0x58] sm:$0xf]
    %v6205 = vld [vmem:[%s5 + $0x5c] sm:$0xf]
    %v6206 = vld [vmem:[%s5 + $0x60] sm:$0xf]
    %v6207 = vld [vmem:[%s5 + $0x64] sm:$0xf]
    %v6208 = vld [vmem:[%s5 + $0x68] sm:$0xf]
    %v6209 = vld [vmem:[%s5 + $0x6c] sm:$0xf]
    %v6210 = vld [vmem:[%s5 + $0x70] sm:$0xf]
    %v6211 = vld [vmem:[%s5 + $0x74] sm:$0xf]
    %v6212 = vld [vmem:[%s5 + $0x78] sm:$0xf]
    %v6213 = vld [vmem:[%s5 + $0x7c] sm:$0xf]
    %v6214 = vld [vmem:[%s5 + $0x80] sm:$0xf]
    %v6215 = vld [vmem:[%s5 + $0x84] sm:$0xf]
    %v6216 = vld [vmem:[%s5 + $0x88] sm:$0xf]
    %v6217 = vld [vmem:[%s5 + $0x8c] sm:$0xf]
    %v6218 = vld [vmem:[%s5 + $0x90] sm:$0xf]
    %v6219 = vld [vmem:[%s5 + $0x94] sm:$0xf]
    %v6220 = vld [vmem:[%s5 + $0x98] sm:$0xf]
    %v6221 = vld [vmem:[%s5 + $0x9c] sm:$0xf]
    %v6222 = vld [vmem:[%s5 + $0xa0] sm:$0xf]
    %v6223 = vld [vmem:[%s5 + $0xa4] sm:$0xf]
    %v6224 = vld [vmem:[%s5 + $0xa8] sm:$0xf]
    %v6225 = vld [vmem:[%s5 + $0xac] sm:$0xf]
    %v6226 = vld [vmem:[%s5 + $0xb0] sm:$0xf]
    %v6227 = vld [vmem:[%s5 + $0xb4] sm:$0xf]
    %v6228 = vld [vmem:[%s5 + $0xb8] sm:$0xf]
    %v6229 = vld [vmem:[%s5 + $0xbc] sm:$0xf]
    %v6230 = vld [vmem:[%s5 + $0xc0] sm:$0xf]
    %v6231 = vld [vmem:[%s5 + $0xc4] sm:$0xf]
    %v6232 = vld [vmem:[%s5 + $0xc8] sm:$0xf]
    %v6233 = vld [vmem:[%s5 + $0xcc] sm:$0xf]
    %v6234 = vld [vmem:[%s5 + $0xd0] sm:$0xf]
    %v6235 = vld [vmem:[%s5 + $0xd4] sm:$0xf]
    %v6236 = vld [vmem:[%s5 + $0xd8] sm:$0xf]
    %v6237 = vld [vmem:[%s5 + $0xdc] sm:$0xf]
    %v6238 = vld [vmem:[%s5 + $0xe0] sm:$0xf]
    %v6239 = vld [vmem:[%s5 + $0xe4] sm:$0xf]
    %v6240 = vld [vmem:[%s5 + $0xe8] sm:$0xf]
    %v6241 = vld [vmem:[%s5 + $0xec] sm:$0xf]
    %v6242 = vld [vmem:[%s5 + $0xf0] sm:$0xf]
    %v6243 = vld [vmem:[%s5 + $0xf4] sm:$0xf]
    %v6244 = vld [vmem:[%s5 + $0xf8] sm:$0xf]
    %v6245 = vld [vmem:[%s5 + $0xfc] sm:$0xf]
    %v6246 = vld [vmem:[%s6] sm:$0x1]
    %v6248 = vperm.slane %v6246, 0
    %v6314 = vunpack.c.l.b16 %v6182
    %v6315 = vunpack.c.l.b16 %v6183
    %v6316 = vunpack.c.l.b16 %v6184
    %v6317 = vunpack.c.l.b16 %v6185
    %v6318 = vunpack.c.l.b16 %v6186
    %v6319 = vunpack.c.l.b16 %v6187
    %v6320 = vunpack.c.l.b16 %v6188
    %v6321 = vunpack.c.l.b16 %v6189
    %v6322 = vunpack.c.l.b16 %v6190
    %v6323 = vunpack.c.l.b16 %v6191
    %v6324 = vunpack.c.l.b16 %v6192
    %v6325 = vunpack.c.l.b16 %v6193
    %v6326 = vunpack.c.l.b16 %v6194
    %v6327 = vunpack.c.l.b16 %v6195
    %v6328 = vunpack.c.l.b16 %v6196
    %v6329 = vunpack.c.l.b16 %v6197
    %v6330 = vunpack.c.l.b16 %v6198
    %v6331 = vunpack.c.l.b16 %v6199
    %v6332 = vunpack.c.l.b16 %v6200
    %v6333 = vunpack.c.l.b16 %v6201
    %v6334 = vunpack.c.l.b16 %v6202
    %v6335 = vunpack.c.l.b16 %v6203
    %v6336 = vunpack.c.l.b16 %v6204
    %v6337 = vunpack.c.l.b16 %v6205
    %v6338 = vunpack.c.l.b16 %v6206
    %v6339 = vunpack.c.l.b16 %v6207
    %v6340 = vunpack.c.l.b16 %v6208
    %v6341 = vunpack.c.l.b16 %v6209
    %v6342 = vunpack.c.l.b16 %v6210
    %v6343 = vunpack.c.l.b16 %v6211
    %v6344 = vunpack.c.l.b16 %v6212
    %v6345 = vunpack.c.l.b16 %v6213
    %v6346 = vunpack.c.l.b16 %v6214
    %v6347 = vunpack.c.l.b16 %v6215
    %v6348 = vunpack.c.l.b16 %v6216
    %v6349 = vunpack.c.l.b16 %v6217
    %v6350 = vunpack.c.l.b16 %v6218
    %v6351 = vunpack.c.l.b16 %v6219
    %v6352 = vunpack.c.l.b16 %v6220
    %v6353 = vunpack.c.l.b16 %v6221
    %v6354 = vunpack.c.l.b16 %v6222
    %v6355 = vunpack.c.l.b16 %v6223
    %v6356 = vunpack.c.l.b16 %v6224
    %v6357 = vunpack.c.l.b16 %v6225
    %v6358 = vunpack.c.l.b16 %v6226
    %v6359 = vunpack.c.l.b16 %v6227
    %v6360 = vunpack.c.l.b16 %v6228
    %v6361 = vunpack.c.l.b16 %v6229
    %v6362 = vunpack.c.l.b16 %v6230
    %v6363 = vunpack.c.l.b16 %v6231
    %v6364 = vunpack.c.l.b16 %v6232
    %v6365 = vunpack.c.l.b16 %v6233
    %v6366 = vunpack.c.l.b16 %v6234
    %v6367 = vunpack.c.l.b16 %v6235
    %v6368 = vunpack.c.l.b16 %v6236
    %v6369 = vunpack.c.l.b16 %v6237
    %v6370 = vunpack.c.l.b16 %v6238
    %v6371 = vunpack.c.l.b16 %v6239
    %v6372 = vunpack.c.l.b16 %v6240
    %v6373 = vunpack.c.l.b16 %v6241
    %v6374 = vunpack.c.l.b16 %v6242
    %v6375 = vunpack.c.l.b16 %v6243
    %v6376 = vunpack.c.l.b16 %v6244
    %v6377 = vunpack.c.l.b16 %v6245
    %v6378 = vpack.c.b16 %v6315, %v6314
    %v6379 = vpack.c.b16 %v6317, %v6316
    %v6380 = vpack.c.b16 %v6319, %v6318
    %v6381 = vpack.c.b16 %v6321, %v6320
    %v6382 = vpack.c.b16 %v6323, %v6322
    %v6383 = vpack.c.b16 %v6325, %v6324
    %v6384 = vpack.c.b16 %v6327, %v6326
    %v6385 = vpack.c.b16 %v6329, %v6328
    %v6386 = vpack.c.b16 %v6331, %v6330
    %v6387 = vpack.c.b16 %v6333, %v6332
    %v6388 = vpack.c.b16 %v6335, %v6334
    %v6389 = vpack.c.b16 %v6337, %v6336
    %v6390 = vpack.c.b16 %v6339, %v6338
    %v6391 = vpack.c.b16 %v6341, %v6340
    %v6392 = vpack.c.b16 %v6343, %v6342
    %v6393 = vpack.c.b16 %v6345, %v6344
    %v6394 = vpack.c.b16 %v6347, %v6346
    %v6395 = vpack.c.b16 %v6349, %v6348
    %v6396 = vpack.c.b16 %v6351, %v6350
    %v6397 = vpack.c.b16 %v6353, %v6352
    %v6398 = vpack.c.b16 %v6355, %v6354
    %v6399 = vpack.c.b16 %v6357, %v6356
    %v6400 = vpack.c.b16 %v6359, %v6358
    %v6401 = vpack.c.b16 %v6361, %v6360
    %v6402 = vpack.c.b16 %v6363, %v6362
    %v6403 = vpack.c.b16 %v6365, %v6364
    %v6404 = vpack.c.b16 %v6367, %v6366
    %v6405 = vpack.c.b16 %v6369, %v6368
    %v6406 = vpack.c.b16 %v6371, %v6370
    %v6407 = vpack.c.b16 %v6373, %v6372
    %v6408 = vpack.c.b16 %v6375, %v6374
    %v6409 = vpack.c.b16 %v6377, %v6376
    %6442 = vmatpush.bf16.msra.mxu0 %v6385
    %6443 = vmatpush.bf16.msra.mxu0 %v6384
    %6444 = vmatpush.bf16.msra.mxu0 %v6383
    %6445 = vmatpush.bf16.msra.mxu0 %v6382
    %6446 = vmatpush.bf16.msra.mxu0 %v6381
    %6447 = vmatpush.bf16.msra.mxu0 %v6380
    %6448 = vmatpush.bf16.msra.mxu0 %v6379
    %6449 = vmatpush.bf16.msra.mxu0 %v6378
    %6450 = vmatmul.bf16.gmra.mxu0 %v6178
    %v6451 = vpop.f32.mrf.mxu0
    %v6452 = vadd.f32 %v6248, %v6451
    %v6453 = vpop.f32.mrf.mxu0
    %6454 = vdwg.mxu0
    %6455 = vmatpush.bf16.msra.mxu0 %v6393
    %6456 = vmatpush.bf16.msra.mxu0 %v6392
    %6457 = vmatpush.bf16.msra.mxu0 %v6391
    %6458 = vmatpush.bf16.msra.mxu0 %v6390
    %6459 = vmatpush.bf16.msra.mxu0 %v6389
    %6460 = vmatpush.bf16.msra.mxu0 %v6388
    %6461 = vmatpush.bf16.msra.mxu0 %v6387
    %6462 = vmatpush.bf16.msra.mxu0 %v6386
    %6463 = vmatmul.bf16.gmra.mxu0 %v6179
    %v6464 = vpop.f32.mrf.mxu0
    %v6465 = vadd.f32 %v6452, %v6464
    %v6466 = vpop.f32.mrf.mxu0
    %6467 = vdwg.mxu0
    %6468 = vmatpush.bf16.msra.mxu0 %v6401
    %6469 = vmatpush.bf16.msra.mxu0 %v6400
    %6470 = vmatpush.bf16.msra.mxu0 %v6399
    %6471 = vmatpush.bf16.msra.mxu0 %v6398
    %6472 = vmatpush.bf16.msra.mxu0 %v6397
    %6473 = vmatpush.bf16.msra.mxu0 %v6396
    %6474 = vmatpush.bf16.msra.mxu0 %v6395
    %6475 = vmatpush.bf16.msra.mxu0 %v6394
    %6476 = vmatmul.bf16.gmra.mxu0 %v6180
    %v6477 = vpop.f32.mrf.mxu0
    %v6478 = vadd.f32 %v6465, %v6477
    %v6479 = vpop.f32.mrf.mxu0
    %6480 = vdwg.mxu0
    %6481 = vmatpush.bf16.msra.mxu0 %v6409
    %6482 = vmatpush.bf16.msra.mxu0 %v6408
    %6483 = vmatpush.bf16.msra.mxu0 %v6407
    %6484 = vmatpush.bf16.msra.mxu0 %v6406
    %6485 = vmatpush.bf16.msra.mxu0 %v6405
    %6486 = vmatpush.bf16.msra.mxu0 %v6404
    %6487 = vmatpush.bf16.msra.mxu0 %v6403
    %6488 = vmatpush.bf16.msra.mxu0 %v6402
    %6489 = vmatmul.bf16.gmra.mxu0 %v6181
    %v6490 = vpop.f32.mrf.mxu0
    %v6491 = vadd.f32 %v6478, %v6490
    %v6492 = vpop.f32.mrf.mxu0
    %6493 = vdwg.mxu0
    %v6494 = vmax.f32 %v6491, 0.0
    %v6495 = vpack.c.bf16 %v6494, %v6494
    %v6496 = vld [vmem:[%s7] sm:$0xf]
    %v6497 = vld [vmem:[%s7 + $0x4] sm:$0xf]
    %v6498 = vld [vmem:[%s7 + $0x8] sm:$0xf]
    %v6499 = vld [vmem:[%s7 + $0xc] sm:$0xf]
    %v6500 = vld [vmem:[%s7 + $0x10] sm:$0xf]
    %v6501 = vld [vmem:[%s7 + $0x14] sm:$0xf]
    %v6502 = vld [vmem:[%s7 + $0x18] sm:$0xf]
    %v6503 = vld [vmem:[%s7 + $0x1c] sm:$0xf]
    %v6504 = vld [vmem:[%s7 + $0x20] sm:$0xf]
    %v6505 = vld [vmem:[%s7 + $0x24] sm:$0xf]
    %v6506 = vld [vmem:[%s7 + $0x28] sm:$0xf]
    %v6507 = vld [vmem:[%s7 + $0x2c] sm:$0xf]
    %v6508 = vld [vmem:[%s7 + $0x30] sm:$0xf]
    %v6509 = vld [vmem:[%s7 + $0x34] sm:$0xf]
    %v6510 = vld [vmem:[%s7 + $0x38] sm:$0xf]
    %v6511 = vld [vmem:[%s7 + $0x3c] sm:$0xf]
    %v6512 = vld [vmem:[%s8] sm:$0x1]
    %v6514 = vperm.slane %v6512, 0
    %v6532 = vunpack.c.l.b16 %v6496
    %v6533 = vunpack.c.l.b16 %v6497
    %v6534 = vunpack.c.l.b16 %v6498
    %v6535 = vunpack.c.l.b16 %v6499
    %v6536 = vunpack.c.l.b16 %v6500
    %v6537 = vunpack.c.l.b16 %v6501
    %v6538 = vunpack.c.l.b16 %v6502
    %v6539 = vunpack.c.l.b16 %v6503
    %v6540 = vunpack.c.l.b16 %v6504
    %v6541 = vunpack.c.l.b16 %v6505
    %v6542 = vunpack.c.l.b16 %v6506
    %v6543 = vunpack.c.l.b16 %v6507
    %v6544 = vunpack.c.l.b16 %v6508
    %v6545 = vunpack.c.l.b16 %v6509
    %v6546 = vunpack.c.l.b16 %v6510
    %v6547 = vunpack.c.l.b16 %v6511
    %v6548 = vpack.c.b16 %v6533, %v6532
    %v6549 = vpack.c.b16 %v6535, %v6534
    %v6550 = vpack.c.b16 %v6537, %v6536
    %v6551 = vpack.c.b16 %v6539, %v6538
    %v6552 = vpack.c.b16 %v6541, %v6540
    %v6553 = vpack.c.b16 %v6543, %v6542
    %v6554 = vpack.c.b16 %v6545, %v6544
    %v6555 = vpack.c.b16 %v6547, %v6546
    %6564 = vmatpush.bf16.msra.mxu0 %v6555
    %6565 = vmatpush.bf16.msra.mxu0 %v6554
    %6566 = vmatpush.bf16.msra.mxu0 %v6553
    %6567 = vmatpush.bf16.msra.mxu0 %v6552
    %6568 = vmatpush.bf16.msra.mxu0 %v6551
    %6569 = vmatpush.bf16.msra.mxu0 %v6550
    %6570 = vmatpush.bf16.msra.mxu0 %v6549
    %6571 = vmatpush.bf16.msra.mxu0 %v6548
    %6572 = vmatmul.bf16.gmra.mxu0 %v6495
    %v6573 = vpop.f32.mrf.mxu0
    %v6574 = vadd.f32 %v6514, %v6573
    %v6575 = vpop.f32.mrf.mxu0
    %6576 = vdwg.mxu0
    %v6577 = vlaneseq
    %v6578 = vand.u32 %v6577, 127
    %vm6579 = vcmp.lt.s32.totalorder %v6578, 10
    %v6580 = vsel %vm6579, 1, 0
    %vm6581 = vcmp.eq.s32.totalorder %v6580, 1
    %v6582 = vsel %vm6581, %v6574, -1e+30
    %6583 = vmax.xlane.f32.xlu0 %v6582
    %v6584 = vpop.xlane.xlu0 %6583
    %v6585 = vsub.f32 %v6582, %v6584
    %v6586 = vmul.f32 %v6585, 1.442695
    %v6587 = vpow.pop %v6586
    %6588 = vadd.xlane.f32.xlu0 %v6587
    %v6589 = vpop.xlane.xlu0 %6588
    %v6590 = vlog2.pop %v6589
    %v6591 = vmul.f32 %v6590, 0.6931472
    %v6592 = vsub.f32 %v6585, %v6591
    %6593 = vst [vmem:[%s9] sm:$0xff] %v6592
    // Predicated region
    $region46: #{net_forward.1} parent=1 // pred_check
      _
    $region47: #{net_forward.1} parent=1 // pred_check_branch
      %6595 = sbr.rel (0) target = $region49
    $region48: #{net_forward.1} parent=1 // pred_region
      _
    $region49: #{net_forward.1} parent=1 // pred_fallthru
      _
    // Predicated region
    $region50: #{net_forward.1} parent=1 // pred_check
      _
    $region51: #{net_forward.1} parent=1 // pred_check_branch
      %6597 = sbr.rel (0) target = $region53
    $region52: #{net_forward.1} parent=1 // pred_region
      _
    $region53: #{net_forward.1} parent=1 // pred_fallthru
      _
    %6598 = vsyncpa [#allocation3], 1
    %6599 = vsyncpa [#allocation5], 1

</llo_original>
